<compile_context>
chip_gen: v6e
topology: v6e:2x2x1
jax: 0.10.0
libtpu: 0.0.40
codegen_flags: <defaults>
</compile_context>

<pallas_src>
import jax
import jax.numpy as jnp
from jax.experimental import pallas as pl
from jax.experimental.pallas import tpu as pltpu


# MLP layer sizes (matches the nn.Sequential in EdgeAttention.__init__).
def layer_dims(input_size):
    return [(input_size, 100), (100, 100), (100, 50), (50, 20), (20, 10), (10, 1)]


def _round_up(x, m):
    return (x + m - 1) // m * m


def edge_attention_kernel(jet_ref, sn_ref, sh_ref, dn_ref, dh_ref,
                          w1a_ref, w1b_ref, w1c_ref, w1d_ref, w1e_ref, b1_ref,
                          w2_ref, b2_ref, w3_ref, b3_ref, w4_ref, b4_ref,
                          w5_ref, b5_ref, w6t_ref, b6_ref, out_ref):
    """One tile of edges: fused concat (split W1) + full MLP + sigmoid."""
    f32 = jnp.float32

    # Layer 1: z @ W1 == sum of per-feature-group partial matmuls (fused concat).
    acc = jnp.dot(jet_ref[...], w1a_ref[...], preferred_element_type=f32)
    acc += jnp.dot(sn_ref[...], w1b_ref[...], preferred_element_type=f32)
    acc += jnp.dot(sh_ref[...], w1c_ref[...], preferred_element_type=f32)
    acc += jnp.dot(dn_ref[...], w1d_ref[...], preferred_element_type=f32)
    acc += jnp.dot(dh_ref[...], w1e_ref[...], preferred_element_type=f32)
    x = jnp.maximum(acc + b1_ref[...], 0.0)                     # (T, 100) f32

    def linear_relu(x, w_ref, b_ref):
        w = w_ref[...]
        y = jnp.dot(x.astype(w.dtype), w, preferred_element_type=f32)
        return jnp.maximum(y + b_ref[...], 0.0)                 # bias/ReLU in f32

    x = linear_relu(x, w2_ref, b2_ref)                          # (T, 100)
    x = linear_relu(x, w3_ref, b3_ref)                          # (T, 50)
    x = linear_relu(x, w4_ref, b4_ref)                          # (T, 20)
    x = linear_relu(x, w5_ref, b5_ref)                          # (T, 10)

    # Final Linear(10,1) + Sigmoid, computed transposed so the output block is
    # lane-dense:  (1,10) . (T,10)^T -> (1, T).
    w6t = w6t_ref[...]
    logits = jax.lax.dot_general(
        w6t, x.astype(w6t.dtype),
        dimension_numbers=(((1,), (1,)), ((), ())),
        preferred_element_type=f32)                             # (1, T)
    out_ref[...] = jax.nn.sigmoid(logits + b6_ref[...]).astype(out_ref.dtype)


def edge_attention_forward(features, params, *, tile_rows=2048,
                           input_dtype=jnp.bfloat16, vmem_limit_bytes=None):
    """features: [src_jet, src_node, src_h, dst_node, dst_h], each (E, d_k).
    params: list of (W, b), W shaped (in, out), b shaped (1, out).
    Returns e_weight of shape (E, 1), float32.

    tile_rows=2048 fits the default scoped-VMEM limit on all TPU generations;
    on v6e/v7x it can be raised to 4096-8192 (pass vmem_limit_bytes as well)
    for more per-step work.
    """
    assert len(features) == 5
    E = features[0].shape[0]
    dims = [int(f.shape[1]) for f in features]
    d_in = sum(dims)
    assert params[0][0].shape[0] == d_in

    # Row tiling: 128-aligned tile, pad E up to a tile multiple (ragged-safe).
    tile = max(128, min(_round_up(tile_rows, 128), _round_up(E, 128)))
    e_pad = _round_up(E, tile)
    num_tiles = e_pad // tile

    feats = []
    for f in features:
        if e_pad != E:
            f = jnp.pad(f, ((0, e_pad - E), (0, 0)))
        feats.append(f.astype(input_dtype))   # bf16: halves the dominant HBM stream

    # Split W1 along its input dim so concat(z) is never materialized.
    w1, b1 = params[0]
    w1_parts, off = [], 0
    for d in dims:
        w1_parts.append(w1[off:off + d, :].astype(input_dtype))
        off += d

    mid = []
    for w, b in params[1:-1]:
        mid += [w.astype(input_dtype), b.astype(jnp.float32)]

    w_last, b_last = params[-1]
    w_last_t = w_last.T.astype(input_dtype)             # (1, 10)
    b_last = b_last.reshape(1, 1).astype(jnp.float32)   # (1, 1)

    param_inputs = w1_parts + [b1.astype(jnp.float32)] + mid + [w_last_t, b_last]
    inputs = feats + param_inputs

    # Features tiled over rows; params are full, grid-invariant blocks
    # (constant index_map -> VMEM-resident, not re-DMA'd per step).
    feat_specs = [pl.BlockSpec((tile, d), lambda i: (i, 0)) for d in dims]
    param_specs = [pl.BlockSpec(p.shape, lambda i: (0, 0)) for p in param_inputs]
    out_spec = pl.BlockSpec((1, tile), lambda i: (0, i))   # lane-dense output

    flops_per_row = 2 * sum(fi * fo for fi, fo in layer_dims(d_in))
    cost = pl.CostEstimate(
        flops=flops_per_row * e_pad,
        transcendentals=e_pad,                      # one sigmoid (exp) per edge
        bytes_accessed=(e_pad * d_in * feats[0].dtype.itemsize
                        + e_pad * 4
                        + sum(int(p.size) * p.dtype.itemsize for p in param_inputs)),
    )

    cp = dict(dimension_semantics=("parallel",))
    if vmem_limit_bytes is not None:
        cp["vmem_limit_bytes"] = vmem_limit_bytes

    out = pl.pallas_call(
        edge_attention_kernel,
        out_shape=jax.ShapeDtypeStruct((1, e_pad), jnp.float32),
        grid=(num_tiles,),
        in_specs=feat_specs + param_specs,
        out_specs=out_spec,
        compiler_params=pltpu.CompilerParams(**cp),
        cost_estimate=cost,
    )(*inputs)

    return out.reshape(-1)[:E].reshape(E, 1)


def init_params(key, input_size):
    """U[-1/sqrt(fan_in), 1/sqrt(fan_in)] init, mimicking torch.nn.Linear."""
    params = []
    for fan_in, fan_out in layer_dims(input_size):
        key, kw, kb = jax.random.split(key, 3)
        bound = 1.0 / (fan_in ** 0.5)
        w = jax.random.uniform(kw, (fan_in, fan_out), jnp.float32, -bound, bound)
        b = jax.random.uniform(kb, (1, fan_out), jnp.float32, -bound, bound)
        params.append((w, b))
    return params


def reference_forward(features, params, input_dtype=jnp.bfloat16):
    """Pure-JAX reference mirroring the kernel's quantization: matmul inputs
    (features, weights, activations) in input_dtype, f32 accumulation, f32
    bias/ReLU/sigmoid.  With input_dtype=float32 this is exactly the original
    module's forward."""
    hp = jax.lax.Precision.HIGHEST
    q = lambda a: a.astype(input_dtype).astype(jnp.float32)
    x = jnp.concatenate([q(f) for f in features], axis=1)
    for i, (w, b) in enumerate(params):
        x = jnp.dot(q(x), q(w), precision=hp) + b
        if i < len(params) - 1:
            x = jnp.maximum(x, 0.0)
    return jax.nn.sigmoid(x)


if __name__ == "__main__":
    key = jax.random.PRNGKey(0)

    # Small synthetic edge batch (E deliberately NOT a multiple of 128 to
    # exercise the ragged-E padding path).  jet_features=4, node_features=8,
    # h=8 -> input_size = 4 + 2*8 + 2*8 = 36.
    E = 300
    d_jet, d_node, d_h = 4, 8, 8
    input_size = d_jet + 2 * d_node + 2 * d_h

    key, k1, k2, k3, k4, k5, kp = jax.random.split(key, 7)
    src_jet = jax.random.normal(k1, (E, d_jet), jnp.float32)
    src_node = jax.random.normal(k2, (E, d_node), jnp.float32)
    src_h = jax.random.normal(k3, (E, d_h), jnp.float32)
    dst_node = jax.random.normal(k4, (E, d_node), jnp.float32)
    dst_h = jax.random.normal(k5, (E, d_h), jnp.float32)

    # Same order as torch.cat(parm_list, dim=1) in EdgeAttention.forward.
    features = [src_jet, src_node, src_h, dst_node, dst_h]
    params = init_params(kp, input_size)

    e_weight = edge_attention_forward(features, params,
                                      input_dtype=jnp.bfloat16)
    e_weight = jax.block_until_ready(e_weight)   # {'e_weight': e_weight} in torch

    # Check against a pure-JAX reference that applies the same bf16 input
    # quantization (tolerance covers bf16 rounding + MXU accumulation order).
    ref = reference_forward(features, params, input_dtype=jnp.bfloat16)
    assert e_weight.shape == (E, 1)
    assert jnp.allclose(e_weight, ref, atol=1e-2, rtol=1e-2)
    assert float(jnp.mean(jnp.abs(e_weight - ref))) < 1e-3

    print("KERNEL_OK")
</pallas_src>

<mosaic_0001>
module attributes {stable_mosaic.version = 11 : i64} {
  func.func @edge_attention_kernel(%arg0: i32, %arg1: memref<384x4xbf16, #tpu.memory_space<vmem>>, %arg2: memref<384x8xbf16, #tpu.memory_space<vmem>>, %arg3: memref<384x8xbf16, #tpu.memory_space<vmem>>, %arg4: memref<384x8xbf16, #tpu.memory_space<vmem>>, %arg5: memref<384x8xbf16, #tpu.memory_space<vmem>>, %arg6: memref<4x100xbf16, #tpu.memory_space<vmem>>, %arg7: memref<8x100xbf16, #tpu.memory_space<vmem>>, %arg8: memref<8x100xbf16, #tpu.memory_space<vmem>>, %arg9: memref<8x100xbf16, #tpu.memory_space<vmem>>, %arg10: memref<8x100xbf16, #tpu.memory_space<vmem>>, %arg11: memref<1x100xf32, #tpu.memory_space<vmem>>, %arg12: memref<100x100xbf16, #tpu.memory_space<vmem>>, %arg13: memref<1x100xf32, #tpu.memory_space<vmem>>, %arg14: memref<100x50xbf16, #tpu.memory_space<vmem>>, %arg15: memref<1x50xf32, #tpu.memory_space<vmem>>, %arg16: memref<50x20xbf16, #tpu.memory_space<vmem>>, %arg17: memref<1x20xf32, #tpu.memory_space<vmem>>, %arg18: memref<20x10xbf16, #tpu.memory_space<vmem>>, %arg19: memref<1x10xf32, #tpu.memory_space<vmem>>, %arg20: memref<1x10xbf16, #tpu.memory_space<vmem>>, %arg21: memref<1x1xf32, #tpu.memory_space<vmem>>, %arg22: memref<1x384xf32, #tpu.memory_space<vmem>>) attributes {dimension_semantics = [#tpu.dimension_semantics<parallel>], iteration_bounds = array<i64: 1>, scalar_prefetch = 0 : i64, scratch_operands = 0 : i64, tpu.core_type = #tpu.core_type<tc>, window_params = [{transform_indices = @transform_0, window_bounds = array<i64: 384, 4>}, {transform_indices = @transform_1, window_bounds = array<i64: 384, 8>}, {transform_indices = @transform_2, window_bounds = array<i64: 384, 8>}, {transform_indices = @transform_3, window_bounds = array<i64: 384, 8>}, {transform_indices = @transform_4, window_bounds = array<i64: 384, 8>}, {pipeline_mode = #tpu.pipeline_mode<synchronous>, transform_indices = @transform_5, window_bounds = array<i64: 4, 100>}, {pipeline_mode = #tpu.pipeline_mode<synchronous>, transform_indices = @transform_6, window_bounds = array<i64: 8, 100>}, {pipeline_mode = #tpu.pipeline_mode<synchronous>, transform_indices = @transform_7, window_bounds = array<i64: 8, 100>}, {pipeline_mode = #tpu.pipeline_mode<synchronous>, transform_indices = @transform_8, window_bounds = array<i64: 8, 100>}, {pipeline_mode = #tpu.pipeline_mode<synchronous>, transform_indices = @transform_9, window_bounds = array<i64: 8, 100>}, {pipeline_mode = #tpu.pipeline_mode<synchronous>, transform_indices = @transform_10, window_bounds = array<i64: 1, 100>}, {pipeline_mode = #tpu.pipeline_mode<synchronous>, transform_indices = @transform_11, window_bounds = array<i64: 100, 100>}, {pipeline_mode = #tpu.pipeline_mode<synchronous>, transform_indices = @transform_12, window_bounds = array<i64: 1, 100>}, {pipeline_mode = #tpu.pipeline_mode<synchronous>, transform_indices = @transform_13, window_bounds = array<i64: 100, 50>}, {pipeline_mode = #tpu.pipeline_mode<synchronous>, transform_indices = @transform_14, window_bounds = array<i64: 1, 50>}, {pipeline_mode = #tpu.pipeline_mode<synchronous>, transform_indices = @transform_15, window_bounds = array<i64: 50, 20>}, {pipeline_mode = #tpu.pipeline_mode<synchronous>, transform_indices = @transform_16, window_bounds = array<i64: 1, 20>}, {pipeline_mode = #tpu.pipeline_mode<synchronous>, transform_indices = @transform_17, window_bounds = array<i64: 20, 10>}, {pipeline_mode = #tpu.pipeline_mode<synchronous>, transform_indices = @transform_18, window_bounds = array<i64: 1, 10>}, {pipeline_mode = #tpu.pipeline_mode<synchronous>, transform_indices = @transform_19, window_bounds = array<i64: 1, 10>}, {pipeline_mode = #tpu.pipeline_mode<synchronous>, transform_indices = @transform_20, window_bounds = array<i64: 1, 1>}, {transform_indices = @transform_21, window_bounds = array<i64: 1, 384>}]} {
    %c0 = arith.constant 0 : index
    %c0_0 = arith.constant 0 : index
    %0 = vector.load %arg1[%c0, %c0_0] : memref<384x4xbf16, #tpu.memory_space<vmem>>, vector<384x4xbf16>
    %c0_1 = arith.constant 0 : index
    %c0_2 = arith.constant 0 : index
    %1 = vector.load %arg6[%c0_1, %c0_2] : memref<4x100xbf16, #tpu.memory_space<vmem>>, vector<4x100xbf16>
    %cst = arith.constant dense<0.000000e+00> : vector<384x100xf32>
    %2 = tpu.matmul %0, %1, %cst {dimension_numbers = #tpu.dot_dimension_numbers<[1], [0], [0], [1], [0, 0, 1, 1], [], []>} : vector<384x4xbf16>, vector<4x100xbf16>, vector<384x100xf32> -> vector<384x100xf32>
    %c0_3 = arith.constant 0 : index
    %c0_4 = arith.constant 0 : index
    %3 = vector.load %arg2[%c0_3, %c0_4] : memref<384x8xbf16, #tpu.memory_space<vmem>>, vector<384x8xbf16>
    %c0_5 = arith.constant 0 : index
    %c0_6 = arith.constant 0 : index
    %4 = vector.load %arg7[%c0_5, %c0_6] : memref<8x100xbf16, #tpu.memory_space<vmem>>, vector<8x100xbf16>
    %cst_7 = arith.constant dense<0.000000e+00> : vector<384x100xf32>
    %5 = tpu.matmul %3, %4, %cst_7 {dimension_numbers = #tpu.dot_dimension_numbers<[1], [0], [0], [1], [0, 0, 1, 1], [], []>} : vector<384x8xbf16>, vector<8x100xbf16>, vector<384x100xf32> -> vector<384x100xf32>
    %6 = arith.addf %2, %5 : vector<384x100xf32>
    %c0_8 = arith.constant 0 : index
    %c0_9 = arith.constant 0 : index
    %7 = vector.load %arg3[%c0_8, %c0_9] : memref<384x8xbf16, #tpu.memory_space<vmem>>, vector<384x8xbf16>
    %c0_10 = arith.constant 0 : index
    %c0_11 = arith.constant 0 : index
    %8 = vector.load %arg8[%c0_10, %c0_11] : memref<8x100xbf16, #tpu.memory_space<vmem>>, vector<8x100xbf16>
    %cst_12 = arith.constant dense<0.000000e+00> : vector<384x100xf32>
    %9 = tpu.matmul %7, %8, %cst_12 {dimension_numbers = #tpu.dot_dimension_numbers<[1], [0], [0], [1], [0, 0, 1, 1], [], []>} : vector<384x8xbf16>, vector<8x100xbf16>, vector<384x100xf32> -> vector<384x100xf32>
    %10 = arith.addf %6, %9 : vector<384x100xf32>
    %c0_13 = arith.constant 0 : index
    %c0_14 = arith.constant 0 : index
    %11 = vector.load %arg4[%c0_13, %c0_14] : memref<384x8xbf16, #tpu.memory_space<vmem>>, vector<384x8xbf16>
    %c0_15 = arith.constant 0 : index
    %c0_16 = arith.constant 0 : index
    %12 = vector.load %arg9[%c0_15, %c0_16] : memref<8x100xbf16, #tpu.memory_space<vmem>>, vector<8x100xbf16>
    %cst_17 = arith.constant dense<0.000000e+00> : vector<384x100xf32>
    %13 = tpu.matmul %11, %12, %cst_17 {dimension_numbers = #tpu.dot_dimension_numbers<[1], [0], [0], [1], [0, 0, 1, 1], [], []>} : vector<384x8xbf16>, vector<8x100xbf16>, vector<384x100xf32> -> vector<384x100xf32>
    %14 = arith.addf %10, %13 : vector<384x100xf32>
    %c0_18 = arith.constant 0 : index
    %c0_19 = arith.constant 0 : index
    %15 = vector.load %arg5[%c0_18, %c0_19] : memref<384x8xbf16, #tpu.memory_space<vmem>>, vector<384x8xbf16>
    %c0_20 = arith.constant 0 : index
    %c0_21 = arith.constant 0 : index
    %16 = vector.load %arg10[%c0_20, %c0_21] : memref<8x100xbf16, #tpu.memory_space<vmem>>, vector<8x100xbf16>
    %cst_22 = arith.constant dense<0.000000e+00> : vector<384x100xf32>
    %17 = tpu.matmul %15, %16, %cst_22 {dimension_numbers = #tpu.dot_dimension_numbers<[1], [0], [0], [1], [0, 0, 1, 1], [], []>} : vector<384x8xbf16>, vector<8x100xbf16>, vector<384x100xf32> -> vector<384x100xf32>
    %18 = arith.addf %14, %17 : vector<384x100xf32>
    %c0_23 = arith.constant 0 : index
    %c0_24 = arith.constant 0 : index
    %19 = vector.load %arg11[%c0_23, %c0_24] : memref<1x100xf32, #tpu.memory_space<vmem>>, vector<1x100xf32>
    %20 = vector.broadcast %19 : vector<1x100xf32> to vector<384x100xf32>
    %21 = arith.addf %18, %20 : vector<384x100xf32>
    %cst_25 = arith.constant 0.000000e+00 : f32
    %22 = vector.broadcast %cst_25 : f32 to vector<384x100xf32>
    %23 = arith.maximumf %21, %22 : vector<384x100xf32>
    %c0_26 = arith.constant 0 : index
    %c0_27 = arith.constant 0 : index
    %24 = vector.load %arg12[%c0_26, %c0_27] : memref<100x100xbf16, #tpu.memory_space<vmem>>, vector<100x100xbf16>
    %25 = arith.truncf %23 : vector<384x100xf32> to vector<384x100xbf16>
    %cst_28 = arith.constant dense<0.000000e+00> : vector<384x100xf32>
    %26 = tpu.matmul %25, %24, %cst_28 {dimension_numbers = #tpu.dot_dimension_numbers<[1], [0], [0], [1], [0, 0, 1, 1], [], []>} : vector<384x100xbf16>, vector<100x100xbf16>, vector<384x100xf32> -> vector<384x100xf32>
    %c0_29 = arith.constant 0 : index
    %c0_30 = arith.constant 0 : index
    %27 = vector.load %arg13[%c0_29, %c0_30] : memref<1x100xf32, #tpu.memory_space<vmem>>, vector<1x100xf32>
    %28 = vector.broadcast %27 : vector<1x100xf32> to vector<384x100xf32>
    %29 = arith.addf %26, %28 : vector<384x100xf32>
    %cst_31 = arith.constant 0.000000e+00 : f32
    %30 = vector.broadcast %cst_31 : f32 to vector<384x100xf32>
    %31 = arith.maximumf %29, %30 : vector<384x100xf32>
    %c0_32 = arith.constant 0 : index
    %c0_33 = arith.constant 0 : index
    %32 = vector.load %arg14[%c0_32, %c0_33] : memref<100x50xbf16, #tpu.memory_space<vmem>>, vector<100x50xbf16>
    %33 = arith.truncf %31 : vector<384x100xf32> to vector<384x100xbf16>
    %cst_34 = arith.constant dense<0.000000e+00> : vector<384x50xf32>
    %34 = tpu.matmul %33, %32, %cst_34 {dimension_numbers = #tpu.dot_dimension_numbers<[1], [0], [0], [1], [0, 0, 1, 1], [], []>} : vector<384x100xbf16>, vector<100x50xbf16>, vector<384x50xf32> -> vector<384x50xf32>
    %c0_35 = arith.constant 0 : index
    %c0_36 = arith.constant 0 : index
    %35 = vector.load %arg15[%c0_35, %c0_36] : memref<1x50xf32, #tpu.memory_space<vmem>>, vector<1x50xf32>
    %36 = vector.broadcast %35 : vector<1x50xf32> to vector<384x50xf32>
    %37 = arith.addf %34, %36 : vector<384x50xf32>
    %cst_37 = arith.constant 0.000000e+00 : f32
    %38 = vector.broadcast %cst_37 : f32 to vector<384x50xf32>
    %39 = arith.maximumf %37, %38 : vector<384x50xf32>
    %c0_38 = arith.constant 0 : index
    %c0_39 = arith.constant 0 : index
    %40 = vector.load %arg16[%c0_38, %c0_39] : memref<50x20xbf16, #tpu.memory_space<vmem>>, vector<50x20xbf16>
    %41 = arith.truncf %39 : vector<384x50xf32> to vector<384x50xbf16>
    %cst_40 = arith.constant dense<0.000000e+00> : vector<384x20xf32>
    %42 = tpu.matmul %41, %40, %cst_40 {dimension_numbers = #tpu.dot_dimension_numbers<[1], [0], [0], [1], [0, 0, 1, 1], [], []>} : vector<384x50xbf16>, vector<50x20xbf16>, vector<384x20xf32> -> vector<384x20xf32>
    %c0_41 = arith.constant 0 : index
    %c0_42 = arith.constant 0 : index
    %43 = vector.load %arg17[%c0_41, %c0_42] : memref<1x20xf32, #tpu.memory_space<vmem>>, vector<1x20xf32>
    %44 = vector.broadcast %43 : vector<1x20xf32> to vector<384x20xf32>
    %45 = arith.addf %42, %44 : vector<384x20xf32>
    %cst_43 = arith.constant 0.000000e+00 : f32
    %46 = vector.broadcast %cst_43 : f32 to vector<384x20xf32>
    %47 = arith.maximumf %45, %46 : vector<384x20xf32>
    %c0_44 = arith.constant 0 : index
    %c0_45 = arith.constant 0 : index
    %48 = vector.load %arg18[%c0_44, %c0_45] : memref<20x10xbf16, #tpu.memory_space<vmem>>, vector<20x10xbf16>
    %49 = arith.truncf %47 : vector<384x20xf32> to vector<384x20xbf16>
    %cst_46 = arith.constant dense<0.000000e+00> : vector<384x10xf32>
    %50 = tpu.matmul %49, %48, %cst_46 {dimension_numbers = #tpu.dot_dimension_numbers<[1], [0], [0], [1], [0, 0, 1, 1], [], []>} : vector<384x20xbf16>, vector<20x10xbf16>, vector<384x10xf32> -> vector<384x10xf32>
    %c0_47 = arith.constant 0 : index
    %c0_48 = arith.constant 0 : index
    %51 = vector.load %arg19[%c0_47, %c0_48] : memref<1x10xf32, #tpu.memory_space<vmem>>, vector<1x10xf32>
    %52 = vector.broadcast %51 : vector<1x10xf32> to vector<384x10xf32>
    %53 = arith.addf %50, %52 : vector<384x10xf32>
    %cst_49 = arith.constant 0.000000e+00 : f32
    %54 = vector.broadcast %cst_49 : f32 to vector<384x10xf32>
    %55 = arith.maximumf %53, %54 : vector<384x10xf32>
    %c0_50 = arith.constant 0 : index
    %c0_51 = arith.constant 0 : index
    %56 = vector.load %arg20[%c0_50, %c0_51] : memref<1x10xbf16, #tpu.memory_space<vmem>>, vector<1x10xbf16>
    %57 = arith.truncf %55 : vector<384x10xf32> to vector<384x10xbf16>
    %cst_52 = arith.constant dense<0.000000e+00> : vector<1x384xf32>
    %58 = tpu.matmul %56, %57, %cst_52 {dimension_numbers = #tpu.dot_dimension_numbers<[1], [1], [0], [0], [0, 0, 1, 0], [], []>} : vector<1x10xbf16>, vector<384x10xbf16>, vector<1x384xf32> -> vector<1x384xf32>
    %c0_53 = arith.constant 0 : index
    %c0_54 = arith.constant 0 : index
    %59 = vector.load %arg21[%c0_53, %c0_54] : memref<1x1xf32, #tpu.memory_space<vmem>>, vector<1x1xf32>
    %60 = vector.broadcast %59 : vector<1x1xf32> to vector<1x384xf32>
    %61 = arith.addf %58, %60 : vector<1x384xf32>
    %62 = arith.negf %61 : vector<1x384xf32>
    %63 = math.exp %62 : vector<1x384xf32>
    %cst_55 = arith.constant 1.000000e+00 : f32
    %64 = vector.broadcast %cst_55 : f32 to vector<1x384xf32>
    %65 = arith.addf %64, %63 : vector<1x384xf32>
    %66 = arith.divf %64, %65 : vector<1x384xf32>
    %c0_56 = arith.constant 0 : index
    %c0_57 = arith.constant 0 : index
    %67 = vector.load %arg22[%c0_56, %c0_57] : memref<1x384xf32, #tpu.memory_space<vmem>>, vector<1x384xf32>
    tpu.vector_store %arg22[%c0_56, %c0_57], %66 {strides = array<i32>} : memref<1x384xf32, #tpu.memory_space<vmem>>, vector<1x384xf32>,
    return
  }
  func.func @transform_0(%arg0: i32) -> (i32, i32) {
    %c0_i32 = arith.constant 0 : i32
    %c0_i32_0 = arith.constant 0 : i32
    return %arg0, %c0_i32 : i32, i32
  }
  func.func @transform_1(%arg0: i32) -> (i32, i32) {
    %c0_i32 = arith.constant 0 : i32
    %c0_i32_0 = arith.constant 0 : i32
    return %arg0, %c0_i32 : i32, i32
  }
  func.func @transform_2(%arg0: i32) -> (i32, i32) {
    %c0_i32 = arith.constant 0 : i32
    %c0_i32_0 = arith.constant 0 : i32
    return %arg0, %c0_i32 : i32, i32
  }
  func.func @transform_3(%arg0: i32) -> (i32, i32) {
    %c0_i32 = arith.constant 0 : i32
    %c0_i32_0 = arith.constant 0 : i32
    return %arg0, %c0_i32 : i32, i32
  }
  func.func @transform_4(%arg0: i32) -> (i32, i32) {
    %c0_i32 = arith.constant 0 : i32
    %c0_i32_0 = arith.constant 0 : i32
    return %arg0, %c0_i32 : i32, i32
  }
  func.func @transform_5(%arg0: i32) -> (i32, i32) {
    %c0_i32 = arith.constant 0 : i32
    %c0_i32_0 = arith.constant 0 : i32
    %c0_i32_1 = arith.constant 0 : i32
    return %c0_i32, %c0_i32_0 : i32, i32
  }
  func.func @transform_6(%arg0: i32) -> (i32, i32) {
    %c0_i32 = arith.constant 0 : i32
    %c0_i32_0 = arith.constant 0 : i32
    %c0_i32_1 = arith.constant 0 : i32
    return %c0_i32, %c0_i32_0 : i32, i32
  }
  func.func @transform_7(%arg0: i32) -> (i32, i32) {
    %c0_i32 = arith.constant 0 : i32
    %c0_i32_0 = arith.constant 0 : i32
    %c0_i32_1 = arith.constant 0 : i32
    return %c0_i32, %c0_i32_0 : i32, i32
  }
  func.func @transform_8(%arg0: i32) -> (i32, i32) {
    %c0_i32 = arith.constant 0 : i32
    %c0_i32_0 = arith.constant 0 : i32
    %c0_i32_1 = arith.constant 0 : i32
    return %c0_i32, %c0_i32_0 : i32, i32
  }
  func.func @transform_9(%arg0: i32) -> (i32, i32) {
    %c0_i32 = arith.constant 0 : i32
    %c0_i32_0 = arith.constant 0 : i32
    %c0_i32_1 = arith.constant 0 : i32
    return %c0_i32, %c0_i32_0 : i32, i32
  }
  func.func @transform_10(%arg0: i32) -> (i32, i32) {
    %c0_i32 = arith.constant 0 : i32
    %c0_i32_0 = arith.constant 0 : i32
    %c0_i32_1 = arith.constant 0 : i32
    return %c0_i32, %c0_i32_0 : i32, i32
  }
  func.func @transform_11(%arg0: i32) -> (i32, i32) {
    %c0_i32 = arith.constant 0 : i32
    %c0_i32_0 = arith.constant 0 : i32
    %c0_i32_1 = arith.constant 0 : i32
    return %c0_i32, %c0_i32_0 : i32, i32
  }
  func.func @transform_12(%arg0: i32) -> (i32, i32) {
    %c0_i32 = arith.constant 0 : i32
    %c0_i32_0 = arith.constant 0 : i32
    %c0_i32_1 = arith.constant 0 : i32
    return %c0_i32, %c0_i32_0 : i32, i32
  }
  func.func @transform_13(%arg0: i32) -> (i32, i32) {
    %c0_i32 = arith.constant 0 : i32
    %c0_i32_0 = arith.constant 0 : i32
    %c0_i32_1 = arith.constant 0 : i32
    return %c0_i32, %c0_i32_0 : i32, i32
  }
  func.func @transform_14(%arg0: i32) -> (i32, i32) {
    %c0_i32 = arith.constant 0 : i32
    %c0_i32_0 = arith.constant 0 : i32
    %c0_i32_1 = arith.constant 0 : i32
    return %c0_i32, %c0_i32_0 : i32, i32
  }
  func.func @transform_15(%arg0: i32) -> (i32, i32) {
    %c0_i32 = arith.constant 0 : i32
    %c0_i32_0 = arith.constant 0 : i32
    %c0_i32_1 = arith.constant 0 : i32
    return %c0_i32, %c0_i32_0 : i32, i32
  }
  func.func @transform_16(%arg0: i32) -> (i32, i32) {
    %c0_i32 = arith.constant 0 : i32
    %c0_i32_0 = arith.constant 0 : i32
    %c0_i32_1 = arith.constant 0 : i32
    return %c0_i32, %c0_i32_0 : i32, i32
  }
  func.func @transform_17(%arg0: i32) -> (i32, i32) {
    %c0_i32 = arith.constant 0 : i32
    %c0_i32_0 = arith.constant 0 : i32
    %c0_i32_1 = arith.constant 0 : i32
    return %c0_i32, %c0_i32_0 : i32, i32
  }
  func.func @transform_18(%arg0: i32) -> (i32, i32) {
    %c0_i32 = arith.constant 0 : i32
    %c0_i32_0 = arith.constant 0 : i32
    %c0_i32_1 = arith.constant 0 : i32
    return %c0_i32, %c0_i32_0 : i32, i32
  }
  func.func @transform_19(%arg0: i32) -> (i32, i32) {
    %c0_i32 = arith.constant 0 : i32
    %c0_i32_0 = arith.constant 0 : i32
    %c0_i32_1 = arith.constant 0 : i32
    return %c0_i32, %c0_i32_0 : i32, i32
  }
  func.func @transform_20(%arg0: i32) -> (i32, i32) {
    %c0_i32 = arith.constant 0 : i32
    %c0_i32_0 = arith.constant 0 : i32
    %c0_i32_1 = arith.constant 0 : i32
    return %c0_i32, %c0_i32_0 : i32, i32
  }
  func.func @transform_21(%arg0: i32) -> (i32, i32) {
    %c0_i32 = arith.constant 0 : i32
    %c0_i32_0 = arith.constant 0 : i32
    return %c0_i32, %arg0 : i32, i32
  }
}

</mosaic_0001>

<llo_original>
// kernel: tpu_custom_call.1
$region0: #{tpu_custom_call.1}
  #allocation0 [shape = 'u32[]', space=smem, size = 0x4, offset = 0x4, fixed_abs, tag = 'smem constant byte address 0x4 - core index']
  #allocation1 [shape = 'u32[144,128]{1,0:T(1,128)}', space=vmem, size = 0x12000, scoped, tag = 'internal scratch']
  #allocation2 [shape = 'f32[1,1]{1,0:T(1,128)S(1)}', space=vmem, size = 0x200, scoped, tag = 'scoped memory for tpu_custom_call.1']
  %s0 = inlined_call_operand.vmem [shape: bf16[384,4], index: 0, kind: input, shape index: {}]
  %s1 = inlined_call_operand.vmem [shape: bf16[384,8], index: 1, kind: input, shape index: {}]
  %s2 = inlined_call_operand.vmem [shape: bf16[384,8], index: 2, kind: input, shape index: {}]
  %s3 = inlined_call_operand.vmem [shape: bf16[384,8], index: 3, kind: input, shape index: {}]
  %s4 = inlined_call_operand.vmem [shape: bf16[384,8], index: 4, kind: input, shape index: {}]
  %s5 = inlined_call_operand.vmem [shape: bf16[4,100], index: 5, kind: input, shape index: {}]
  %s6 = inlined_call_operand.vmem [shape: bf16[8,100], index: 6, kind: input, shape index: {}]
  %s7 = inlined_call_operand.vmem [shape: bf16[8,100], index: 7, kind: input, shape index: {}]
  %s8 = inlined_call_operand.vmem [shape: bf16[8,100], index: 8, kind: input, shape index: {}]
  %s9 = inlined_call_operand.vmem [shape: bf16[8,100], index: 9, kind: input, shape index: {}]
  %s10 = inlined_call_operand.vmem [shape: f32[1,100], index: 10, kind: input, shape index: {}]
  %s11 = inlined_call_operand.vmem [shape: bf16[100,100], index: 11, kind: input, shape index: {}]
  %s12 = inlined_call_operand.vmem [shape: f32[1,100], index: 12, kind: input, shape index: {}]
  %s13 = inlined_call_operand.vmem [shape: bf16[100,50], index: 13, kind: input, shape index: {}]
  %s14 = inlined_call_operand.vmem [shape: f32[1,50], index: 14, kind: input, shape index: {}]
  %s15 = inlined_call_operand.vmem [shape: bf16[50,20], index: 15, kind: input, shape index: {}]
  %s16 = inlined_call_operand.vmem [shape: f32[1,20], index: 16, kind: input, shape index: {}]
  %s17 = inlined_call_operand.vmem [shape: bf16[20,10], index: 17, kind: input, shape index: {}]
  %s18 = inlined_call_operand.vmem [shape: f32[1,10], index: 18, kind: input, shape index: {}]
  %s19 = inlined_call_operand.vmem [shape: bf16[1,10], index: 19, kind: input, shape index: {}]
  %s20 = inlined_call_operand.<no memory space> [shape: f32[1,1], index: 20, kind: input, shape index: {}]
  %s21 = inlined_call_operand.hbm [shape: f32[1,384], index: 21, kind: output, shape index: {}]
  %s22 = sld [smem:[#allocation0]]
  $region94: #{tpu_custom_call.1} parent=0
    _
  %s24 = ssub.s32 1, %s22
  %s25 = scalar_select 0, %s24, %s22
  %v26 = vstv %s20
  %27 = vst [vmem:[#allocation2] sm:$0x1] %v26
  $region1: #{tpu_custom_call.1} parent=0
    #allocation3 [shape = 'u8[1536]{0}', space=vmem, size = 0x800, scoped, tag = 'output window, operand 0, single buffered']
    #allocation4 [shape = 's32[1]{0}', space=sflag, size = 0x4, scoped, tag = 'scoped memory for tpu_custom_call.1']
    %28 = vsyncpa [#allocation4], 0
    // Predicated region
    $region2: #{tpu_custom_call.1} parent=1 // pred_check
      _
    $region3: #{tpu_custom_call.1} parent=1 // pred_check_branch
      %30 = sbr.rel (0) target = $region5
    $region4: #{tpu_custom_call.1} parent=1 // pred_region
      _
    $region5: #{tpu_custom_call.1} parent=1 // pred_fallthru
      _
    // Predicated region
    $region6: #{tpu_custom_call.1} parent=1 // pred_check
      _
    $region7: #{tpu_custom_call.1} parent=1 // pred_check_branch
      %32 = sbr.rel (0) target = $region9
    $region8: #{tpu_custom_call.1} parent=1 // pred_region
      _
    $region9: #{tpu_custom_call.1} parent=1 // pred_fallthru
      _
    // Predicated region
    $region10: #{tpu_custom_call.1} parent=1 // pred_check
      _
    $region11: #{tpu_custom_call.1} parent=1 // pred_check_branch
      %34 = sbr.rel (0) target = $region13
    $region12: #{tpu_custom_call.1} parent=1 // pred_region
      _
    $region13: #{tpu_custom_call.1} parent=1 // pred_fallthru
      _
    // Predicated region
    $region14: #{tpu_custom_call.1} parent=1 // pred_check
      _
    $region15: #{tpu_custom_call.1} parent=1 // pred_check_branch
      %36 = sbr.rel (0) target = $region17
    $region16: #{tpu_custom_call.1} parent=1 // pred_region
      _
    $region17: #{tpu_custom_call.1} parent=1 // pred_fallthru
      _
    // Predicated region
    $region18: #{tpu_custom_call.1} parent=1 // pred_check
      _
    $region19: #{tpu_custom_call.1} parent=1 // pred_check_branch
      %38 = sbr.rel (0) target = $region21
    $region20: #{tpu_custom_call.1} parent=1 // pred_region
      _
    $region21: #{tpu_custom_call.1} parent=1 // pred_fallthru
      _
    // Predicated region
    $region22: #{tpu_custom_call.1} parent=1 // pred_check
      _
    $region23: #{tpu_custom_call.1} parent=1 // pred_check_branch
      %40 = sbr.rel (0) target = $region25
    $region24: #{tpu_custom_call.1} parent=1 // pred_region
      _
    $region25: #{tpu_custom_call.1} parent=1 // pred_fallthru
      _
    // Predicated region
    $region26: #{tpu_custom_call.1} parent=1 // pred_check
      _
    $region27: #{tpu_custom_call.1} parent=1 // pred_check_branch
      %42 = sbr.rel (0) target = $region29
    $region28: #{tpu_custom_call.1} parent=1 // pred_region
      _
    $region29: #{tpu_custom_call.1} parent=1 // pred_fallthru
      _
    // Predicated region
    $region30: #{tpu_custom_call.1} parent=1 // pred_check
      _
    $region31: #{tpu_custom_call.1} parent=1 // pred_check_branch
      %44 = sbr.rel (0) target = $region33
    $region32: #{tpu_custom_call.1} parent=1 // pred_region
      _
    $region33: #{tpu_custom_call.1} parent=1 // pred_fallthru
      _
    // Predicated region
    $region34: #{tpu_custom_call.1} parent=1 // pred_check
      _
    $region35: #{tpu_custom_call.1} parent=1 // pred_check_branch
      %46 = sbr.rel (0) target = $region37
    $region36: #{tpu_custom_call.1} parent=1 // pred_region
      _
    $region37: #{tpu_custom_call.1} parent=1 // pred_fallthru
      _
    // Predicated region
    $region38: #{tpu_custom_call.1} parent=1 // pred_check
      _
    $region39: #{tpu_custom_call.1} parent=1 // pred_check_branch
      %48 = sbr.rel (0) target = $region41
    $region40: #{tpu_custom_call.1} parent=1 // pred_region
      _
    $region41: #{tpu_custom_call.1} parent=1 // pred_fallthru
      _
    // Predicated region
    $region42: #{tpu_custom_call.1} parent=1 // pred_check
      _
    $region43: #{tpu_custom_call.1} parent=1 // pred_check_branch
      %50 = sbr.rel (0) target = $region45
    $region44: #{tpu_custom_call.1} parent=1 // pred_region
      _
    $region45: #{tpu_custom_call.1} parent=1 // pred_fallthru
      _
    // Predicated region
    $region46: #{tpu_custom_call.1} parent=1 // pred_check
      _
    $region47: #{tpu_custom_call.1} parent=1 // pred_check_branch
      %52 = sbr.rel (0) target = $region49
    $region48: #{tpu_custom_call.1} parent=1 // pred_region
      _
    $region49: #{tpu_custom_call.1} parent=1 // pred_fallthru
      _
    // Predicated region
    $region50: #{tpu_custom_call.1} parent=1 // pred_check
      _
    $region51: #{tpu_custom_call.1} parent=1 // pred_check_branch
      %54 = sbr.rel (0) target = $region53
    $region52: #{tpu_custom_call.1} parent=1 // pred_region
      _
    $region53: #{tpu_custom_call.1} parent=1 // pred_fallthru
      _
    // Predicated region
    $region54: #{tpu_custom_call.1} parent=1 // pred_check
      _
    $region55: #{tpu_custom_call.1} parent=1 // pred_check_branch
      %56 = sbr.rel (0) target = $region57
    $region56: #{tpu_custom_call.1} parent=1 // pred_region
      _
    $region57: #{tpu_custom_call.1} parent=1 // pred_fallthru
      _
    // Predicated region
    $region58: #{tpu_custom_call.1} parent=1 // pred_check
      _
    $region59: #{tpu_custom_call.1} parent=1 // pred_check_branch
      %58 = sbr.rel (0) target = $region61
    $region60: #{tpu_custom_call.1} parent=1 // pred_region
      _
    $region61: #{tpu_custom_call.1} parent=1 // pred_fallthru
      _
    // Predicated region
    $region62: #{tpu_custom_call.1} parent=1 // pred_check
      _
    $region63: #{tpu_custom_call.1} parent=1 // pred_check_branch
      %60 = sbr.rel (0) target = $region65
    $region64: #{tpu_custom_call.1} parent=1 // pred_region
      _
    $region65: #{tpu_custom_call.1} parent=1 // pred_fallthru
      _
    // Predicated region
    $region66: #{tpu_custom_call.1} parent=1 // pred_check
      _
    $region67: #{tpu_custom_call.1} parent=1 // pred_check_branch
      %62 = sbr.rel (0) target = $region69
    $region68: #{tpu_custom_call.1} parent=1 // pred_region
      _
    $region69: #{tpu_custom_call.1} parent=1 // pred_fallthru
      _
    // Predicated region
    $region70: #{tpu_custom_call.1} parent=1 // pred_check
      _
    $region71: #{tpu_custom_call.1} parent=1 // pred_check_branch
      %64 = sbr.rel (0) target = $region73
    $region72: #{tpu_custom_call.1} parent=1 // pred_region
      _
    $region73: #{tpu_custom_call.1} parent=1 // pred_fallthru
      _
    // Predicated region
    $region74: #{tpu_custom_call.1} parent=1 // pred_check
      _
    $region75: #{tpu_custom_call.1} parent=1 // pred_check_branch
      %66 = sbr.rel (0) target = $region77
    $region76: #{tpu_custom_call.1} parent=1 // pred_region
      _
    $region77: #{tpu_custom_call.1} parent=1 // pred_fallthru
      _
    // Predicated region
    $region78: #{tpu_custom_call.1} parent=1 // pred_check
      _
    $region79: #{tpu_custom_call.1} parent=1 // pred_check_branch
      %68 = sbr.rel (0) target = $region81
    $region80: #{tpu_custom_call.1} parent=1 // pred_region
      _
    $region81: #{tpu_custom_call.1} parent=1 // pred_fallthru
      _
    // Predicated region
    $region82: #{tpu_custom_call.1} parent=1 // pred_check
      _
    $region83: #{tpu_custom_call.1} parent=1 // pred_check_branch
      %70 = sbr.rel (0) target = $region85
    $region84: #{tpu_custom_call.1} parent=1 // pred_region
      _
    $region85: #{tpu_custom_call.1} parent=1 // pred_fallthru
      _
    %v72 = vld [vmem:[%s0] sm:$0xf]
    %v73 = vld [vmem:[%s0 + $0x4] sm:$0xf]
    %v74 = vld [vmem:[%s0 + $0x8] sm:$0xf]
    %v75 = vld [vmem:[%s0 + $0xc] sm:$0xf]
    %v76 = vld [vmem:[%s0 + $0x10] sm:$0xf]
    %v77 = vld [vmem:[%s0 + $0x14] sm:$0xf]
    %v78 = vld [vmem:[%s0 + $0x18] sm:$0xf]
    %v79 = vld [vmem:[%s0 + $0x1c] sm:$0xf]
    %v80 = vld [vmem:[%s0 + $0x20] sm:$0xf]
    %v81 = vld [vmem:[%s0 + $0x24] sm:$0xf]
    %v82 = vld [vmem:[%s0 + $0x28] sm:$0xf]
    %v83 = vld [vmem:[%s0 + $0x2c] sm:$0xf]
    %v84 = vld [vmem:[%s0 + $0x30] sm:$0xf]
    %v85 = vld [vmem:[%s0 + $0x34] sm:$0xf]
    %v86 = vld [vmem:[%s0 + $0x38] sm:$0xf]
    %v87 = vld [vmem:[%s0 + $0x3c] sm:$0xf]
    %v88 = vld [vmem:[%s0 + $0x40] sm:$0xf]
    %v89 = vld [vmem:[%s0 + $0x44] sm:$0xf]
    %v90 = vld [vmem:[%s0 + $0x48] sm:$0xf]
    %v91 = vld [vmem:[%s0 + $0x4c] sm:$0xf]
    %v92 = vld [vmem:[%s0 + $0x50] sm:$0xf]
    %v93 = vld [vmem:[%s0 + $0x54] sm:$0xf]
    %v94 = vld [vmem:[%s0 + $0x58] sm:$0xf]
    %v95 = vld [vmem:[%s0 + $0x5c] sm:$0xf]
    %v96 = vld [vmem:[%s0 + $0x60] sm:$0xf]
    %v97 = vld [vmem:[%s0 + $0x64] sm:$0xf]
    %v98 = vld [vmem:[%s0 + $0x68] sm:$0xf]
    %v99 = vld [vmem:[%s0 + $0x6c] sm:$0xf]
    %v100 = vld [vmem:[%s0 + $0x70] sm:$0xf]
    %v101 = vld [vmem:[%s0 + $0x74] sm:$0xf]
    %v102 = vld [vmem:[%s0 + $0x78] sm:$0xf]
    %v103 = vld [vmem:[%s0 + $0x7c] sm:$0xf]
    %v104 = vld [vmem:[%s0 + $0x80] sm:$0xf]
    %v105 = vld [vmem:[%s0 + $0x84] sm:$0xf]
    %v106 = vld [vmem:[%s0 + $0x88] sm:$0xf]
    %v107 = vld [vmem:[%s0 + $0x8c] sm:$0xf]
    %v108 = vld [vmem:[%s0 + $0x90] sm:$0xf]
    %v109 = vld [vmem:[%s0 + $0x94] sm:$0xf]
    %v110 = vld [vmem:[%s0 + $0x98] sm:$0xf]
    %v111 = vld [vmem:[%s0 + $0x9c] sm:$0xf]
    %v112 = vld [vmem:[%s0 + $0xa0] sm:$0xf]
    %v113 = vld [vmem:[%s0 + $0xa4] sm:$0xf]
    %v114 = vld [vmem:[%s0 + $0xa8] sm:$0xf]
    %v115 = vld [vmem:[%s0 + $0xac] sm:$0xf]
    %v116 = vld [vmem:[%s0 + $0xb0] sm:$0xf]
    %v117 = vld [vmem:[%s0 + $0xb4] sm:$0xf]
    %v118 = vld [vmem:[%s0 + $0xb8] sm:$0xf]
    %v119 = vld [vmem:[%s0 + $0xbc] sm:$0xf]
    %v120 = vld [vmem:[%s5] sm:$0x3]
    %v121 = vld [vmem:[%s1] sm:$0xf]
    %v122 = vld [vmem:[%s1 + $0x4] sm:$0xf]
    %v123 = vld [vmem:[%s1 + $0x8] sm:$0xf]
    %v124 = vld [vmem:[%s1 + $0xc] sm:$0xf]
    %v125 = vld [vmem:[%s1 + $0x10] sm:$0xf]
    %v126 = vld [vmem:[%s1 + $0x14] sm:$0xf]
    %v127 = vld [vmem:[%s1 + $0x18] sm:$0xf]
    %v128 = vld [vmem:[%s1 + $0x1c] sm:$0xf]
    %v129 = vld [vmem:[%s1 + $0x20] sm:$0xf]
    %v130 = vld [vmem:[%s1 + $0x24] sm:$0xf]
    %v131 = vld [vmem:[%s1 + $0x28] sm:$0xf]
    %v132 = vld [vmem:[%s1 + $0x2c] sm:$0xf]
    %v133 = vld [vmem:[%s1 + $0x30] sm:$0xf]
    %v134 = vld [vmem:[%s1 + $0x34] sm:$0xf]
    %v135 = vld [vmem:[%s1 + $0x38] sm:$0xf]
    %v136 = vld [vmem:[%s1 + $0x3c] sm:$0xf]
    %v137 = vld [vmem:[%s1 + $0x40] sm:$0xf]
    %v138 = vld [vmem:[%s1 + $0x44] sm:$0xf]
    %v139 = vld [vmem:[%s1 + $0x48] sm:$0xf]
    %v140 = vld [vmem:[%s1 + $0x4c] sm:$0xf]
    %v141 = vld [vmem:[%s1 + $0x50] sm:$0xf]
    %v142 = vld [vmem:[%s1 + $0x54] sm:$0xf]
    %v143 = vld [vmem:[%s1 + $0x58] sm:$0xf]
    %v144 = vld [vmem:[%s1 + $0x5c] sm:$0xf]
    %v145 = vld [vmem:[%s1 + $0x60] sm:$0xf]
    %v146 = vld [vmem:[%s1 + $0x64] sm:$0xf]
    %v147 = vld [vmem:[%s1 + $0x68] sm:$0xf]
    %v148 = vld [vmem:[%s1 + $0x6c] sm:$0xf]
    %v149 = vld [vmem:[%s1 + $0x70] sm:$0xf]
    %v150 = vld [vmem:[%s1 + $0x74] sm:$0xf]
    %v151 = vld [vmem:[%s1 + $0x78] sm:$0xf]
    %v152 = vld [vmem:[%s1 + $0x7c] sm:$0xf]
    %v153 = vld [vmem:[%s1 + $0x80] sm:$0xf]
    %v154 = vld [vmem:[%s1 + $0x84] sm:$0xf]
    %v155 = vld [vmem:[%s1 + $0x88] sm:$0xf]
    %v156 = vld [vmem:[%s1 + $0x8c] sm:$0xf]
    %v157 = vld [vmem:[%s1 + $0x90] sm:$0xf]
    %v158 = vld [vmem:[%s1 + $0x94] sm:$0xf]
    %v159 = vld [vmem:[%s1 + $0x98] sm:$0xf]
    %v160 = vld [vmem:[%s1 + $0x9c] sm:$0xf]
    %v161 = vld [vmem:[%s1 + $0xa0] sm:$0xf]
    %v162 = vld [vmem:[%s1 + $0xa4] sm:$0xf]
    %v163 = vld [vmem:[%s1 + $0xa8] sm:$0xf]
    %v164 = vld [vmem:[%s1 + $0xac] sm:$0xf]
    %v165 = vld [vmem:[%s1 + $0xb0] sm:$0xf]
    %v166 = vld [vmem:[%s1 + $0xb4] sm:$0xf]
    %v167 = vld [vmem:[%s1 + $0xb8] sm:$0xf]
    %v168 = vld [vmem:[%s1 + $0xbc] sm:$0xf]
    %v169 = vld [vmem:[%s6] sm:$0xf]
    %v218 = vunpack.c.l.b16 %v121
    %v219 = vunpack.c.l.b16 %v122
    %v220 = vunpack.c.l.b16 %v123
    %v221 = vunpack.c.l.b16 %v124
    %v222 = vunpack.c.l.b16 %v125
    %v223 = vunpack.c.l.b16 %v126
    %v224 = vunpack.c.l.b16 %v127
    %v225 = vunpack.c.l.b16 %v128
    %v226 = vunpack.c.l.b16 %v129
    %v227 = vunpack.c.l.b16 %v130
    %v228 = vunpack.c.l.b16 %v131
    %v229 = vunpack.c.l.b16 %v132
    %v230 = vunpack.c.l.b16 %v133
    %v231 = vunpack.c.l.b16 %v134
    %v232 = vunpack.c.l.b16 %v135
    %v233 = vunpack.c.l.b16 %v136
    %v234 = vunpack.c.l.b16 %v137
    %v235 = vunpack.c.l.b16 %v138
    %v236 = vunpack.c.l.b16 %v139
    %v237 = vunpack.c.l.b16 %v140
    %v238 = vunpack.c.l.b16 %v141
    %v239 = vunpack.c.l.b16 %v142
    %v240 = vunpack.c.l.b16 %v143
    %v241 = vunpack.c.l.b16 %v144
    %v242 = vunpack.c.l.b16 %v145
    %v243 = vunpack.c.l.b16 %v146
    %v244 = vunpack.c.l.b16 %v147
    %v245 = vunpack.c.l.b16 %v148
    %v246 = vunpack.c.l.b16 %v149
    %v247 = vunpack.c.l.b16 %v150
    %v248 = vunpack.c.l.b16 %v151
    %v249 = vunpack.c.l.b16 %v152
    %v250 = vunpack.c.l.b16 %v153
    %v251 = vunpack.c.l.b16 %v154
    %v252 = vunpack.c.l.b16 %v155
    %v253 = vunpack.c.l.b16 %v156
    %v254 = vunpack.c.l.b16 %v157
    %v255 = vunpack.c.l.b16 %v158
    %v256 = vunpack.c.l.b16 %v159
    %v257 = vunpack.c.l.b16 %v160
    %v258 = vunpack.c.l.b16 %v161
    %v259 = vunpack.c.l.b16 %v162
    %v260 = vunpack.c.l.b16 %v163
    %v261 = vunpack.c.l.b16 %v164
    %v262 = vunpack.c.l.b16 %v165
    %v263 = vunpack.c.l.b16 %v166
    %v264 = vunpack.c.l.b16 %v167
    %v265 = vunpack.c.l.b16 %v168
    %v266 = vpack.c.b16 %v219, %v218
    %v267 = vpack.c.b16 %v221, %v220
    %v268 = vpack.c.b16 %v223, %v222
    %v269 = vpack.c.b16 %v225, %v224
    %v270 = vpack.c.b16 %v227, %v226
    %v271 = vpack.c.b16 %v229, %v228
    %v272 = vpack.c.b16 %v231, %v230
    %v273 = vpack.c.b16 %v233, %v232
    %v274 = vpack.c.b16 %v235, %v234
    %v275 = vpack.c.b16 %v237, %v236
    %v276 = vpack.c.b16 %v239, %v238
    %v277 = vpack.c.b16 %v241, %v240
    %v278 = vpack.c.b16 %v243, %v242
    %v279 = vpack.c.b16 %v245, %v244
    %v280 = vpack.c.b16 %v247, %v246
    %v281 = vpack.c.b16 %v249, %v248
    %v282 = vpack.c.b16 %v251, %v250
    %v283 = vpack.c.b16 %v253, %v252
    %v284 = vpack.c.b16 %v255, %v254
    %v285 = vpack.c.b16 %v257, %v256
    %v286 = vpack.c.b16 %v259, %v258
    %v287 = vpack.c.b16 %v261, %v260
    %v288 = vpack.c.b16 %v263, %v262
    %v289 = vpack.c.b16 %v265, %v264
    %vm290 = vcmask 64512
    %v292 = vsel %vm290, %v266, 0
    %v295 = vsel %vm290, %v267, 0
    %v298 = vsel %vm290, %v268, 0
    %v301 = vsel %vm290, %v269, 0
    %v304 = vsel %vm290, %v270, 0
    %v307 = vsel %vm290, %v271, 0
    %v310 = vsel %vm290, %v272, 0
    %v313 = vsel %vm290, %v273, 0
    %v316 = vsel %vm290, %v274, 0
    %v319 = vsel %vm290, %v275, 0
    %v322 = vsel %vm290, %v276, 0
    %v325 = vsel %vm290, %v277, 0
    %v328 = vsel %vm290, %v278, 0
    %v331 = vsel %vm290, %v279, 0
    %v334 = vsel %vm290, %v280, 0
    %v337 = vsel %vm290, %v281, 0
    %v340 = vsel %vm290, %v282, 0
    %v343 = vsel %vm290, %v283, 0
    %v346 = vsel %vm290, %v284, 0
    %v349 = vsel %vm290, %v285, 0
    %v352 = vsel %vm290, %v286, 0
    %v355 = vsel %vm290, %v287, 0
    %v358 = vsel %vm290, %v288, 0
    %v361 = vsel %vm290, %v289, 0
    %vm363 = vcmask 1043456
    %v365 = vsel %vm363, %v169, 0
    %367 = vmatprep.subr.bf16.mxu0 0
    %368 = vmatpush1.bf16.msra.mxu0 0
    %369 = vmatprep.subr.bf16.mxu0 0
    %370 = vmatpush1.bf16.msra.mxu0 0
    %371 = vmatprep.subr.bf16.mxu0 0
    %372 = vmatpush1.bf16.msra.mxu0 0
    %373 = vmatprep.subr.bf16.mxu0 0
    %374 = vmatpush1.bf16.msra.mxu0 0
    %375 = vmatprep.subr.bf16.mxu0 0
    %376 = vmatpush1.bf16.msra.mxu0 0
    %377 = vmatprep.subr.bf16.mxu0 0
    %378 = vmatpush1.bf16.msra.mxu0 0
    %379 = vmatprep.subr.bf16.mxu0 0
    %380 = vmatpush1.bf16.msra.mxu0 0
    %381 = vmatprep.subr.bf16.mxu0 0
    %382 = vmatpush1.bf16.msra.mxu0 %v365
    %383 = vmatprep.subr.bf16.mxu0 0
    %384 = vmatpush2.bf16.msra.mxu0 0
    %385 = vmatprep.subr.bf16.mxu0 0
    %386 = vmatpush2.bf16.msra.mxu0 0
    %387 = vmatprep.subr.bf16.mxu0 0
    %388 = vmatpush2.bf16.msra.mxu0 0
    %389 = vmatprep.subr.bf16.mxu0 0
    %390 = vmatpush2.bf16.msra.mxu0 0
    %391 = vmatprep.subr.bf16.mxu0 0
    %392 = vmatpush2.bf16.msra.mxu0 0
    %393 = vmatprep.subr.bf16.mxu0 0
    %394 = vmatpush2.bf16.msra.mxu0 0
    %395 = vmatprep.subr.bf16.mxu0 0
    %396 = vmatpush2.bf16.msra.mxu0 0
    %397 = vmatprep.subr.bf16.mxu0 0
    %398 = vmatpush2.bf16.msra.mxu0 0
    %399 = vmatprep.mubr.bf16.mxu0 0
    %400 = vmatmul.mubr.bf16.gmra.mxu0 %v292
    %v401 = vpop.f32.mrf.mxu0
    %v402 = vadd.f32 0.0, %v401
    %v403 = vpop.f32.mrf.mxu0
    %v404 = vpop.f32.mrf.mxu0
    %v405 = vadd.f32 0.0, %v404
    %v406 = vpop.f32.mrf.mxu0
    %407 = vmatprep.mubr.bf16.mxu0 0
    %408 = vmatmul.mubr.bf16.gmra.mxu0 %v295
    %v409 = vpop.f32.mrf.mxu0
    %v410 = vadd.f32 0.0, %v409
    %v411 = vpop.f32.mrf.mxu0
    %v412 = vpop.f32.mrf.mxu0
    %v413 = vadd.f32 0.0, %v412
    %v414 = vpop.f32.mrf.mxu0
    %415 = vmatprep.mubr.bf16.mxu0 0
    %416 = vmatmul.mubr.bf16.gmra.mxu0 %v298
    %v417 = vpop.f32.mrf.mxu0
    %v418 = vadd.f32 0.0, %v417
    %v419 = vpop.f32.mrf.mxu0
    %v420 = vpop.f32.mrf.mxu0
    %v421 = vadd.f32 0.0, %v420
    %v422 = vpop.f32.mrf.mxu0
    %423 = vmatprep.mubr.bf16.mxu0 0
    %424 = vmatmul.mubr.bf16.gmra.mxu0 %v301
    %v425 = vpop.f32.mrf.mxu0
    %v426 = vadd.f32 0.0, %v425
    %v427 = vpop.f32.mrf.mxu0
    %v428 = vpop.f32.mrf.mxu0
    %v429 = vadd.f32 0.0, %v428
    %v430 = vpop.f32.mrf.mxu0
    %431 = vmatprep.mubr.bf16.mxu0 0
    %432 = vmatmul.mubr.bf16.gmra.mxu0 %v304
    %v433 = vpop.f32.mrf.mxu0
    %v434 = vadd.f32 0.0, %v433
    %v435 = vpop.f32.mrf.mxu0
    %v436 = vpop.f32.mrf.mxu0
    %v437 = vadd.f32 0.0, %v436
    %v438 = vpop.f32.mrf.mxu0
    %439 = vmatprep.mubr.bf16.mxu0 0
    %440 = vmatmul.mubr.bf16.gmra.mxu0 %v307
    %v441 = vpop.f32.mrf.mxu0
    %v442 = vadd.f32 0.0, %v441
    %v443 = vpop.f32.mrf.mxu0
    %v444 = vpop.f32.mrf.mxu0
    %v445 = vadd.f32 0.0, %v444
    %v446 = vpop.f32.mrf.mxu0
    %447 = vmatprep.mubr.bf16.mxu0 0
    %448 = vmatmul.mubr.bf16.gmra.mxu0 %v310
    %v449 = vpop.f32.mrf.mxu0
    %v450 = vadd.f32 0.0, %v449
    %v451 = vpop.f32.mrf.mxu0
    %v452 = vpop.f32.mrf.mxu0
    %v453 = vadd.f32 0.0, %v452
    %v454 = vpop.f32.mrf.mxu0
    %455 = vmatprep.mubr.bf16.mxu0 0
    %456 = vmatmul.mubr.bf16.gmra.mxu0 %v313
    %v457 = vpop.f32.mrf.mxu0
    %v458 = vadd.f32 0.0, %v457
    %v459 = vpop.f32.mrf.mxu0
    %v460 = vpop.f32.mrf.mxu0
    %v461 = vadd.f32 0.0, %v460
    %v462 = vpop.f32.mrf.mxu0
    %463 = vmatprep.mubr.bf16.mxu0 0
    %464 = vmatmul.mubr.bf16.gmra.mxu0 %v316
    %v465 = vpop.f32.mrf.mxu0
    %v466 = vadd.f32 0.0, %v465
    %v467 = vpop.f32.mrf.mxu0
    %v468 = vpop.f32.mrf.mxu0
    %v469 = vadd.f32 0.0, %v468
    %v470 = vpop.f32.mrf.mxu0
    %471 = vmatprep.mubr.bf16.mxu0 0
    %472 = vmatmul.mubr.bf16.gmra.mxu0 %v319
    %v473 = vpop.f32.mrf.mxu0
    %v474 = vadd.f32 0.0, %v473
    %v475 = vpop.f32.mrf.mxu0
    %v476 = vpop.f32.mrf.mxu0
    %v477 = vadd.f32 0.0, %v476
    %v478 = vpop.f32.mrf.mxu0
    %479 = vmatprep.mubr.bf16.mxu0 0
    %480 = vmatmul.mubr.bf16.gmra.mxu0 %v322
    %v481 = vpop.f32.mrf.mxu0
    %v482 = vadd.f32 0.0, %v481
    %v483 = vpop.f32.mrf.mxu0
    %v484 = vpop.f32.mrf.mxu0
    %v485 = vadd.f32 0.0, %v484
    %v486 = vpop.f32.mrf.mxu0
    %487 = vmatprep.mubr.bf16.mxu0 0
    %488 = vmatmul.mubr.bf16.gmra.mxu0 %v325
    %v489 = vpop.f32.mrf.mxu0
    %v490 = vadd.f32 0.0, %v489
    %v491 = vpop.f32.mrf.mxu0
    %v492 = vpop.f32.mrf.mxu0
    %v493 = vadd.f32 0.0, %v492
    %v494 = vpop.f32.mrf.mxu0
    %495 = vmatprep.mubr.bf16.mxu0 0
    %496 = vmatmul.mubr.bf16.gmra.mxu0 %v328
    %v497 = vpop.f32.mrf.mxu0
    %v498 = vadd.f32 0.0, %v497
    %v499 = vpop.f32.mrf.mxu0
    %v500 = vpop.f32.mrf.mxu0
    %v501 = vadd.f32 0.0, %v500
    %v502 = vpop.f32.mrf.mxu0
    %503 = vmatprep.mubr.bf16.mxu0 0
    %504 = vmatmul.mubr.bf16.gmra.mxu0 %v331
    %v505 = vpop.f32.mrf.mxu0
    %v506 = vadd.f32 0.0, %v505
    %v507 = vpop.f32.mrf.mxu0
    %v508 = vpop.f32.mrf.mxu0
    %v509 = vadd.f32 0.0, %v508
    %v510 = vpop.f32.mrf.mxu0
    %511 = vmatprep.mubr.bf16.mxu0 0
    %512 = vmatmul.mubr.bf16.gmra.mxu0 %v334
    %v513 = vpop.f32.mrf.mxu0
    %v514 = vadd.f32 0.0, %v513
    %v515 = vpop.f32.mrf.mxu0
    %v516 = vpop.f32.mrf.mxu0
    %v517 = vadd.f32 0.0, %v516
    %v518 = vpop.f32.mrf.mxu0
    %519 = vmatprep.mubr.bf16.mxu0 0
    %520 = vmatmul.mubr.bf16.gmra.mxu0 %v337
    %v521 = vpop.f32.mrf.mxu0
    %v522 = vadd.f32 0.0, %v521
    %v523 = vpop.f32.mrf.mxu0
    %v524 = vpop.f32.mrf.mxu0
    %v525 = vadd.f32 0.0, %v524
    %v526 = vpop.f32.mrf.mxu0
    %527 = vmatprep.mubr.bf16.mxu0 0
    %528 = vmatmul.mubr.bf16.gmra.mxu0 %v340
    %v529 = vpop.f32.mrf.mxu0
    %v530 = vadd.f32 0.0, %v529
    %v531 = vpop.f32.mrf.mxu0
    %v532 = vpop.f32.mrf.mxu0
    %v533 = vadd.f32 0.0, %v532
    %v534 = vpop.f32.mrf.mxu0
    %535 = vmatprep.mubr.bf16.mxu0 0
    %536 = vmatmul.mubr.bf16.gmra.mxu0 %v343
    %v537 = vpop.f32.mrf.mxu0
    %v538 = vadd.f32 0.0, %v537
    %v539 = vpop.f32.mrf.mxu0
    %v540 = vpop.f32.mrf.mxu0
    %v541 = vadd.f32 0.0, %v540
    %v542 = vpop.f32.mrf.mxu0
    %543 = vmatprep.mubr.bf16.mxu0 0
    %544 = vmatmul.mubr.bf16.gmra.mxu0 %v346
    %v545 = vpop.f32.mrf.mxu0
    %v546 = vadd.f32 0.0, %v545
    %v547 = vpop.f32.mrf.mxu0
    %v548 = vpop.f32.mrf.mxu0
    %v549 = vadd.f32 0.0, %v548
    %v550 = vpop.f32.mrf.mxu0
    %551 = vmatprep.mubr.bf16.mxu0 0
    %552 = vmatmul.mubr.bf16.gmra.mxu0 %v349
    %v553 = vpop.f32.mrf.mxu0
    %v554 = vadd.f32 0.0, %v553
    %v555 = vpop.f32.mrf.mxu0
    %v556 = vpop.f32.mrf.mxu0
    %v557 = vadd.f32 0.0, %v556
    %v558 = vpop.f32.mrf.mxu0
    %559 = vmatprep.mubr.bf16.mxu0 0
    %560 = vmatmul.mubr.bf16.gmra.mxu0 %v352
    %v561 = vpop.f32.mrf.mxu0
    %v562 = vadd.f32 0.0, %v561
    %v563 = vpop.f32.mrf.mxu0
    %v564 = vpop.f32.mrf.mxu0
    %v565 = vadd.f32 0.0, %v564
    %v566 = vpop.f32.mrf.mxu0
    %567 = vmatprep.mubr.bf16.mxu0 0
    %568 = vmatmul.mubr.bf16.gmra.mxu0 %v355
    %v569 = vpop.f32.mrf.mxu0
    %v570 = vadd.f32 0.0, %v569
    %v571 = vpop.f32.mrf.mxu0
    %v572 = vpop.f32.mrf.mxu0
    %v573 = vadd.f32 0.0, %v572
    %v574 = vpop.f32.mrf.mxu0
    %575 = vmatprep.mubr.bf16.mxu0 0
    %576 = vmatmul.mubr.bf16.gmra.mxu0 %v358
    %v577 = vpop.f32.mrf.mxu0
    %v578 = vadd.f32 0.0, %v577
    %v579 = vpop.f32.mrf.mxu0
    %v580 = vpop.f32.mrf.mxu0
    %v581 = vadd.f32 0.0, %v580
    %v582 = vpop.f32.mrf.mxu0
    %583 = vmatprep.mubr.bf16.mxu0 0
    %584 = vmatmul.mubr.bf16.gmra.mxu0 %v361
    %v585 = vpop.f32.mrf.mxu0
    %v586 = vadd.f32 0.0, %v585
    %v587 = vpop.f32.mrf.mxu0
    %v588 = vpop.f32.mrf.mxu0
    %v589 = vadd.f32 0.0, %v588
    %v590 = vpop.f32.mrf.mxu0
    %591 = vdwg.mxu0
    %v640 = vunpack.c.l.b16 %v72
    %v641 = vunpack.c.l.b16 %v73
    %v642 = vunpack.c.l.b16 %v74
    %v643 = vunpack.c.l.b16 %v75
    %v644 = vunpack.c.l.b16 %v76
    %v645 = vunpack.c.l.b16 %v77
    %v646 = vunpack.c.l.b16 %v78
    %v647 = vunpack.c.l.b16 %v79
    %v648 = vunpack.c.l.b16 %v80
    %v649 = vunpack.c.l.b16 %v81
    %v650 = vunpack.c.l.b16 %v82
    %v651 = vunpack.c.l.b16 %v83
    %v652 = vunpack.c.l.b16 %v84
    %v653 = vunpack.c.l.b16 %v85
    %v654 = vunpack.c.l.b16 %v86
    %v655 = vunpack.c.l.b16 %v87
    %v656 = vunpack.c.l.b16 %v88
    %v657 = vunpack.c.l.b16 %v89
    %v658 = vunpack.c.l.b16 %v90
    %v659 = vunpack.c.l.b16 %v91
    %v660 = vunpack.c.l.b16 %v92
    %v661 = vunpack.c.l.b16 %v93
    %v662 = vunpack.c.l.b16 %v94
    %v663 = vunpack.c.l.b16 %v95
    %v664 = vunpack.c.l.b16 %v96
    %v665 = vunpack.c.l.b16 %v97
    %v666 = vunpack.c.l.b16 %v98
    %v667 = vunpack.c.l.b16 %v99
    %v668 = vunpack.c.l.b16 %v100
    %v669 = vunpack.c.l.b16 %v101
    %v670 = vunpack.c.l.b16 %v102
    %v671 = vunpack.c.l.b16 %v103
    %v672 = vunpack.c.l.b16 %v104
    %v673 = vunpack.c.l.b16 %v105
    %v674 = vunpack.c.l.b16 %v106
    %v675 = vunpack.c.l.b16 %v107
    %v676 = vunpack.c.l.b16 %v108
    %v677 = vunpack.c.l.b16 %v109
    %v678 = vunpack.c.l.b16 %v110
    %v679 = vunpack.c.l.b16 %v111
    %v680 = vunpack.c.l.b16 %v112
    %v681 = vunpack.c.l.b16 %v113
    %v682 = vunpack.c.l.b16 %v114
    %v683 = vunpack.c.l.b16 %v115
    %v684 = vunpack.c.l.b16 %v116
    %v685 = vunpack.c.l.b16 %v117
    %v686 = vunpack.c.l.b16 %v118
    %v687 = vunpack.c.l.b16 %v119
    %v688 = vpack.c.b16 %v641, %v640
    %v689 = vpack.c.b16 %v643, %v642
    %v690 = vpack.c.b16 %v645, %v644
    %v691 = vpack.c.b16 %v647, %v646
    %v692 = vpack.c.b16 %v649, %v648
    %v693 = vpack.c.b16 %v651, %v650
    %v694 = vpack.c.b16 %v653, %v652
    %v695 = vpack.c.b16 %v655, %v654
    %v696 = vpack.c.b16 %v657, %v656
    %v697 = vpack.c.b16 %v659, %v658
    %v698 = vpack.c.b16 %v661, %v660
    %v699 = vpack.c.b16 %v663, %v662
    %v700 = vpack.c.b16 %v665, %v664
    %v701 = vpack.c.b16 %v667, %v666
    %v702 = vpack.c.b16 %v669, %v668
    %v703 = vpack.c.b16 %v671, %v670
    %v704 = vpack.c.b16 %v673, %v672
    %v705 = vpack.c.b16 %v675, %v674
    %v706 = vpack.c.b16 %v677, %v676
    %v707 = vpack.c.b16 %v679, %v678
    %v708 = vpack.c.b16 %v681, %v680
    %v709 = vpack.c.b16 %v683, %v682
    %v710 = vpack.c.b16 %v685, %v684
    %v711 = vpack.c.b16 %v687, %v686
    %vm712 = vcmask 31744
    %v714 = vsel %vm712, %v688, 0
    %v717 = vsel %vm712, %v689, 0
    %v720 = vsel %vm712, %v690, 0
    %v723 = vsel %vm712, %v691, 0
    %v726 = vsel %vm712, %v692, 0
    %v729 = vsel %vm712, %v693, 0
    %v732 = vsel %vm712, %v694, 0
    %v735 = vsel %vm712, %v695, 0
    %v738 = vsel %vm712, %v696, 0
    %v741 = vsel %vm712, %v697, 0
    %v744 = vsel %vm712, %v698, 0
    %v747 = vsel %vm712, %v699, 0
    %v750 = vsel %vm712, %v700, 0
    %v753 = vsel %vm712, %v701, 0
    %v756 = vsel %vm712, %v702, 0
    %v759 = vsel %vm712, %v703, 0
    %v762 = vsel %vm712, %v704, 0
    %v765 = vsel %vm712, %v705, 0
    %v768 = vsel %vm712, %v706, 0
    %v771 = vsel %vm712, %v707, 0
    %v774 = vsel %vm712, %v708, 0
    %v777 = vsel %vm712, %v709, 0
    %v780 = vsel %vm712, %v710, 0
    %v783 = vsel %vm712, %v711, 0
    %vm785 = vcmask 1041408
    %v787 = vsel %vm785, %v120, 0
    %789 = vmatprep.subr.bf16.mxu0 0
    %790 = vmatpush1.bf16.msra.mxu0 0
    %791 = vmatprep.subr.bf16.mxu0 0
    %792 = vmatpush1.bf16.msra.mxu0 0
    %793 = vmatprep.subr.bf16.mxu0 0
    %794 = vmatpush1.bf16.msra.mxu0 0
    %795 = vmatprep.subr.bf16.mxu0 0
    %796 = vmatpush1.bf16.msra.mxu0 0
    %797 = vmatprep.subr.bf16.mxu0 0
    %798 = vmatpush1.bf16.msra.mxu0 0
    %799 = vmatprep.subr.bf16.mxu0 0
    %800 = vmatpush1.bf16.msra.mxu0 0
    %801 = vmatprep.subr.bf16.mxu0 0
    %802 = vmatpush1.bf16.msra.mxu0 0
    %803 = vmatprep.subr.bf16.mxu0 0
    %804 = vmatpush1.bf16.msra.mxu0 %v787
    %805 = vmatprep.subr.bf16.mxu0 0
    %806 = vmatpush2.bf16.msra.mxu0 0
    %807 = vmatprep.subr.bf16.mxu0 0
    %808 = vmatpush2.bf16.msra.mxu0 0
    %809 = vmatprep.subr.bf16.mxu0 0
    %810 = vmatpush2.bf16.msra.mxu0 0
    %811 = vmatprep.subr.bf16.mxu0 0
    %812 = vmatpush2.bf16.msra.mxu0 0
    %813 = vmatprep.subr.bf16.mxu0 0
    %814 = vmatpush2.bf16.msra.mxu0 0
    %815 = vmatprep.subr.bf16.mxu0 0
    %816 = vmatpush2.bf16.msra.mxu0 0
    %817 = vmatprep.subr.bf16.mxu0 0
    %818 = vmatpush2.bf16.msra.mxu0 0
    %819 = vmatprep.subr.bf16.mxu0 0
    %820 = vmatpush2.bf16.msra.mxu0 0
    %821 = vmatprep.mubr.bf16.mxu0 0
    %822 = vmatmul.mubr.bf16.gmra.mxu0 %v714
    %v823 = vpop.f32.mrf.mxu0
    %v824 = vadd.f32 %v402, %v823
    %v825 = vpop.f32.mrf.mxu0
    %v826 = vpop.f32.mrf.mxu0
    %v827 = vadd.f32 %v405, %v826
    %v828 = vpop.f32.mrf.mxu0
    %829 = vmatprep.mubr.bf16.mxu0 0
    %830 = vmatmul.mubr.bf16.gmra.mxu0 %v717
    %v831 = vpop.f32.mrf.mxu0
    %v832 = vadd.f32 %v410, %v831
    %v833 = vpop.f32.mrf.mxu0
    %v834 = vpop.f32.mrf.mxu0
    %v835 = vadd.f32 %v413, %v834
    %v836 = vpop.f32.mrf.mxu0
    %837 = vmatprep.mubr.bf16.mxu0 0
    %838 = vmatmul.mubr.bf16.gmra.mxu0 %v720
    %v839 = vpop.f32.mrf.mxu0
    %v840 = vadd.f32 %v418, %v839
    %v841 = vpop.f32.mrf.mxu0
    %v842 = vpop.f32.mrf.mxu0
    %v843 = vadd.f32 %v421, %v842
    %v844 = vpop.f32.mrf.mxu0
    %845 = vmatprep.mubr.bf16.mxu0 0
    %846 = vmatmul.mubr.bf16.gmra.mxu0 %v723
    %v847 = vpop.f32.mrf.mxu0
    %v848 = vadd.f32 %v426, %v847
    %v849 = vpop.f32.mrf.mxu0
    %v850 = vpop.f32.mrf.mxu0
    %v851 = vadd.f32 %v429, %v850
    %v852 = vpop.f32.mrf.mxu0
    %853 = vmatprep.mubr.bf16.mxu0 0
    %854 = vmatmul.mubr.bf16.gmra.mxu0 %v726
    %v855 = vpop.f32.mrf.mxu0
    %v856 = vadd.f32 %v434, %v855
    %v857 = vpop.f32.mrf.mxu0
    %v858 = vpop.f32.mrf.mxu0
    %v859 = vadd.f32 %v437, %v858
    %v860 = vpop.f32.mrf.mxu0
    %861 = vmatprep.mubr.bf16.mxu0 0
    %862 = vmatmul.mubr.bf16.gmra.mxu0 %v729
    %v863 = vpop.f32.mrf.mxu0
    %v864 = vadd.f32 %v442, %v863
    %v865 = vpop.f32.mrf.mxu0
    %v866 = vpop.f32.mrf.mxu0
    %v867 = vadd.f32 %v445, %v866
    %v868 = vpop.f32.mrf.mxu0
    %869 = vmatprep.mubr.bf16.mxu0 0
    %870 = vmatmul.mubr.bf16.gmra.mxu0 %v732
    %v871 = vpop.f32.mrf.mxu0
    %v872 = vadd.f32 %v450, %v871
    %v873 = vpop.f32.mrf.mxu0
    %v874 = vpop.f32.mrf.mxu0
    %v875 = vadd.f32 %v453, %v874
    %v876 = vpop.f32.mrf.mxu0
    %877 = vmatprep.mubr.bf16.mxu0 0
    %878 = vmatmul.mubr.bf16.gmra.mxu0 %v735
    %v879 = vpop.f32.mrf.mxu0
    %v880 = vadd.f32 %v458, %v879
    %v881 = vpop.f32.mrf.mxu0
    %v882 = vpop.f32.mrf.mxu0
    %v883 = vadd.f32 %v461, %v882
    %v884 = vpop.f32.mrf.mxu0
    %885 = vmatprep.mubr.bf16.mxu0 0
    %886 = vmatmul.mubr.bf16.gmra.mxu0 %v738
    %v887 = vpop.f32.mrf.mxu0
    %v888 = vadd.f32 %v466, %v887
    %v889 = vpop.f32.mrf.mxu0
    %v890 = vpop.f32.mrf.mxu0
    %v891 = vadd.f32 %v469, %v890
    %v892 = vpop.f32.mrf.mxu0
    %893 = vmatprep.mubr.bf16.mxu0 0
    %894 = vmatmul.mubr.bf16.gmra.mxu0 %v741
    %v895 = vpop.f32.mrf.mxu0
    %v896 = vadd.f32 %v474, %v895
    %v897 = vpop.f32.mrf.mxu0
    %v898 = vpop.f32.mrf.mxu0
    %v899 = vadd.f32 %v477, %v898
    %v900 = vpop.f32.mrf.mxu0
    %901 = vmatprep.mubr.bf16.mxu0 0
    %902 = vmatmul.mubr.bf16.gmra.mxu0 %v744
    %v903 = vpop.f32.mrf.mxu0
    %v904 = vadd.f32 %v482, %v903
    %v905 = vpop.f32.mrf.mxu0
    %v906 = vpop.f32.mrf.mxu0
    %v907 = vadd.f32 %v485, %v906
    %v908 = vpop.f32.mrf.mxu0
    %909 = vmatprep.mubr.bf16.mxu0 0
    %910 = vmatmul.mubr.bf16.gmra.mxu0 %v747
    %v911 = vpop.f32.mrf.mxu0
    %v912 = vadd.f32 %v490, %v911
    %v913 = vpop.f32.mrf.mxu0
    %v914 = vpop.f32.mrf.mxu0
    %v915 = vadd.f32 %v493, %v914
    %v916 = vpop.f32.mrf.mxu0
    %917 = vmatprep.mubr.bf16.mxu0 0
    %918 = vmatmul.mubr.bf16.gmra.mxu0 %v750
    %v919 = vpop.f32.mrf.mxu0
    %v920 = vadd.f32 %v498, %v919
    %v921 = vpop.f32.mrf.mxu0
    %v922 = vpop.f32.mrf.mxu0
    %v923 = vadd.f32 %v501, %v922
    %v924 = vpop.f32.mrf.mxu0
    %925 = vmatprep.mubr.bf16.mxu0 0
    %926 = vmatmul.mubr.bf16.gmra.mxu0 %v753
    %v927 = vpop.f32.mrf.mxu0
    %v928 = vadd.f32 %v506, %v927
    %v929 = vpop.f32.mrf.mxu0
    %v930 = vpop.f32.mrf.mxu0
    %v931 = vadd.f32 %v509, %v930
    %v932 = vpop.f32.mrf.mxu0
    %933 = vmatprep.mubr.bf16.mxu0 0
    %934 = vmatmul.mubr.bf16.gmra.mxu0 %v756
    %v935 = vpop.f32.mrf.mxu0
    %v936 = vadd.f32 %v514, %v935
    %v937 = vpop.f32.mrf.mxu0
    %v938 = vpop.f32.mrf.mxu0
    %v939 = vadd.f32 %v517, %v938
    %v940 = vpop.f32.mrf.mxu0
    %941 = vmatprep.mubr.bf16.mxu0 0
    %942 = vmatmul.mubr.bf16.gmra.mxu0 %v759
    %v943 = vpop.f32.mrf.mxu0
    %v944 = vadd.f32 %v522, %v943
    %v945 = vpop.f32.mrf.mxu0
    %v946 = vpop.f32.mrf.mxu0
    %v947 = vadd.f32 %v525, %v946
    %v948 = vpop.f32.mrf.mxu0
    %949 = vmatprep.mubr.bf16.mxu0 0
    %950 = vmatmul.mubr.bf16.gmra.mxu0 %v762
    %v951 = vpop.f32.mrf.mxu0
    %v952 = vadd.f32 %v530, %v951
    %v953 = vpop.f32.mrf.mxu0
    %v954 = vpop.f32.mrf.mxu0
    %v955 = vadd.f32 %v533, %v954
    %v956 = vpop.f32.mrf.mxu0
    %957 = vmatprep.mubr.bf16.mxu0 0
    %958 = vmatmul.mubr.bf16.gmra.mxu0 %v765
    %v959 = vpop.f32.mrf.mxu0
    %v960 = vadd.f32 %v538, %v959
    %v961 = vpop.f32.mrf.mxu0
    %v962 = vpop.f32.mrf.mxu0
    %v963 = vadd.f32 %v541, %v962
    %v964 = vpop.f32.mrf.mxu0
    %965 = vmatprep.mubr.bf16.mxu0 0
    %966 = vmatmul.mubr.bf16.gmra.mxu0 %v768
    %v967 = vpop.f32.mrf.mxu0
    %v968 = vadd.f32 %v546, %v967
    %v969 = vpop.f32.mrf.mxu0
    %v970 = vpop.f32.mrf.mxu0
    %v971 = vadd.f32 %v549, %v970
    %v972 = vpop.f32.mrf.mxu0
    %973 = vmatprep.mubr.bf16.mxu0 0
    %974 = vmatmul.mubr.bf16.gmra.mxu0 %v771
    %v975 = vpop.f32.mrf.mxu0
    %v976 = vadd.f32 %v554, %v975
    %v977 = vpop.f32.mrf.mxu0
    %v978 = vpop.f32.mrf.mxu0
    %v979 = vadd.f32 %v557, %v978
    %v980 = vpop.f32.mrf.mxu0
    %981 = vmatprep.mubr.bf16.mxu0 0
    %982 = vmatmul.mubr.bf16.gmra.mxu0 %v774
    %v983 = vpop.f32.mrf.mxu0
    %v984 = vadd.f32 %v562, %v983
    %v985 = vpop.f32.mrf.mxu0
    %v986 = vpop.f32.mrf.mxu0
    %v987 = vadd.f32 %v565, %v986
    %v988 = vpop.f32.mrf.mxu0
    %989 = vmatprep.mubr.bf16.mxu0 0
    %990 = vmatmul.mubr.bf16.gmra.mxu0 %v777
    %v991 = vpop.f32.mrf.mxu0
    %v992 = vadd.f32 %v570, %v991
    %v993 = vpop.f32.mrf.mxu0
    %v994 = vpop.f32.mrf.mxu0
    %v995 = vadd.f32 %v573, %v994
    %v996 = vpop.f32.mrf.mxu0
    %997 = vmatprep.mubr.bf16.mxu0 0
    %998 = vmatmul.mubr.bf16.gmra.mxu0 %v780
    %v999 = vpop.f32.mrf.mxu0
    %v1000 = vadd.f32 %v578, %v999
    %v1001 = vpop.f32.mrf.mxu0
    %v1002 = vpop.f32.mrf.mxu0
    %v1003 = vadd.f32 %v581, %v1002
    %v1004 = vpop.f32.mrf.mxu0
    %1005 = vmatprep.mubr.bf16.mxu0 0
    %1006 = vmatmul.mubr.bf16.gmra.mxu0 %v783
    %v1007 = vpop.f32.mrf.mxu0
    %v1008 = vadd.f32 %v586, %v1007
    %v1009 = vpop.f32.mrf.mxu0
    %v1010 = vpop.f32.mrf.mxu0
    %v1011 = vadd.f32 %v589, %v1010
    %v1012 = vpop.f32.mrf.mxu0
    %1013 = vdwg.mxu0
    %v1014 = vld [vmem:[%s2] sm:$0xf]
    %v1015 = vld [vmem:[%s2 + $0x4] sm:$0xf]
    %v1016 = vld [vmem:[%s2 + $0x8] sm:$0xf]
    %v1017 = vld [vmem:[%s2 + $0xc] sm:$0xf]
    %v1018 = vld [vmem:[%s2 + $0x10] sm:$0xf]
    %v1019 = vld [vmem:[%s2 + $0x14] sm:$0xf]
    %v1020 = vld [vmem:[%s2 + $0x18] sm:$0xf]
    %v1021 = vld [vmem:[%s2 + $0x1c] sm:$0xf]
    %v1022 = vld [vmem:[%s2 + $0x20] sm:$0xf]
    %v1023 = vld [vmem:[%s2 + $0x24] sm:$0xf]
    %v1024 = vld [vmem:[%s2 + $0x28] sm:$0xf]
    %v1025 = vld [vmem:[%s2 + $0x2c] sm:$0xf]
    %v1026 = vld [vmem:[%s2 + $0x30] sm:$0xf]
    %v1027 = vld [vmem:[%s2 + $0x34] sm:$0xf]
    %v1028 = vld [vmem:[%s2 + $0x38] sm:$0xf]
    %v1029 = vld [vmem:[%s2 + $0x3c] sm:$0xf]
    %v1030 = vld [vmem:[%s2 + $0x40] sm:$0xf]
    %v1031 = vld [vmem:[%s2 + $0x44] sm:$0xf]
    %v1032 = vld [vmem:[%s2 + $0x48] sm:$0xf]
    %v1033 = vld [vmem:[%s2 + $0x4c] sm:$0xf]
    %v1034 = vld [vmem:[%s2 + $0x50] sm:$0xf]
    %v1035 = vld [vmem:[%s2 + $0x54] sm:$0xf]
    %v1036 = vld [vmem:[%s2 + $0x58] sm:$0xf]
    %v1037 = vld [vmem:[%s2 + $0x5c] sm:$0xf]
    %v1038 = vld [vmem:[%s2 + $0x60] sm:$0xf]
    %v1039 = vld [vmem:[%s2 + $0x64] sm:$0xf]
    %v1040 = vld [vmem:[%s2 + $0x68] sm:$0xf]
    %v1041 = vld [vmem:[%s2 + $0x6c] sm:$0xf]
    %v1042 = vld [vmem:[%s2 + $0x70] sm:$0xf]
    %v1043 = vld [vmem:[%s2 + $0x74] sm:$0xf]
    %v1044 = vld [vmem:[%s2 + $0x78] sm:$0xf]
    %v1045 = vld [vmem:[%s2 + $0x7c] sm:$0xf]
    %v1046 = vld [vmem:[%s2 + $0x80] sm:$0xf]
    %v1047 = vld [vmem:[%s2 + $0x84] sm:$0xf]
    %v1048 = vld [vmem:[%s2 + $0x88] sm:$0xf]
    %v1049 = vld [vmem:[%s2 + $0x8c] sm:$0xf]
    %v1050 = vld [vmem:[%s2 + $0x90] sm:$0xf]
    %v1051 = vld [vmem:[%s2 + $0x94] sm:$0xf]
    %v1052 = vld [vmem:[%s2 + $0x98] sm:$0xf]
    %v1053 = vld [vmem:[%s2 + $0x9c] sm:$0xf]
    %v1054 = vld [vmem:[%s2 + $0xa0] sm:$0xf]
    %v1055 = vld [vmem:[%s2 + $0xa4] sm:$0xf]
    %v1056 = vld [vmem:[%s2 + $0xa8] sm:$0xf]
    %v1057 = vld [vmem:[%s2 + $0xac] sm:$0xf]
    %v1058 = vld [vmem:[%s2 + $0xb0] sm:$0xf]
    %v1059 = vld [vmem:[%s2 + $0xb4] sm:$0xf]
    %v1060 = vld [vmem:[%s2 + $0xb8] sm:$0xf]
    %v1061 = vld [vmem:[%s2 + $0xbc] sm:$0xf]
    %v1062 = vld [vmem:[%s7] sm:$0xf]
    %v1111 = vunpack.c.l.b16 %v1014
    %v1112 = vunpack.c.l.b16 %v1015
    %v1113 = vunpack.c.l.b16 %v1016
    %v1114 = vunpack.c.l.b16 %v1017
    %v1115 = vunpack.c.l.b16 %v1018
    %v1116 = vunpack.c.l.b16 %v1019
    %v1117 = vunpack.c.l.b16 %v1020
    %v1118 = vunpack.c.l.b16 %v1021
    %v1119 = vunpack.c.l.b16 %v1022
    %v1120 = vunpack.c.l.b16 %v1023
    %v1121 = vunpack.c.l.b16 %v1024
    %v1122 = vunpack.c.l.b16 %v1025
    %v1123 = vunpack.c.l.b16 %v1026
    %v1124 = vunpack.c.l.b16 %v1027
    %v1125 = vunpack.c.l.b16 %v1028
    %v1126 = vunpack.c.l.b16 %v1029
    %v1127 = vunpack.c.l.b16 %v1030
    %v1128 = vunpack.c.l.b16 %v1031
    %v1129 = vunpack.c.l.b16 %v1032
    %v1130 = vunpack.c.l.b16 %v1033
    %v1131 = vunpack.c.l.b16 %v1034
    %v1132 = vunpack.c.l.b16 %v1035
    %v1133 = vunpack.c.l.b16 %v1036
    %v1134 = vunpack.c.l.b16 %v1037
    %v1135 = vunpack.c.l.b16 %v1038
    %v1136 = vunpack.c.l.b16 %v1039
    %v1137 = vunpack.c.l.b16 %v1040
    %v1138 = vunpack.c.l.b16 %v1041
    %v1139 = vunpack.c.l.b16 %v1042
    %v1140 = vunpack.c.l.b16 %v1043
    %v1141 = vunpack.c.l.b16 %v1044
    %v1142 = vunpack.c.l.b16 %v1045
    %v1143 = vunpack.c.l.b16 %v1046
    %v1144 = vunpack.c.l.b16 %v1047
    %v1145 = vunpack.c.l.b16 %v1048
    %v1146 = vunpack.c.l.b16 %v1049
    %v1147 = vunpack.c.l.b16 %v1050
    %v1148 = vunpack.c.l.b16 %v1051
    %v1149 = vunpack.c.l.b16 %v1052
    %v1150 = vunpack.c.l.b16 %v1053
    %v1151 = vunpack.c.l.b16 %v1054
    %v1152 = vunpack.c.l.b16 %v1055
    %v1153 = vunpack.c.l.b16 %v1056
    %v1154 = vunpack.c.l.b16 %v1057
    %v1155 = vunpack.c.l.b16 %v1058
    %v1156 = vunpack.c.l.b16 %v1059
    %v1157 = vunpack.c.l.b16 %v1060
    %v1158 = vunpack.c.l.b16 %v1061
    %v1159 = vpack.c.b16 %v1112, %v1111
    %v1160 = vpack.c.b16 %v1114, %v1113
    %v1161 = vpack.c.b16 %v1116, %v1115
    %v1162 = vpack.c.b16 %v1118, %v1117
    %v1163 = vpack.c.b16 %v1120, %v1119
    %v1164 = vpack.c.b16 %v1122, %v1121
    %v1165 = vpack.c.b16 %v1124, %v1123
    %v1166 = vpack.c.b16 %v1126, %v1125
    %v1167 = vpack.c.b16 %v1128, %v1127
    %v1168 = vpack.c.b16 %v1130, %v1129
    %v1169 = vpack.c.b16 %v1132, %v1131
    %v1170 = vpack.c.b16 %v1134, %v1133
    %v1171 = vpack.c.b16 %v1136, %v1135
    %v1172 = vpack.c.b16 %v1138, %v1137
    %v1173 = vpack.c.b16 %v1140, %v1139
    %v1174 = vpack.c.b16 %v1142, %v1141
    %v1175 = vpack.c.b16 %v1144, %v1143
    %v1176 = vpack.c.b16 %v1146, %v1145
    %v1177 = vpack.c.b16 %v1148, %v1147
    %v1178 = vpack.c.b16 %v1150, %v1149
    %v1179 = vpack.c.b16 %v1152, %v1151
    %v1180 = vpack.c.b16 %v1154, %v1153
    %v1181 = vpack.c.b16 %v1156, %v1155
    %v1182 = vpack.c.b16 %v1158, %v1157
    %v1184 = vsel %vm290, %v1159, 0
    %v1187 = vsel %vm290, %v1160, 0
    %v1190 = vsel %vm290, %v1161, 0
    %v1193 = vsel %vm290, %v1162, 0
    %v1196 = vsel %vm290, %v1163, 0
    %v1199 = vsel %vm290, %v1164, 0
    %v1202 = vsel %vm290, %v1165, 0
    %v1205 = vsel %vm290, %v1166, 0
    %v1208 = vsel %vm290, %v1167, 0
    %v1211 = vsel %vm290, %v1168, 0
    %v1214 = vsel %vm290, %v1169, 0
    %v1217 = vsel %vm290, %v1170, 0
    %v1220 = vsel %vm290, %v1171, 0
    %v1223 = vsel %vm290, %v1172, 0
    %v1226 = vsel %vm290, %v1173, 0
    %v1229 = vsel %vm290, %v1174, 0
    %v1232 = vsel %vm290, %v1175, 0
    %v1235 = vsel %vm290, %v1176, 0
    %v1238 = vsel %vm290, %v1177, 0
    %v1241 = vsel %vm290, %v1178, 0
    %v1244 = vsel %vm290, %v1179, 0
    %v1247 = vsel %vm290, %v1180, 0
    %v1250 = vsel %vm290, %v1181, 0
    %v1253 = vsel %vm290, %v1182, 0
    %v1256 = vsel %vm363, %v1062, 0
    %1258 = vmatprep.subr.bf16.mxu0 0
    %1259 = vmatpush1.bf16.msra.mxu0 0
    %1260 = vmatprep.subr.bf16.mxu0 0
    %1261 = vmatpush1.bf16.msra.mxu0 0
    %1262 = vmatprep.subr.bf16.mxu0 0
    %1263 = vmatpush1.bf16.msra.mxu0 0
    %1264 = vmatprep.subr.bf16.mxu0 0
    %1265 = vmatpush1.bf16.msra.mxu0 0
    %1266 = vmatprep.subr.bf16.mxu0 0
    %1267 = vmatpush1.bf16.msra.mxu0 0
    %1268 = vmatprep.subr.bf16.mxu0 0
    %1269 = vmatpush1.bf16.msra.mxu0 0
    %1270 = vmatprep.subr.bf16.mxu0 0
    %1271 = vmatpush1.bf16.msra.mxu0 0
    %1272 = vmatprep.subr.bf16.mxu0 0
    %1273 = vmatpush1.bf16.msra.mxu0 %v1256
    %1274 = vmatprep.subr.bf16.mxu0 0
    %1275 = vmatpush2.bf16.msra.mxu0 0
    %1276 = vmatprep.subr.bf16.mxu0 0
    %1277 = vmatpush2.bf16.msra.mxu0 0
    %1278 = vmatprep.subr.bf16.mxu0 0
    %1279 = vmatpush2.bf16.msra.mxu0 0
    %1280 = vmatprep.subr.bf16.mxu0 0
    %1281 = vmatpush2.bf16.msra.mxu0 0
    %1282 = vmatprep.subr.bf16.mxu0 0
    %1283 = vmatpush2.bf16.msra.mxu0 0
    %1284 = vmatprep.subr.bf16.mxu0 0
    %1285 = vmatpush2.bf16.msra.mxu0 0
    %1286 = vmatprep.subr.bf16.mxu0 0
    %1287 = vmatpush2.bf16.msra.mxu0 0
    %1288 = vmatprep.subr.bf16.mxu0 0
    %1289 = vmatpush2.bf16.msra.mxu0 0
    %1290 = vmatprep.mubr.bf16.mxu0 0
    %1291 = vmatmul.mubr.bf16.gmra.mxu0 %v1184
    %v1292 = vpop.f32.mrf.mxu0
    %v1293 = vadd.f32 0.0, %v1292
    %v1294 = vpop.f32.mrf.mxu0
    %v1295 = vpop.f32.mrf.mxu0
    %v1296 = vadd.f32 0.0, %v1295
    %v1297 = vpop.f32.mrf.mxu0
    %1298 = vmatprep.mubr.bf16.mxu0 0
    %1299 = vmatmul.mubr.bf16.gmra.mxu0 %v1187
    %v1300 = vpop.f32.mrf.mxu0
    %v1301 = vadd.f32 0.0, %v1300
    %v1302 = vpop.f32.mrf.mxu0
    %v1303 = vpop.f32.mrf.mxu0
    %v1304 = vadd.f32 0.0, %v1303
    %v1305 = vpop.f32.mrf.mxu0
    %1306 = vmatprep.mubr.bf16.mxu0 0
    %1307 = vmatmul.mubr.bf16.gmra.mxu0 %v1190
    %v1308 = vpop.f32.mrf.mxu0
    %v1309 = vadd.f32 0.0, %v1308
    %v1310 = vpop.f32.mrf.mxu0
    %v1311 = vpop.f32.mrf.mxu0
    %v1312 = vadd.f32 0.0, %v1311
    %v1313 = vpop.f32.mrf.mxu0
    %1314 = vmatprep.mubr.bf16.mxu0 0
    %1315 = vmatmul.mubr.bf16.gmra.mxu0 %v1193
    %v1316 = vpop.f32.mrf.mxu0
    %v1317 = vadd.f32 0.0, %v1316
    %v1318 = vpop.f32.mrf.mxu0
    %v1319 = vpop.f32.mrf.mxu0
    %v1320 = vadd.f32 0.0, %v1319
    %v1321 = vpop.f32.mrf.mxu0
    %1322 = vmatprep.mubr.bf16.mxu0 0
    %1323 = vmatmul.mubr.bf16.gmra.mxu0 %v1196
    %v1324 = vpop.f32.mrf.mxu0
    %v1325 = vadd.f32 0.0, %v1324
    %v1326 = vpop.f32.mrf.mxu0
    %v1327 = vpop.f32.mrf.mxu0
    %v1328 = vadd.f32 0.0, %v1327
    %v1329 = vpop.f32.mrf.mxu0
    %1330 = vmatprep.mubr.bf16.mxu0 0
    %1331 = vmatmul.mubr.bf16.gmra.mxu0 %v1199
    %v1332 = vpop.f32.mrf.mxu0
    %v1333 = vadd.f32 0.0, %v1332
    %v1334 = vpop.f32.mrf.mxu0
    %v1335 = vpop.f32.mrf.mxu0
    %v1336 = vadd.f32 0.0, %v1335
    %v1337 = vpop.f32.mrf.mxu0
    %1338 = vmatprep.mubr.bf16.mxu0 0
    %1339 = vmatmul.mubr.bf16.gmra.mxu0 %v1202
    %v1340 = vpop.f32.mrf.mxu0
    %v1341 = vadd.f32 0.0, %v1340
    %v1342 = vpop.f32.mrf.mxu0
    %v1343 = vpop.f32.mrf.mxu0
    %v1344 = vadd.f32 0.0, %v1343
    %v1345 = vpop.f32.mrf.mxu0
    %1346 = vmatprep.mubr.bf16.mxu0 0
    %1347 = vmatmul.mubr.bf16.gmra.mxu0 %v1205
    %v1348 = vpop.f32.mrf.mxu0
    %v1349 = vadd.f32 0.0, %v1348
    %v1350 = vpop.f32.mrf.mxu0
    %v1351 = vpop.f32.mrf.mxu0
    %v1352 = vadd.f32 0.0, %v1351
    %v1353 = vpop.f32.mrf.mxu0
    %1354 = vmatprep.mubr.bf16.mxu0 0
    %1355 = vmatmul.mubr.bf16.gmra.mxu0 %v1208
    %v1356 = vpop.f32.mrf.mxu0
    %v1357 = vadd.f32 0.0, %v1356
    %v1358 = vpop.f32.mrf.mxu0
    %v1359 = vpop.f32.mrf.mxu0
    %v1360 = vadd.f32 0.0, %v1359
    %v1361 = vpop.f32.mrf.mxu0
    %1362 = vmatprep.mubr.bf16.mxu0 0
    %1363 = vmatmul.mubr.bf16.gmra.mxu0 %v1211
    %v1364 = vpop.f32.mrf.mxu0
    %v1365 = vadd.f32 0.0, %v1364
    %v1366 = vpop.f32.mrf.mxu0
    %v1367 = vpop.f32.mrf.mxu0
    %v1368 = vadd.f32 0.0, %v1367
    %v1369 = vpop.f32.mrf.mxu0
    %1370 = vmatprep.mubr.bf16.mxu0 0
    %1371 = vmatmul.mubr.bf16.gmra.mxu0 %v1214
    %v1372 = vpop.f32.mrf.mxu0
    %v1373 = vadd.f32 0.0, %v1372
    %v1374 = vpop.f32.mrf.mxu0
    %v1375 = vpop.f32.mrf.mxu0
    %v1376 = vadd.f32 0.0, %v1375
    %v1377 = vpop.f32.mrf.mxu0
    %1378 = vmatprep.mubr.bf16.mxu0 0
    %1379 = vmatmul.mubr.bf16.gmra.mxu0 %v1217
    %v1380 = vpop.f32.mrf.mxu0
    %v1381 = vadd.f32 0.0, %v1380
    %v1382 = vpop.f32.mrf.mxu0
    %v1383 = vpop.f32.mrf.mxu0
    %v1384 = vadd.f32 0.0, %v1383
    %v1385 = vpop.f32.mrf.mxu0
    %1386 = vmatprep.mubr.bf16.mxu0 0
    %1387 = vmatmul.mubr.bf16.gmra.mxu0 %v1220
    %v1388 = vpop.f32.mrf.mxu0
    %v1389 = vadd.f32 0.0, %v1388
    %v1390 = vpop.f32.mrf.mxu0
    %v1391 = vpop.f32.mrf.mxu0
    %v1392 = vadd.f32 0.0, %v1391
    %v1393 = vpop.f32.mrf.mxu0
    %1394 = vmatprep.mubr.bf16.mxu0 0
    %1395 = vmatmul.mubr.bf16.gmra.mxu0 %v1223
    %v1396 = vpop.f32.mrf.mxu0
    %v1397 = vadd.f32 0.0, %v1396
    %v1398 = vpop.f32.mrf.mxu0
    %v1399 = vpop.f32.mrf.mxu0
    %v1400 = vadd.f32 0.0, %v1399
    %v1401 = vpop.f32.mrf.mxu0
    %1402 = vmatprep.mubr.bf16.mxu0 0
    %1403 = vmatmul.mubr.bf16.gmra.mxu0 %v1226
    %v1404 = vpop.f32.mrf.mxu0
    %v1405 = vadd.f32 0.0, %v1404
    %v1406 = vpop.f32.mrf.mxu0
    %v1407 = vpop.f32.mrf.mxu0
    %v1408 = vadd.f32 0.0, %v1407
    %v1409 = vpop.f32.mrf.mxu0
    %1410 = vmatprep.mubr.bf16.mxu0 0
    %1411 = vmatmul.mubr.bf16.gmra.mxu0 %v1229
    %v1412 = vpop.f32.mrf.mxu0
    %v1413 = vadd.f32 0.0, %v1412
    %v1414 = vpop.f32.mrf.mxu0
    %v1415 = vpop.f32.mrf.mxu0
    %v1416 = vadd.f32 0.0, %v1415
    %v1417 = vpop.f32.mrf.mxu0
    %1418 = vmatprep.mubr.bf16.mxu0 0
    %1419 = vmatmul.mubr.bf16.gmra.mxu0 %v1232
    %v1420 = vpop.f32.mrf.mxu0
    %v1421 = vadd.f32 0.0, %v1420
    %v1422 = vpop.f32.mrf.mxu0
    %v1423 = vpop.f32.mrf.mxu0
    %v1424 = vadd.f32 0.0, %v1423
    %v1425 = vpop.f32.mrf.mxu0
    %1426 = vmatprep.mubr.bf16.mxu0 0
    %1427 = vmatmul.mubr.bf16.gmra.mxu0 %v1235
    %v1428 = vpop.f32.mrf.mxu0
    %v1429 = vadd.f32 0.0, %v1428
    %v1430 = vpop.f32.mrf.mxu0
    %v1431 = vpop.f32.mrf.mxu0
    %v1432 = vadd.f32 0.0, %v1431
    %v1433 = vpop.f32.mrf.mxu0
    %1434 = vmatprep.mubr.bf16.mxu0 0
    %1435 = vmatmul.mubr.bf16.gmra.mxu0 %v1238
    %v1436 = vpop.f32.mrf.mxu0
    %v1437 = vadd.f32 0.0, %v1436
    %v1438 = vpop.f32.mrf.mxu0
    %v1439 = vpop.f32.mrf.mxu0
    %v1440 = vadd.f32 0.0, %v1439
    %v1441 = vpop.f32.mrf.mxu0
    %1442 = vmatprep.mubr.bf16.mxu0 0
    %1443 = vmatmul.mubr.bf16.gmra.mxu0 %v1241
    %v1444 = vpop.f32.mrf.mxu0
    %v1445 = vadd.f32 0.0, %v1444
    %v1446 = vpop.f32.mrf.mxu0
    %v1447 = vpop.f32.mrf.mxu0
    %v1448 = vadd.f32 0.0, %v1447
    %v1449 = vpop.f32.mrf.mxu0
    %1450 = vmatprep.mubr.bf16.mxu0 0
    %1451 = vmatmul.mubr.bf16.gmra.mxu0 %v1244
    %v1452 = vpop.f32.mrf.mxu0
    %v1453 = vadd.f32 0.0, %v1452
    %v1454 = vpop.f32.mrf.mxu0
    %v1455 = vpop.f32.mrf.mxu0
    %v1456 = vadd.f32 0.0, %v1455
    %v1457 = vpop.f32.mrf.mxu0
    %1458 = vmatprep.mubr.bf16.mxu0 0
    %1459 = vmatmul.mubr.bf16.gmra.mxu0 %v1247
    %v1460 = vpop.f32.mrf.mxu0
    %v1461 = vadd.f32 0.0, %v1460
    %v1462 = vpop.f32.mrf.mxu0
    %v1463 = vpop.f32.mrf.mxu0
    %v1464 = vadd.f32 0.0, %v1463
    %v1465 = vpop.f32.mrf.mxu0
    %1466 = vmatprep.mubr.bf16.mxu0 0
    %1467 = vmatmul.mubr.bf16.gmra.mxu0 %v1250
    %v1468 = vpop.f32.mrf.mxu0
    %v1469 = vadd.f32 0.0, %v1468
    %v1470 = vpop.f32.mrf.mxu0
    %v1471 = vpop.f32.mrf.mxu0
    %v1472 = vadd.f32 0.0, %v1471
    %v1473 = vpop.f32.mrf.mxu0
    %1474 = vmatprep.mubr.bf16.mxu0 0
    %1475 = vmatmul.mubr.bf16.gmra.mxu0 %v1253
    %v1476 = vpop.f32.mrf.mxu0
    %v1477 = vadd.f32 0.0, %v1476
    %v1478 = vpop.f32.mrf.mxu0
    %v1479 = vpop.f32.mrf.mxu0
    %v1480 = vadd.f32 0.0, %v1479
    %v1481 = vpop.f32.mrf.mxu0
    %1482 = vdwg.mxu0
    %v1483 = vadd.f32 %v824, %v1293
    %v1484 = vadd.f32 %v827, %v1296
    %v1485 = vadd.f32 %v832, %v1301
    %v1486 = vadd.f32 %v835, %v1304
    %v1487 = vadd.f32 %v840, %v1309
    %v1488 = vadd.f32 %v843, %v1312
    %v1489 = vadd.f32 %v848, %v1317
    %v1490 = vadd.f32 %v851, %v1320
    %v1491 = vadd.f32 %v856, %v1325
    %v1492 = vadd.f32 %v859, %v1328
    %v1493 = vadd.f32 %v864, %v1333
    %v1494 = vadd.f32 %v867, %v1336
    %v1495 = vadd.f32 %v872, %v1341
    %v1496 = vadd.f32 %v875, %v1344
    %v1497 = vadd.f32 %v880, %v1349
    %v1498 = vadd.f32 %v883, %v1352
    %v1499 = vadd.f32 %v888, %v1357
    %v1500 = vadd.f32 %v891, %v1360
    %v1501 = vadd.f32 %v896, %v1365
    %v1502 = vadd.f32 %v899, %v1368
    %v1503 = vadd.f32 %v904, %v1373
    %v1504 = vadd.f32 %v907, %v1376
    %v1505 = vadd.f32 %v912, %v1381
    %v1506 = vadd.f32 %v915, %v1384
    %v1507 = vadd.f32 %v920, %v1389
    %v1508 = vadd.f32 %v923, %v1392
    %v1509 = vadd.f32 %v928, %v1397
    %v1510 = vadd.f32 %v931, %v1400
    %v1511 = vadd.f32 %v936, %v1405
    %v1512 = vadd.f32 %v939, %v1408
    %v1513 = vadd.f32 %v944, %v1413
    %v1514 = vadd.f32 %v947, %v1416
    %v1515 = vadd.f32 %v952, %v1421
    %v1516 = vadd.f32 %v955, %v1424
    %v1517 = vadd.f32 %v960, %v1429
    %v1518 = vadd.f32 %v963, %v1432
    %v1519 = vadd.f32 %v968, %v1437
    %v1520 = vadd.f32 %v971, %v1440
    %v1521 = vadd.f32 %v976, %v1445
    %v1522 = vadd.f32 %v979, %v1448
    %v1523 = vadd.f32 %v984, %v1453
    %v1524 = vadd.f32 %v987, %v1456
    %v1525 = vadd.f32 %v992, %v1461
    %v1526 = vadd.f32 %v995, %v1464
    %v1527 = vadd.f32 %v1000, %v1469
    %v1528 = vadd.f32 %v1003, %v1472
    %v1529 = vadd.f32 %v1008, %v1477
    %v1530 = vadd.f32 %v1011, %v1480
    %v1531 = vld [vmem:[%s3] sm:$0xf]
    %v1532 = vld [vmem:[%s3 + $0x4] sm:$0xf]
    %v1533 = vld [vmem:[%s3 + $0x8] sm:$0xf]
    %v1534 = vld [vmem:[%s3 + $0xc] sm:$0xf]
    %v1535 = vld [vmem:[%s3 + $0x10] sm:$0xf]
    %v1536 = vld [vmem:[%s3 + $0x14] sm:$0xf]
    %v1537 = vld [vmem:[%s3 + $0x18] sm:$0xf]
    %v1538 = vld [vmem:[%s3 + $0x1c] sm:$0xf]
    %v1539 = vld [vmem:[%s3 + $0x20] sm:$0xf]
    %v1540 = vld [vmem:[%s3 + $0x24] sm:$0xf]
    %v1541 = vld [vmem:[%s3 + $0x28] sm:$0xf]
    %v1542 = vld [vmem:[%s3 + $0x2c] sm:$0xf]
    %v1543 = vld [vmem:[%s3 + $0x30] sm:$0xf]
    %v1544 = vld [vmem:[%s3 + $0x34] sm:$0xf]
    %v1545 = vld [vmem:[%s3 + $0x38] sm:$0xf]
    %v1546 = vld [vmem:[%s3 + $0x3c] sm:$0xf]
    %v1547 = vld [vmem:[%s3 + $0x40] sm:$0xf]
    %v1548 = vld [vmem:[%s3 + $0x44] sm:$0xf]
    %v1549 = vld [vmem:[%s3 + $0x48] sm:$0xf]
    %v1550 = vld [vmem:[%s3 + $0x4c] sm:$0xf]
    %v1551 = vld [vmem:[%s3 + $0x50] sm:$0xf]
    %v1552 = vld [vmem:[%s3 + $0x54] sm:$0xf]
    %v1553 = vld [vmem:[%s3 + $0x58] sm:$0xf]
    %v1554 = vld [vmem:[%s3 + $0x5c] sm:$0xf]
    %v1555 = vld [vmem:[%s3 + $0x60] sm:$0xf]
    %v1556 = vld [vmem:[%s3 + $0x64] sm:$0xf]
    %v1557 = vld [vmem:[%s3 + $0x68] sm:$0xf]
    %v1558 = vld [vmem:[%s3 + $0x6c] sm:$0xf]
    %v1559 = vld [vmem:[%s3 + $0x70] sm:$0xf]
    %v1560 = vld [vmem:[%s3 + $0x74] sm:$0xf]
    %v1561 = vld [vmem:[%s3 + $0x78] sm:$0xf]
    %v1562 = vld [vmem:[%s3 + $0x7c] sm:$0xf]
    %v1563 = vld [vmem:[%s3 + $0x80] sm:$0xf]
    %v1564 = vld [vmem:[%s3 + $0x84] sm:$0xf]
    %v1565 = vld [vmem:[%s3 + $0x88] sm:$0xf]
    %v1566 = vld [vmem:[%s3 + $0x8c] sm:$0xf]
    %v1567 = vld [vmem:[%s3 + $0x90] sm:$0xf]
    %v1568 = vld [vmem:[%s3 + $0x94] sm:$0xf]
    %v1569 = vld [vmem:[%s3 + $0x98] sm:$0xf]
    %v1570 = vld [vmem:[%s3 + $0x9c] sm:$0xf]
    %v1571 = vld [vmem:[%s3 + $0xa0] sm:$0xf]
    %v1572 = vld [vmem:[%s3 + $0xa4] sm:$0xf]
    %v1573 = vld [vmem:[%s3 + $0xa8] sm:$0xf]
    %v1574 = vld [vmem:[%s3 + $0xac] sm:$0xf]
    %v1575 = vld [vmem:[%s3 + $0xb0] sm:$0xf]
    %v1576 = vld [vmem:[%s3 + $0xb4] sm:$0xf]
    %v1577 = vld [vmem:[%s3 + $0xb8] sm:$0xf]
    %v1578 = vld [vmem:[%s3 + $0xbc] sm:$0xf]
    %v1579 = vld [vmem:[%s8] sm:$0xf]
    %v1628 = vunpack.c.l.b16 %v1531
    %v1629 = vunpack.c.l.b16 %v1532
    %v1630 = vunpack.c.l.b16 %v1533
    %v1631 = vunpack.c.l.b16 %v1534
    %v1632 = vunpack.c.l.b16 %v1535
    %v1633 = vunpack.c.l.b16 %v1536
    %v1634 = vunpack.c.l.b16 %v1537
    %v1635 = vunpack.c.l.b16 %v1538
    %v1636 = vunpack.c.l.b16 %v1539
    %v1637 = vunpack.c.l.b16 %v1540
    %v1638 = vunpack.c.l.b16 %v1541
    %v1639 = vunpack.c.l.b16 %v1542
    %v1640 = vunpack.c.l.b16 %v1543
    %v1641 = vunpack.c.l.b16 %v1544
    %v1642 = vunpack.c.l.b16 %v1545
    %v1643 = vunpack.c.l.b16 %v1546
    %v1644 = vunpack.c.l.b16 %v1547
    %v1645 = vunpack.c.l.b16 %v1548
    %v1646 = vunpack.c.l.b16 %v1549
    %v1647 = vunpack.c.l.b16 %v1550
    %v1648 = vunpack.c.l.b16 %v1551
    %v1649 = vunpack.c.l.b16 %v1552
    %v1650 = vunpack.c.l.b16 %v1553
    %v1651 = vunpack.c.l.b16 %v1554
    %v1652 = vunpack.c.l.b16 %v1555
    %v1653 = vunpack.c.l.b16 %v1556
    %v1654 = vunpack.c.l.b16 %v1557
    %v1655 = vunpack.c.l.b16 %v1558
    %v1656 = vunpack.c.l.b16 %v1559
    %v1657 = vunpack.c.l.b16 %v1560
    %v1658 = vunpack.c.l.b16 %v1561
    %v1659 = vunpack.c.l.b16 %v1562
    %v1660 = vunpack.c.l.b16 %v1563
    %v1661 = vunpack.c.l.b16 %v1564
    %v1662 = vunpack.c.l.b16 %v1565
    %v1663 = vunpack.c.l.b16 %v1566
    %v1664 = vunpack.c.l.b16 %v1567
    %v1665 = vunpack.c.l.b16 %v1568
    %v1666 = vunpack.c.l.b16 %v1569
    %v1667 = vunpack.c.l.b16 %v1570
    %v1668 = vunpack.c.l.b16 %v1571
    %v1669 = vunpack.c.l.b16 %v1572
    %v1670 = vunpack.c.l.b16 %v1573
    %v1671 = vunpack.c.l.b16 %v1574
    %v1672 = vunpack.c.l.b16 %v1575
    %v1673 = vunpack.c.l.b16 %v1576
    %v1674 = vunpack.c.l.b16 %v1577
    %v1675 = vunpack.c.l.b16 %v1578
    %v1676 = vpack.c.b16 %v1629, %v1628
    %v1677 = vpack.c.b16 %v1631, %v1630
    %v1678 = vpack.c.b16 %v1633, %v1632
    %v1679 = vpack.c.b16 %v1635, %v1634
    %v1680 = vpack.c.b16 %v1637, %v1636
    %v1681 = vpack.c.b16 %v1639, %v1638
    %v1682 = vpack.c.b16 %v1641, %v1640
    %v1683 = vpack.c.b16 %v1643, %v1642
    %v1684 = vpack.c.b16 %v1645, %v1644
    %v1685 = vpack.c.b16 %v1647, %v1646
    %v1686 = vpack.c.b16 %v1649, %v1648
    %v1687 = vpack.c.b16 %v1651, %v1650
    %v1688 = vpack.c.b16 %v1653, %v1652
    %v1689 = vpack.c.b16 %v1655, %v1654
    %v1690 = vpack.c.b16 %v1657, %v1656
    %v1691 = vpack.c.b16 %v1659, %v1658
    %v1692 = vpack.c.b16 %v1661, %v1660
    %v1693 = vpack.c.b16 %v1663, %v1662
    %v1694 = vpack.c.b16 %v1665, %v1664
    %v1695 = vpack.c.b16 %v1667, %v1666
    %v1696 = vpack.c.b16 %v1669, %v1668
    %v1697 = vpack.c.b16 %v1671, %v1670
    %v1698 = vpack.c.b16 %v1673, %v1672
    %v1699 = vpack.c.b16 %v1675, %v1674
    %v1701 = vsel %vm290, %v1676, 0
    %v1704 = vsel %vm290, %v1677, 0
    %v1707 = vsel %vm290, %v1678, 0
    %v1710 = vsel %vm290, %v1679, 0
    %v1713 = vsel %vm290, %v1680, 0
    %v1716 = vsel %vm290, %v1681, 0
    %v1719 = vsel %vm290, %v1682, 0
    %v1722 = vsel %vm290, %v1683, 0
    %v1725 = vsel %vm290, %v1684, 0
    %v1728 = vsel %vm290, %v1685, 0
    %v1731 = vsel %vm290, %v1686, 0
    %v1734 = vsel %vm290, %v1687, 0
    %v1737 = vsel %vm290, %v1688, 0
    %v1740 = vsel %vm290, %v1689, 0
    %v1743 = vsel %vm290, %v1690, 0
    %v1746 = vsel %vm290, %v1691, 0
    %v1749 = vsel %vm290, %v1692, 0
    %v1752 = vsel %vm290, %v1693, 0
    %v1755 = vsel %vm290, %v1694, 0
    %v1758 = vsel %vm290, %v1695, 0
    %v1761 = vsel %vm290, %v1696, 0
    %v1764 = vsel %vm290, %v1697, 0
    %v1767 = vsel %vm290, %v1698, 0
    %v1770 = vsel %vm290, %v1699, 0
    %v1773 = vsel %vm363, %v1579, 0
    %1775 = vmatprep.subr.bf16.mxu0 0
    %1776 = vmatpush1.bf16.msra.mxu0 0
    %1777 = vmatprep.subr.bf16.mxu0 0
    %1778 = vmatpush1.bf16.msra.mxu0 0
    %1779 = vmatprep.subr.bf16.mxu0 0
    %1780 = vmatpush1.bf16.msra.mxu0 0
    %1781 = vmatprep.subr.bf16.mxu0 0
    %1782 = vmatpush1.bf16.msra.mxu0 0
    %1783 = vmatprep.subr.bf16.mxu0 0
    %1784 = vmatpush1.bf16.msra.mxu0 0
    %1785 = vmatprep.subr.bf16.mxu0 0
    %1786 = vmatpush1.bf16.msra.mxu0 0
    %1787 = vmatprep.subr.bf16.mxu0 0
    %1788 = vmatpush1.bf16.msra.mxu0 0
    %1789 = vmatprep.subr.bf16.mxu0 0
    %1790 = vmatpush1.bf16.msra.mxu0 %v1773
    %1791 = vmatprep.subr.bf16.mxu0 0
    %1792 = vmatpush2.bf16.msra.mxu0 0
    %1793 = vmatprep.subr.bf16.mxu0 0
    %1794 = vmatpush2.bf16.msra.mxu0 0
    %1795 = vmatprep.subr.bf16.mxu0 0
    %1796 = vmatpush2.bf16.msra.mxu0 0
    %1797 = vmatprep.subr.bf16.mxu0 0
    %1798 = vmatpush2.bf16.msra.mxu0 0
    %1799 = vmatprep.subr.bf16.mxu0 0
    %1800 = vmatpush2.bf16.msra.mxu0 0
    %1801 = vmatprep.subr.bf16.mxu0 0
    %1802 = vmatpush2.bf16.msra.mxu0 0
    %1803 = vmatprep.subr.bf16.mxu0 0
    %1804 = vmatpush2.bf16.msra.mxu0 0
    %1805 = vmatprep.subr.bf16.mxu0 0
    %1806 = vmatpush2.bf16.msra.mxu0 0
    %1807 = vmatprep.mubr.bf16.mxu0 0
    %1808 = vmatmul.mubr.bf16.gmra.mxu0 %v1701
    %v1809 = vpop.f32.mrf.mxu0
    %v1810 = vadd.f32 0.0, %v1809
    %v1811 = vpop.f32.mrf.mxu0
    %v1812 = vpop.f32.mrf.mxu0
    %v1813 = vadd.f32 0.0, %v1812
    %v1814 = vpop.f32.mrf.mxu0
    %1815 = vmatprep.mubr.bf16.mxu0 0
    %1816 = vmatmul.mubr.bf16.gmra.mxu0 %v1704
    %v1817 = vpop.f32.mrf.mxu0
    %v1818 = vadd.f32 0.0, %v1817
    %v1819 = vpop.f32.mrf.mxu0
    %v1820 = vpop.f32.mrf.mxu0
    %v1821 = vadd.f32 0.0, %v1820
    %v1822 = vpop.f32.mrf.mxu0
    %1823 = vmatprep.mubr.bf16.mxu0 0
    %1824 = vmatmul.mubr.bf16.gmra.mxu0 %v1707
    %v1825 = vpop.f32.mrf.mxu0
    %v1826 = vadd.f32 0.0, %v1825
    %v1827 = vpop.f32.mrf.mxu0
    %v1828 = vpop.f32.mrf.mxu0
    %v1829 = vadd.f32 0.0, %v1828
    %v1830 = vpop.f32.mrf.mxu0
    %1831 = vmatprep.mubr.bf16.mxu0 0
    %1832 = vmatmul.mubr.bf16.gmra.mxu0 %v1710
    %v1833 = vpop.f32.mrf.mxu0
    %v1834 = vadd.f32 0.0, %v1833
    %v1835 = vpop.f32.mrf.mxu0
    %v1836 = vpop.f32.mrf.mxu0
    %v1837 = vadd.f32 0.0, %v1836
    %v1838 = vpop.f32.mrf.mxu0
    %1839 = vmatprep.mubr.bf16.mxu0 0
    %1840 = vmatmul.mubr.bf16.gmra.mxu0 %v1713
    %v1841 = vpop.f32.mrf.mxu0
    %v1842 = vadd.f32 0.0, %v1841
    %v1843 = vpop.f32.mrf.mxu0
    %v1844 = vpop.f32.mrf.mxu0
    %v1845 = vadd.f32 0.0, %v1844
    %v1846 = vpop.f32.mrf.mxu0
    %1847 = vmatprep.mubr.bf16.mxu0 0
    %1848 = vmatmul.mubr.bf16.gmra.mxu0 %v1716
    %v1849 = vpop.f32.mrf.mxu0
    %v1850 = vadd.f32 0.0, %v1849
    %v1851 = vpop.f32.mrf.mxu0
    %v1852 = vpop.f32.mrf.mxu0
    %v1853 = vadd.f32 0.0, %v1852
    %v1854 = vpop.f32.mrf.mxu0
    %1855 = vmatprep.mubr.bf16.mxu0 0
    %1856 = vmatmul.mubr.bf16.gmra.mxu0 %v1719
    %v1857 = vpop.f32.mrf.mxu0
    %v1858 = vadd.f32 0.0, %v1857
    %v1859 = vpop.f32.mrf.mxu0
    %v1860 = vpop.f32.mrf.mxu0
    %v1861 = vadd.f32 0.0, %v1860
    %v1862 = vpop.f32.mrf.mxu0
    %1863 = vmatprep.mubr.bf16.mxu0 0
    %1864 = vmatmul.mubr.bf16.gmra.mxu0 %v1722
    %v1865 = vpop.f32.mrf.mxu0
    %v1866 = vadd.f32 0.0, %v1865
    %v1867 = vpop.f32.mrf.mxu0
    %v1868 = vpop.f32.mrf.mxu0
    %v1869 = vadd.f32 0.0, %v1868
    %v1870 = vpop.f32.mrf.mxu0
    %1871 = vmatprep.mubr.bf16.mxu0 0
    %1872 = vmatmul.mubr.bf16.gmra.mxu0 %v1725
    %v1873 = vpop.f32.mrf.mxu0
    %v1874 = vadd.f32 0.0, %v1873
    %v1875 = vpop.f32.mrf.mxu0
    %v1876 = vpop.f32.mrf.mxu0
    %v1877 = vadd.f32 0.0, %v1876
    %v1878 = vpop.f32.mrf.mxu0
    %1879 = vmatprep.mubr.bf16.mxu0 0
    %1880 = vmatmul.mubr.bf16.gmra.mxu0 %v1728
    %v1881 = vpop.f32.mrf.mxu0
    %v1882 = vadd.f32 0.0, %v1881
    %v1883 = vpop.f32.mrf.mxu0
    %v1884 = vpop.f32.mrf.mxu0
    %v1885 = vadd.f32 0.0, %v1884
    %v1886 = vpop.f32.mrf.mxu0
    %1887 = vmatprep.mubr.bf16.mxu0 0
    %1888 = vmatmul.mubr.bf16.gmra.mxu0 %v1731
    %v1889 = vpop.f32.mrf.mxu0
    %v1890 = vadd.f32 0.0, %v1889
    %v1891 = vpop.f32.mrf.mxu0
    %v1892 = vpop.f32.mrf.mxu0
    %v1893 = vadd.f32 0.0, %v1892
    %v1894 = vpop.f32.mrf.mxu0
    %1895 = vmatprep.mubr.bf16.mxu0 0
    %1896 = vmatmul.mubr.bf16.gmra.mxu0 %v1734
    %v1897 = vpop.f32.mrf.mxu0
    %v1898 = vadd.f32 0.0, %v1897
    %v1899 = vpop.f32.mrf.mxu0
    %v1900 = vpop.f32.mrf.mxu0
    %v1901 = vadd.f32 0.0, %v1900
    %v1902 = vpop.f32.mrf.mxu0
    %1903 = vmatprep.mubr.bf16.mxu0 0
    %1904 = vmatmul.mubr.bf16.gmra.mxu0 %v1737
    %v1905 = vpop.f32.mrf.mxu0
    %v1906 = vadd.f32 0.0, %v1905
    %v1907 = vpop.f32.mrf.mxu0
    %v1908 = vpop.f32.mrf.mxu0
    %v1909 = vadd.f32 0.0, %v1908
    %v1910 = vpop.f32.mrf.mxu0
    %1911 = vmatprep.mubr.bf16.mxu0 0
    %1912 = vmatmul.mubr.bf16.gmra.mxu0 %v1740
    %v1913 = vpop.f32.mrf.mxu0
    %v1914 = vadd.f32 0.0, %v1913
    %v1915 = vpop.f32.mrf.mxu0
    %v1916 = vpop.f32.mrf.mxu0
    %v1917 = vadd.f32 0.0, %v1916
    %v1918 = vpop.f32.mrf.mxu0
    %1919 = vmatprep.mubr.bf16.mxu0 0
    %1920 = vmatmul.mubr.bf16.gmra.mxu0 %v1743
    %v1921 = vpop.f32.mrf.mxu0
    %v1922 = vadd.f32 0.0, %v1921
    %v1923 = vpop.f32.mrf.mxu0
    %v1924 = vpop.f32.mrf.mxu0
    %v1925 = vadd.f32 0.0, %v1924
    %v1926 = vpop.f32.mrf.mxu0
    %1927 = vmatprep.mubr.bf16.mxu0 0
    %1928 = vmatmul.mubr.bf16.gmra.mxu0 %v1746
    %v1929 = vpop.f32.mrf.mxu0
    %v1930 = vadd.f32 0.0, %v1929
    %v1931 = vpop.f32.mrf.mxu0
    %v1932 = vpop.f32.mrf.mxu0
    %v1933 = vadd.f32 0.0, %v1932
    %v1934 = vpop.f32.mrf.mxu0
    %1935 = vmatprep.mubr.bf16.mxu0 0
    %1936 = vmatmul.mubr.bf16.gmra.mxu0 %v1749
    %v1937 = vpop.f32.mrf.mxu0
    %v1938 = vadd.f32 0.0, %v1937
    %v1939 = vpop.f32.mrf.mxu0
    %v1940 = vpop.f32.mrf.mxu0
    %v1941 = vadd.f32 0.0, %v1940
    %v1942 = vpop.f32.mrf.mxu0
    %1943 = vmatprep.mubr.bf16.mxu0 0
    %1944 = vmatmul.mubr.bf16.gmra.mxu0 %v1752
    %v1945 = vpop.f32.mrf.mxu0
    %v1946 = vadd.f32 0.0, %v1945
    %v1947 = vpop.f32.mrf.mxu0
    %v1948 = vpop.f32.mrf.mxu0
    %v1949 = vadd.f32 0.0, %v1948
    %v1950 = vpop.f32.mrf.mxu0
    %1951 = vmatprep.mubr.bf16.mxu0 0
    %1952 = vmatmul.mubr.bf16.gmra.mxu0 %v1755
    %v1953 = vpop.f32.mrf.mxu0
    %v1954 = vadd.f32 0.0, %v1953
    %v1955 = vpop.f32.mrf.mxu0
    %v1956 = vpop.f32.mrf.mxu0
    %v1957 = vadd.f32 0.0, %v1956
    %v1958 = vpop.f32.mrf.mxu0
    %1959 = vmatprep.mubr.bf16.mxu0 0
    %1960 = vmatmul.mubr.bf16.gmra.mxu0 %v1758
    %v1961 = vpop.f32.mrf.mxu0
    %v1962 = vadd.f32 0.0, %v1961
    %v1963 = vpop.f32.mrf.mxu0
    %v1964 = vpop.f32.mrf.mxu0
    %v1965 = vadd.f32 0.0, %v1964
    %v1966 = vpop.f32.mrf.mxu0
    %1967 = vmatprep.mubr.bf16.mxu0 0
    %1968 = vmatmul.mubr.bf16.gmra.mxu0 %v1761
    %v1969 = vpop.f32.mrf.mxu0
    %v1970 = vadd.f32 0.0, %v1969
    %v1971 = vpop.f32.mrf.mxu0
    %v1972 = vpop.f32.mrf.mxu0
    %v1973 = vadd.f32 0.0, %v1972
    %v1974 = vpop.f32.mrf.mxu0
    %1975 = vmatprep.mubr.bf16.mxu0 0
    %1976 = vmatmul.mubr.bf16.gmra.mxu0 %v1764
    %v1977 = vpop.f32.mrf.mxu0
    %v1978 = vadd.f32 0.0, %v1977
    %v1979 = vpop.f32.mrf.mxu0
    %v1980 = vpop.f32.mrf.mxu0
    %v1981 = vadd.f32 0.0, %v1980
    %v1982 = vpop.f32.mrf.mxu0
    %1983 = vmatprep.mubr.bf16.mxu0 0
    %1984 = vmatmul.mubr.bf16.gmra.mxu0 %v1767
    %v1985 = vpop.f32.mrf.mxu0
    %v1986 = vadd.f32 0.0, %v1985
    %v1987 = vpop.f32.mrf.mxu0
    %v1988 = vpop.f32.mrf.mxu0
    %v1989 = vadd.f32 0.0, %v1988
    %v1990 = vpop.f32.mrf.mxu0
    %1991 = vmatprep.mubr.bf16.mxu0 0
    %1992 = vmatmul.mubr.bf16.gmra.mxu0 %v1770
    %v1993 = vpop.f32.mrf.mxu0
    %v1994 = vadd.f32 0.0, %v1993
    %v1995 = vpop.f32.mrf.mxu0
    %v1996 = vpop.f32.mrf.mxu0
    %v1997 = vadd.f32 0.0, %v1996
    %v1998 = vpop.f32.mrf.mxu0
    %1999 = vdwg.mxu0
    %v2000 = vadd.f32 %v1483, %v1810
    %v2001 = vadd.f32 %v1484, %v1813
    %v2002 = vadd.f32 %v1485, %v1818
    %v2003 = vadd.f32 %v1486, %v1821
    %v2004 = vadd.f32 %v1487, %v1826
    %v2005 = vadd.f32 %v1488, %v1829
    %v2006 = vadd.f32 %v1489, %v1834
    %v2007 = vadd.f32 %v1490, %v1837
    %v2008 = vadd.f32 %v1491, %v1842
    %v2009 = vadd.f32 %v1492, %v1845
    %v2010 = vadd.f32 %v1493, %v1850
    %v2011 = vadd.f32 %v1494, %v1853
    %v2012 = vadd.f32 %v1495, %v1858
    %v2013 = vadd.f32 %v1496, %v1861
    %v2014 = vadd.f32 %v1497, %v1866
    %v2015 = vadd.f32 %v1498, %v1869
    %v2016 = vadd.f32 %v1499, %v1874
    %v2017 = vadd.f32 %v1500, %v1877
    %v2018 = vadd.f32 %v1501, %v1882
    %v2019 = vadd.f32 %v1502, %v1885
    %v2020 = vadd.f32 %v1503, %v1890
    %v2021 = vadd.f32 %v1504, %v1893
    %v2022 = vadd.f32 %v1505, %v1898
    %v2023 = vadd.f32 %v1506, %v1901
    %v2024 = vadd.f32 %v1507, %v1906
    %v2025 = vadd.f32 %v1508, %v1909
    %v2026 = vadd.f32 %v1509, %v1914
    %v2027 = vadd.f32 %v1510, %v1917
    %v2028 = vadd.f32 %v1511, %v1922
    %v2029 = vadd.f32 %v1512, %v1925
    %v2030 = vadd.f32 %v1513, %v1930
    %v2031 = vadd.f32 %v1514, %v1933
    %v2032 = vadd.f32 %v1515, %v1938
    %v2033 = vadd.f32 %v1516, %v1941
    %v2034 = vadd.f32 %v1517, %v1946
    %v2035 = vadd.f32 %v1518, %v1949
    %v2036 = vadd.f32 %v1519, %v1954
    %v2037 = vadd.f32 %v1520, %v1957
    %v2038 = vadd.f32 %v1521, %v1962
    %v2039 = vadd.f32 %v1522, %v1965
    %v2040 = vadd.f32 %v1523, %v1970
    %v2041 = vadd.f32 %v1524, %v1973
    %v2042 = vadd.f32 %v1525, %v1978
    %v2043 = vadd.f32 %v1526, %v1981
    %v2044 = vadd.f32 %v1527, %v1986
    %v2045 = vadd.f32 %v1528, %v1989
    %v2046 = vadd.f32 %v1529, %v1994
    %v2047 = vadd.f32 %v1530, %v1997
    %v2048 = vld [vmem:[%s4] sm:$0xf]
    %v2049 = vld [vmem:[%s4 + $0x4] sm:$0xf]
    %v2050 = vld [vmem:[%s4 + $0x8] sm:$0xf]
    %v2051 = vld [vmem:[%s4 + $0xc] sm:$0xf]
    %v2052 = vld [vmem:[%s4 + $0x10] sm:$0xf]
    %v2053 = vld [vmem:[%s4 + $0x14] sm:$0xf]
    %v2054 = vld [vmem:[%s4 + $0x18] sm:$0xf]
    %v2055 = vld [vmem:[%s4 + $0x1c] sm:$0xf]
    %v2056 = vld [vmem:[%s4 + $0x20] sm:$0xf]
    %v2057 = vld [vmem:[%s4 + $0x24] sm:$0xf]
    %v2058 = vld [vmem:[%s4 + $0x28] sm:$0xf]
    %v2059 = vld [vmem:[%s4 + $0x2c] sm:$0xf]
    %v2060 = vld [vmem:[%s4 + $0x30] sm:$0xf]
    %v2061 = vld [vmem:[%s4 + $0x34] sm:$0xf]
    %v2062 = vld [vmem:[%s4 + $0x38] sm:$0xf]
    %v2063 = vld [vmem:[%s4 + $0x3c] sm:$0xf]
    %v2064 = vld [vmem:[%s4 + $0x40] sm:$0xf]
    %v2065 = vld [vmem:[%s4 + $0x44] sm:$0xf]
    %v2066 = vld [vmem:[%s4 + $0x48] sm:$0xf]
    %v2067 = vld [vmem:[%s4 + $0x4c] sm:$0xf]
    %v2068 = vld [vmem:[%s4 + $0x50] sm:$0xf]
    %v2069 = vld [vmem:[%s4 + $0x54] sm:$0xf]
    %v2070 = vld [vmem:[%s4 + $0x58] sm:$0xf]
    %v2071 = vld [vmem:[%s4 + $0x5c] sm:$0xf]
    %v2072 = vld [vmem:[%s4 + $0x60] sm:$0xf]
    %v2073 = vld [vmem:[%s4 + $0x64] sm:$0xf]
    %v2074 = vld [vmem:[%s4 + $0x68] sm:$0xf]
    %v2075 = vld [vmem:[%s4 + $0x6c] sm:$0xf]
    %v2076 = vld [vmem:[%s4 + $0x70] sm:$0xf]
    %v2077 = vld [vmem:[%s4 + $0x74] sm:$0xf]
    %v2078 = vld [vmem:[%s4 + $0x78] sm:$0xf]
    %v2079 = vld [vmem:[%s4 + $0x7c] sm:$0xf]
    %v2080 = vld [vmem:[%s4 + $0x80] sm:$0xf]
    %v2081 = vld [vmem:[%s4 + $0x84] sm:$0xf]
    %v2082 = vld [vmem:[%s4 + $0x88] sm:$0xf]
    %v2083 = vld [vmem:[%s4 + $0x8c] sm:$0xf]
    %v2084 = vld [vmem:[%s4 + $0x90] sm:$0xf]
    %v2085 = vld [vmem:[%s4 + $0x94] sm:$0xf]
    %v2086 = vld [vmem:[%s4 + $0x98] sm:$0xf]
    %v2087 = vld [vmem:[%s4 + $0x9c] sm:$0xf]
    %v2088 = vld [vmem:[%s4 + $0xa0] sm:$0xf]
    %v2089 = vld [vmem:[%s4 + $0xa4] sm:$0xf]
    %v2090 = vld [vmem:[%s4 + $0xa8] sm:$0xf]
    %v2091 = vld [vmem:[%s4 + $0xac] sm:$0xf]
    %v2092 = vld [vmem:[%s4 + $0xb0] sm:$0xf]
    %v2093 = vld [vmem:[%s4 + $0xb4] sm:$0xf]
    %v2094 = vld [vmem:[%s4 + $0xb8] sm:$0xf]
    %v2095 = vld [vmem:[%s4 + $0xbc] sm:$0xf]
    %v2096 = vld [vmem:[%s9] sm:$0xf]
    %v2145 = vunpack.c.l.b16 %v2048
    %v2146 = vunpack.c.l.b16 %v2049
    %v2147 = vunpack.c.l.b16 %v2050
    %v2148 = vunpack.c.l.b16 %v2051
    %v2149 = vunpack.c.l.b16 %v2052
    %v2150 = vunpack.c.l.b16 %v2053
    %v2151 = vunpack.c.l.b16 %v2054
    %v2152 = vunpack.c.l.b16 %v2055
    %v2153 = vunpack.c.l.b16 %v2056
    %v2154 = vunpack.c.l.b16 %v2057
    %v2155 = vunpack.c.l.b16 %v2058
    %v2156 = vunpack.c.l.b16 %v2059
    %v2157 = vunpack.c.l.b16 %v2060
    %v2158 = vunpack.c.l.b16 %v2061
    %v2159 = vunpack.c.l.b16 %v2062
    %v2160 = vunpack.c.l.b16 %v2063
    %v2161 = vunpack.c.l.b16 %v2064
    %v2162 = vunpack.c.l.b16 %v2065
    %v2163 = vunpack.c.l.b16 %v2066
    %v2164 = vunpack.c.l.b16 %v2067
    %v2165 = vunpack.c.l.b16 %v2068
    %v2166 = vunpack.c.l.b16 %v2069
    %v2167 = vunpack.c.l.b16 %v2070
    %v2168 = vunpack.c.l.b16 %v2071
    %v2169 = vunpack.c.l.b16 %v2072
    %v2170 = vunpack.c.l.b16 %v2073
    %v2171 = vunpack.c.l.b16 %v2074
    %v2172 = vunpack.c.l.b16 %v2075
    %v2173 = vunpack.c.l.b16 %v2076
    %v2174 = vunpack.c.l.b16 %v2077
    %v2175 = vunpack.c.l.b16 %v2078
    %v2176 = vunpack.c.l.b16 %v2079
    %v2177 = vunpack.c.l.b16 %v2080
    %v2178 = vunpack.c.l.b16 %v2081
    %v2179 = vunpack.c.l.b16 %v2082
    %v2180 = vunpack.c.l.b16 %v2083
    %v2181 = vunpack.c.l.b16 %v2084
    %v2182 = vunpack.c.l.b16 %v2085
    %v2183 = vunpack.c.l.b16 %v2086
    %v2184 = vunpack.c.l.b16 %v2087
    %v2185 = vunpack.c.l.b16 %v2088
    %v2186 = vunpack.c.l.b16 %v2089
    %v2187 = vunpack.c.l.b16 %v2090
    %v2188 = vunpack.c.l.b16 %v2091
    %v2189 = vunpack.c.l.b16 %v2092
    %v2190 = vunpack.c.l.b16 %v2093
    %v2191 = vunpack.c.l.b16 %v2094
    %v2192 = vunpack.c.l.b16 %v2095
    %v2193 = vpack.c.b16 %v2146, %v2145
    %v2194 = vpack.c.b16 %v2148, %v2147
    %v2195 = vpack.c.b16 %v2150, %v2149
    %v2196 = vpack.c.b16 %v2152, %v2151
    %v2197 = vpack.c.b16 %v2154, %v2153
    %v2198 = vpack.c.b16 %v2156, %v2155
    %v2199 = vpack.c.b16 %v2158, %v2157
    %v2200 = vpack.c.b16 %v2160, %v2159
    %v2201 = vpack.c.b16 %v2162, %v2161
    %v2202 = vpack.c.b16 %v2164, %v2163
    %v2203 = vpack.c.b16 %v2166, %v2165
    %v2204 = vpack.c.b16 %v2168, %v2167
    %v2205 = vpack.c.b16 %v2170, %v2169
    %v2206 = vpack.c.b16 %v2172, %v2171
    %v2207 = vpack.c.b16 %v2174, %v2173
    %v2208 = vpack.c.b16 %v2176, %v2175
    %v2209 = vpack.c.b16 %v2178, %v2177
    %v2210 = vpack.c.b16 %v2180, %v2179
    %v2211 = vpack.c.b16 %v2182, %v2181
    %v2212 = vpack.c.b16 %v2184, %v2183
    %v2213 = vpack.c.b16 %v2186, %v2185
    %v2214 = vpack.c.b16 %v2188, %v2187
    %v2215 = vpack.c.b16 %v2190, %v2189
    %v2216 = vpack.c.b16 %v2192, %v2191
    %v2218 = vsel %vm290, %v2193, 0
    %v2221 = vsel %vm290, %v2194, 0
    %v2224 = vsel %vm290, %v2195, 0
    %v2227 = vsel %vm290, %v2196, 0
    %v2230 = vsel %vm290, %v2197, 0
    %v2233 = vsel %vm290, %v2198, 0
    %v2236 = vsel %vm290, %v2199, 0
    %v2239 = vsel %vm290, %v2200, 0
    %v2242 = vsel %vm290, %v2201, 0
    %v2245 = vsel %vm290, %v2202, 0
    %v2248 = vsel %vm290, %v2203, 0
    %v2251 = vsel %vm290, %v2204, 0
    %v2254 = vsel %vm290, %v2205, 0
    %v2257 = vsel %vm290, %v2206, 0
    %v2260 = vsel %vm290, %v2207, 0
    %v2263 = vsel %vm290, %v2208, 0
    %v2266 = vsel %vm290, %v2209, 0
    %v2269 = vsel %vm290, %v2210, 0
    %v2272 = vsel %vm290, %v2211, 0
    %v2275 = vsel %vm290, %v2212, 0
    %v2278 = vsel %vm290, %v2213, 0
    %v2281 = vsel %vm290, %v2214, 0
    %v2284 = vsel %vm290, %v2215, 0
    %v2287 = vsel %vm290, %v2216, 0
    %v2290 = vsel %vm363, %v2096, 0
    %2292 = vmatprep.subr.bf16.mxu0 0
    %2293 = vmatpush1.bf16.msra.mxu0 0
    %2294 = vmatprep.subr.bf16.mxu0 0
    %2295 = vmatpush1.bf16.msra.mxu0 0
    %2296 = vmatprep.subr.bf16.mxu0 0
    %2297 = vmatpush1.bf16.msra.mxu0 0
    %2298 = vmatprep.subr.bf16.mxu0 0
    %2299 = vmatpush1.bf16.msra.mxu0 0
    %2300 = vmatprep.subr.bf16.mxu0 0
    %2301 = vmatpush1.bf16.msra.mxu0 0
    %2302 = vmatprep.subr.bf16.mxu0 0
    %2303 = vmatpush1.bf16.msra.mxu0 0
    %2304 = vmatprep.subr.bf16.mxu0 0
    %2305 = vmatpush1.bf16.msra.mxu0 0
    %2306 = vmatprep.subr.bf16.mxu0 0
    %2307 = vmatpush1.bf16.msra.mxu0 %v2290
    %2308 = vmatprep.subr.bf16.mxu0 0
    %2309 = vmatpush2.bf16.msra.mxu0 0
    %2310 = vmatprep.subr.bf16.mxu0 0
    %2311 = vmatpush2.bf16.msra.mxu0 0
    %2312 = vmatprep.subr.bf16.mxu0 0
    %2313 = vmatpush2.bf16.msra.mxu0 0
    %2314 = vmatprep.subr.bf16.mxu0 0
    %2315 = vmatpush2.bf16.msra.mxu0 0
    %2316 = vmatprep.subr.bf16.mxu0 0
    %2317 = vmatpush2.bf16.msra.mxu0 0
    %2318 = vmatprep.subr.bf16.mxu0 0
    %2319 = vmatpush2.bf16.msra.mxu0 0
    %2320 = vmatprep.subr.bf16.mxu0 0
    %2321 = vmatpush2.bf16.msra.mxu0 0
    %2322 = vmatprep.subr.bf16.mxu0 0
    %2323 = vmatpush2.bf16.msra.mxu0 0
    %2324 = vmatprep.mubr.bf16.mxu0 0
    %2325 = vmatmul.mubr.bf16.gmra.mxu0 %v2218
    %v2326 = vpop.f32.mrf.mxu0
    %v2327 = vadd.f32 0.0, %v2326
    %v2328 = vpop.f32.mrf.mxu0
    %v2329 = vpop.f32.mrf.mxu0
    %v2330 = vadd.f32 0.0, %v2329
    %v2331 = vpop.f32.mrf.mxu0
    %2332 = vmatprep.mubr.bf16.mxu0 0
    %2333 = vmatmul.mubr.bf16.gmra.mxu0 %v2221
    %v2334 = vpop.f32.mrf.mxu0
    %v2335 = vadd.f32 0.0, %v2334
    %v2336 = vpop.f32.mrf.mxu0
    %v2337 = vpop.f32.mrf.mxu0
    %v2338 = vadd.f32 0.0, %v2337
    %v2339 = vpop.f32.mrf.mxu0
    %2340 = vmatprep.mubr.bf16.mxu0 0
    %2341 = vmatmul.mubr.bf16.gmra.mxu0 %v2224
    %v2342 = vpop.f32.mrf.mxu0
    %v2343 = vadd.f32 0.0, %v2342
    %v2344 = vpop.f32.mrf.mxu0
    %v2345 = vpop.f32.mrf.mxu0
    %v2346 = vadd.f32 0.0, %v2345
    %v2347 = vpop.f32.mrf.mxu0
    %2348 = vmatprep.mubr.bf16.mxu0 0
    %2349 = vmatmul.mubr.bf16.gmra.mxu0 %v2227
    %v2350 = vpop.f32.mrf.mxu0
    %v2351 = vadd.f32 0.0, %v2350
    %v2352 = vpop.f32.mrf.mxu0
    %v2353 = vpop.f32.mrf.mxu0
    %v2354 = vadd.f32 0.0, %v2353
    %v2355 = vpop.f32.mrf.mxu0
    %2356 = vmatprep.mubr.bf16.mxu0 0
    %2357 = vmatmul.mubr.bf16.gmra.mxu0 %v2230
    %v2358 = vpop.f32.mrf.mxu0
    %v2359 = vadd.f32 0.0, %v2358
    %v2360 = vpop.f32.mrf.mxu0
    %v2361 = vpop.f32.mrf.mxu0
    %v2362 = vadd.f32 0.0, %v2361
    %v2363 = vpop.f32.mrf.mxu0
    %2364 = vmatprep.mubr.bf16.mxu0 0
    %2365 = vmatmul.mubr.bf16.gmra.mxu0 %v2233
    %v2366 = vpop.f32.mrf.mxu0
    %v2367 = vadd.f32 0.0, %v2366
    %v2368 = vpop.f32.mrf.mxu0
    %v2369 = vpop.f32.mrf.mxu0
    %v2370 = vadd.f32 0.0, %v2369
    %v2371 = vpop.f32.mrf.mxu0
    %2372 = vmatprep.mubr.bf16.mxu0 0
    %2373 = vmatmul.mubr.bf16.gmra.mxu0 %v2236
    %v2374 = vpop.f32.mrf.mxu0
    %v2375 = vadd.f32 0.0, %v2374
    %v2376 = vpop.f32.mrf.mxu0
    %v2377 = vpop.f32.mrf.mxu0
    %v2378 = vadd.f32 0.0, %v2377
    %v2379 = vpop.f32.mrf.mxu0
    %2380 = vmatprep.mubr.bf16.mxu0 0
    %2381 = vmatmul.mubr.bf16.gmra.mxu0 %v2239
    %v2382 = vpop.f32.mrf.mxu0
    %v2383 = vadd.f32 0.0, %v2382
    %v2384 = vpop.f32.mrf.mxu0
    %v2385 = vpop.f32.mrf.mxu0
    %v2386 = vadd.f32 0.0, %v2385
    %v2387 = vpop.f32.mrf.mxu0
    %2388 = vmatprep.mubr.bf16.mxu0 0
    %2389 = vmatmul.mubr.bf16.gmra.mxu0 %v2242
    %v2390 = vpop.f32.mrf.mxu0
    %v2391 = vadd.f32 0.0, %v2390
    %v2392 = vpop.f32.mrf.mxu0
    %v2393 = vpop.f32.mrf.mxu0
    %v2394 = vadd.f32 0.0, %v2393
    %v2395 = vpop.f32.mrf.mxu0
    %2396 = vmatprep.mubr.bf16.mxu0 0
    %2397 = vmatmul.mubr.bf16.gmra.mxu0 %v2245
    %v2398 = vpop.f32.mrf.mxu0
    %v2399 = vadd.f32 0.0, %v2398
    %v2400 = vpop.f32.mrf.mxu0
    %v2401 = vpop.f32.mrf.mxu0
    %v2402 = vadd.f32 0.0, %v2401
    %v2403 = vpop.f32.mrf.mxu0
    %2404 = vmatprep.mubr.bf16.mxu0 0
    %2405 = vmatmul.mubr.bf16.gmra.mxu0 %v2248
    %v2406 = vpop.f32.mrf.mxu0
    %v2407 = vadd.f32 0.0, %v2406
    %v2408 = vpop.f32.mrf.mxu0
    %v2409 = vpop.f32.mrf.mxu0
    %v2410 = vadd.f32 0.0, %v2409
    %v2411 = vpop.f32.mrf.mxu0
    %2412 = vmatprep.mubr.bf16.mxu0 0
    %2413 = vmatmul.mubr.bf16.gmra.mxu0 %v2251
    %v2414 = vpop.f32.mrf.mxu0
    %v2415 = vadd.f32 0.0, %v2414
    %v2416 = vpop.f32.mrf.mxu0
    %v2417 = vpop.f32.mrf.mxu0
    %v2418 = vadd.f32 0.0, %v2417
    %v2419 = vpop.f32.mrf.mxu0
    %2420 = vmatprep.mubr.bf16.mxu0 0
    %2421 = vmatmul.mubr.bf16.gmra.mxu0 %v2254
    %v2422 = vpop.f32.mrf.mxu0
    %v2423 = vadd.f32 0.0, %v2422
    %v2424 = vpop.f32.mrf.mxu0
    %v2425 = vpop.f32.mrf.mxu0
    %v2426 = vadd.f32 0.0, %v2425
    %v2427 = vpop.f32.mrf.mxu0
    %2428 = vmatprep.mubr.bf16.mxu0 0
    %2429 = vmatmul.mubr.bf16.gmra.mxu0 %v2257
    %v2430 = vpop.f32.mrf.mxu0
    %v2431 = vadd.f32 0.0, %v2430
    %v2432 = vpop.f32.mrf.mxu0
    %v2433 = vpop.f32.mrf.mxu0
    %v2434 = vadd.f32 0.0, %v2433
    %v2435 = vpop.f32.mrf.mxu0
    %2436 = vmatprep.mubr.bf16.mxu0 0
    %2437 = vmatmul.mubr.bf16.gmra.mxu0 %v2260
    %v2438 = vpop.f32.mrf.mxu0
    %v2439 = vadd.f32 0.0, %v2438
    %v2440 = vpop.f32.mrf.mxu0
    %v2441 = vpop.f32.mrf.mxu0
    %v2442 = vadd.f32 0.0, %v2441
    %v2443 = vpop.f32.mrf.mxu0
    %2444 = vmatprep.mubr.bf16.mxu0 0
    %2445 = vmatmul.mubr.bf16.gmra.mxu0 %v2263
    %v2446 = vpop.f32.mrf.mxu0
    %v2447 = vadd.f32 0.0, %v2446
    %v2448 = vpop.f32.mrf.mxu0
    %v2449 = vpop.f32.mrf.mxu0
    %v2450 = vadd.f32 0.0, %v2449
    %v2451 = vpop.f32.mrf.mxu0
    %2452 = vmatprep.mubr.bf16.mxu0 0
    %2453 = vmatmul.mubr.bf16.gmra.mxu0 %v2266
    %v2454 = vpop.f32.mrf.mxu0
    %v2455 = vadd.f32 0.0, %v2454
    %v2456 = vpop.f32.mrf.mxu0
    %v2457 = vpop.f32.mrf.mxu0
    %v2458 = vadd.f32 0.0, %v2457
    %v2459 = vpop.f32.mrf.mxu0
    %2460 = vmatprep.mubr.bf16.mxu0 0
    %2461 = vmatmul.mubr.bf16.gmra.mxu0 %v2269
    %v2462 = vpop.f32.mrf.mxu0
    %v2463 = vadd.f32 0.0, %v2462
    %v2464 = vpop.f32.mrf.mxu0
    %v2465 = vpop.f32.mrf.mxu0
    %v2466 = vadd.f32 0.0, %v2465
    %v2467 = vpop.f32.mrf.mxu0
    %2468 = vmatprep.mubr.bf16.mxu0 0
    %2469 = vmatmul.mubr.bf16.gmra.mxu0 %v2272
    %v2470 = vpop.f32.mrf.mxu0
    %v2471 = vadd.f32 0.0, %v2470
    %v2472 = vpop.f32.mrf.mxu0
    %v2473 = vpop.f32.mrf.mxu0
    %v2474 = vadd.f32 0.0, %v2473
    %v2475 = vpop.f32.mrf.mxu0
    %2476 = vmatprep.mubr.bf16.mxu0 0
    %2477 = vmatmul.mubr.bf16.gmra.mxu0 %v2275
    %v2478 = vpop.f32.mrf.mxu0
    %v2479 = vadd.f32 0.0, %v2478
    %v2480 = vpop.f32.mrf.mxu0
    %v2481 = vpop.f32.mrf.mxu0
    %v2482 = vadd.f32 0.0, %v2481
    %v2483 = vpop.f32.mrf.mxu0
    %2484 = vmatprep.mubr.bf16.mxu0 0
    %2485 = vmatmul.mubr.bf16.gmra.mxu0 %v2278
    %v2486 = vpop.f32.mrf.mxu0
    %v2487 = vadd.f32 0.0, %v2486
    %v2488 = vpop.f32.mrf.mxu0
    %v2489 = vpop.f32.mrf.mxu0
    %v2490 = vadd.f32 0.0, %v2489
    %v2491 = vpop.f32.mrf.mxu0
    %2492 = vmatprep.mubr.bf16.mxu0 0
    %2493 = vmatmul.mubr.bf16.gmra.mxu0 %v2281
    %v2494 = vpop.f32.mrf.mxu0
    %v2495 = vadd.f32 0.0, %v2494
    %v2496 = vpop.f32.mrf.mxu0
    %v2497 = vpop.f32.mrf.mxu0
    %v2498 = vadd.f32 0.0, %v2497
    %v2499 = vpop.f32.mrf.mxu0
    %2500 = vmatprep.mubr.bf16.mxu0 0
    %2501 = vmatmul.mubr.bf16.gmra.mxu0 %v2284
    %v2502 = vpop.f32.mrf.mxu0
    %v2503 = vadd.f32 0.0, %v2502
    %v2504 = vpop.f32.mrf.mxu0
    %v2505 = vpop.f32.mrf.mxu0
    %v2506 = vadd.f32 0.0, %v2505
    %v2507 = vpop.f32.mrf.mxu0
    %2508 = vmatprep.mubr.bf16.mxu0 0
    %2509 = vmatmul.mubr.bf16.gmra.mxu0 %v2287
    %v2510 = vpop.f32.mrf.mxu0
    %v2511 = vadd.f32 0.0, %v2510
    %v2512 = vpop.f32.mrf.mxu0
    %v2513 = vpop.f32.mrf.mxu0
    %v2514 = vadd.f32 0.0, %v2513
    %v2515 = vpop.f32.mrf.mxu0
    %2516 = vdwg.mxu0
    %v2517 = vadd.f32 %v2000, %v2327
    %v2518 = vadd.f32 %v2001, %v2330
    %v2519 = vadd.f32 %v2002, %v2335
    %v2520 = vadd.f32 %v2003, %v2338
    %v2521 = vadd.f32 %v2004, %v2343
    %v2522 = vadd.f32 %v2005, %v2346
    %v2523 = vadd.f32 %v2006, %v2351
    %v2524 = vadd.f32 %v2007, %v2354
    %v2525 = vadd.f32 %v2008, %v2359
    %v2526 = vadd.f32 %v2009, %v2362
    %v2527 = vadd.f32 %v2010, %v2367
    %v2528 = vadd.f32 %v2011, %v2370
    %v2529 = vadd.f32 %v2012, %v2375
    %v2530 = vadd.f32 %v2013, %v2378
    %v2531 = vadd.f32 %v2014, %v2383
    %v2532 = vadd.f32 %v2015, %v2386
    %v2533 = vadd.f32 %v2016, %v2391
    %v2534 = vadd.f32 %v2017, %v2394
    %v2535 = vadd.f32 %v2018, %v2399
    %v2536 = vadd.f32 %v2019, %v2402
    %v2537 = vadd.f32 %v2020, %v2407
    %v2538 = vadd.f32 %v2021, %v2410
    %v2539 = vadd.f32 %v2022, %v2415
    %v2540 = vadd.f32 %v2023, %v2418
    %v2541 = vadd.f32 %v2024, %v2423
    %v2542 = vadd.f32 %v2025, %v2426
    %v2543 = vadd.f32 %v2026, %v2431
    %v2544 = vadd.f32 %v2027, %v2434
    %v2545 = vadd.f32 %v2028, %v2439
    %v2546 = vadd.f32 %v2029, %v2442
    %v2547 = vadd.f32 %v2030, %v2447
    %v2548 = vadd.f32 %v2031, %v2450
    %v2549 = vadd.f32 %v2032, %v2455
    %v2550 = vadd.f32 %v2033, %v2458
    %v2551 = vadd.f32 %v2034, %v2463
    %v2552 = vadd.f32 %v2035, %v2466
    %v2553 = vadd.f32 %v2036, %v2471
    %v2554 = vadd.f32 %v2037, %v2474
    %v2555 = vadd.f32 %v2038, %v2479
    %v2556 = vadd.f32 %v2039, %v2482
    %v2557 = vadd.f32 %v2040, %v2487
    %v2558 = vadd.f32 %v2041, %v2490
    %v2559 = vadd.f32 %v2042, %v2495
    %v2560 = vadd.f32 %v2043, %v2498
    %v2561 = vadd.f32 %v2044, %v2503
    %v2562 = vadd.f32 %v2045, %v2506
    %v2563 = vadd.f32 %v2046, %v2511
    %v2564 = vadd.f32 %v2047, %v2514
    %v2565 = vld [vmem:[%s10] sm:$0x1]
    %v2567 = vlaneseq
    %v2568 = vshrl.u32 %v2567, 7
    %v2569 = vsub.s32 0, %v2568
    %v2570 = vrot.slane %v2565, %v2569
    %v2572 = vadd.f32 %v2517, %v2570
    %v2573 = vadd.f32 %v2518, %v2570
    %v2574 = vadd.f32 %v2519, %v2570
    %v2575 = vadd.f32 %v2520, %v2570
    %v2576 = vadd.f32 %v2521, %v2570
    %v2577 = vadd.f32 %v2522, %v2570
    %v2578 = vadd.f32 %v2523, %v2570
    %v2579 = vadd.f32 %v2524, %v2570
    %v2580 = vadd.f32 %v2525, %v2570
    %v2581 = vadd.f32 %v2526, %v2570
    %v2582 = vadd.f32 %v2527, %v2570
    %v2583 = vadd.f32 %v2528, %v2570
    %v2584 = vadd.f32 %v2529, %v2570
    %v2585 = vadd.f32 %v2530, %v2570
    %v2586 = vadd.f32 %v2531, %v2570
    %v2587 = vadd.f32 %v2532, %v2570
    %v2588 = vadd.f32 %v2533, %v2570
    %v2589 = vadd.f32 %v2534, %v2570
    %v2590 = vadd.f32 %v2535, %v2570
    %v2591 = vadd.f32 %v2536, %v2570
    %v2592 = vadd.f32 %v2537, %v2570
    %v2593 = vadd.f32 %v2538, %v2570
    %v2594 = vadd.f32 %v2539, %v2570
    %v2595 = vadd.f32 %v2540, %v2570
    %v2596 = vadd.f32 %v2541, %v2570
    %v2597 = vadd.f32 %v2542, %v2570
    %v2598 = vadd.f32 %v2543, %v2570
    %v2599 = vadd.f32 %v2544, %v2570
    %v2600 = vadd.f32 %v2545, %v2570
    %v2601 = vadd.f32 %v2546, %v2570
    %v2602 = vadd.f32 %v2547, %v2570
    %v2603 = vadd.f32 %v2548, %v2570
    %v2604 = vadd.f32 %v2549, %v2570
    %v2605 = vadd.f32 %v2550, %v2570
    %v2606 = vadd.f32 %v2551, %v2570
    %v2607 = vadd.f32 %v2552, %v2570
    %v2608 = vadd.f32 %v2553, %v2570
    %v2609 = vadd.f32 %v2554, %v2570
    %v2610 = vadd.f32 %v2555, %v2570
    %v2611 = vadd.f32 %v2556, %v2570
    %v2612 = vadd.f32 %v2557, %v2570
    %v2613 = vadd.f32 %v2558, %v2570
    %v2614 = vadd.f32 %v2559, %v2570
    %v2615 = vadd.f32 %v2560, %v2570
    %v2616 = vadd.f32 %v2561, %v2570
    %v2617 = vadd.f32 %v2562, %v2570
    %v2618 = vadd.f32 %v2563, %v2570
    %v2619 = vadd.f32 %v2564, %v2570
    %v2620 = vmax.f32 %v2572, 0.0
    %v2621 = vmax.f32 %v2573, 0.0
    %v2622 = vmax.f32 %v2574, 0.0
    %v2623 = vmax.f32 %v2575, 0.0
    %v2624 = vmax.f32 %v2576, 0.0
    %v2625 = vmax.f32 %v2577, 0.0
    %v2626 = vmax.f32 %v2578, 0.0
    %v2627 = vmax.f32 %v2579, 0.0
    %v2628 = vmax.f32 %v2580, 0.0
    %v2629 = vmax.f32 %v2581, 0.0
    %v2630 = vmax.f32 %v2582, 0.0
    %v2631 = vmax.f32 %v2583, 0.0
    %v2632 = vmax.f32 %v2584, 0.0
    %v2633 = vmax.f32 %v2585, 0.0
    %v2634 = vmax.f32 %v2586, 0.0
    %v2635 = vmax.f32 %v2587, 0.0
    %v2636 = vmax.f32 %v2588, 0.0
    %v2637 = vmax.f32 %v2589, 0.0
    %v2638 = vmax.f32 %v2590, 0.0
    %v2639 = vmax.f32 %v2591, 0.0
    %v2640 = vmax.f32 %v2592, 0.0
    %v2641 = vmax.f32 %v2593, 0.0
    %v2642 = vmax.f32 %v2594, 0.0
    %v2643 = vmax.f32 %v2595, 0.0
    %v2644 = vmax.f32 %v2596, 0.0
    %v2645 = vmax.f32 %v2597, 0.0
    %v2646 = vmax.f32 %v2598, 0.0
    %v2647 = vmax.f32 %v2599, 0.0
    %v2648 = vmax.f32 %v2600, 0.0
    %v2649 = vmax.f32 %v2601, 0.0
    %v2650 = vmax.f32 %v2602, 0.0
    %v2651 = vmax.f32 %v2603, 0.0
    %v2652 = vmax.f32 %v2604, 0.0
    %v2653 = vmax.f32 %v2605, 0.0
    %v2654 = vmax.f32 %v2606, 0.0
    %v2655 = vmax.f32 %v2607, 0.0
    %v2656 = vmax.f32 %v2608, 0.0
    %v2657 = vmax.f32 %v2609, 0.0
    %v2658 = vmax.f32 %v2610, 0.0
    %v2659 = vmax.f32 %v2611, 0.0
    %v2660 = vmax.f32 %v2612, 0.0
    %v2661 = vmax.f32 %v2613, 0.0
    %v2662 = vmax.f32 %v2614, 0.0
    %v2663 = vmax.f32 %v2615, 0.0
    %v2664 = vmax.f32 %v2616, 0.0
    %v2665 = vmax.f32 %v2617, 0.0
    %v2666 = vmax.f32 %v2618, 0.0
    %v2667 = vmax.f32 %v2619, 0.0
    %v2668 = vld [vmem:[%s11] sm:$0xf]
    %v2669 = vld [vmem:[%s11 + $0x4] sm:$0xf]
    %v2670 = vld [vmem:[%s11 + $0x8] sm:$0xf]
    %v2671 = vld [vmem:[%s11 + $0xc] sm:$0xf]
    %v2672 = vld [vmem:[%s11 + $0x10] sm:$0xf]
    %v2673 = vld [vmem:[%s11 + $0x14] sm:$0xf]
    %v2674 = vld [vmem:[%s11 + $0x18] sm:$0xf]
    %v2675 = vld [vmem:[%s11 + $0x1c] sm:$0xf]
    %v2676 = vld [vmem:[%s11 + $0x20] sm:$0xf]
    %v2677 = vld [vmem:[%s11 + $0x24] sm:$0xf]
    %v2678 = vld [vmem:[%s11 + $0x28] sm:$0xf]
    %v2679 = vld [vmem:[%s11 + $0x2c] sm:$0xf]
    %v2680 = vld [vmem:[%s11 + $0x30] sm:$0x3]
    %v2681 = vpack.c.bf16 %v2621, %v2620
    %v2682 = vpack.c.bf16 %v2623, %v2622
    %v2683 = vpack.c.bf16 %v2625, %v2624
    %v2684 = vpack.c.bf16 %v2627, %v2626
    %v2685 = vpack.c.bf16 %v2629, %v2628
    %v2686 = vpack.c.bf16 %v2631, %v2630
    %v2687 = vpack.c.bf16 %v2633, %v2632
    %v2688 = vpack.c.bf16 %v2635, %v2634
    %v2689 = vpack.c.bf16 %v2637, %v2636
    %v2690 = vpack.c.bf16 %v2639, %v2638
    %v2691 = vpack.c.bf16 %v2641, %v2640
    %v2692 = vpack.c.bf16 %v2643, %v2642
    %v2693 = vpack.c.bf16 %v2645, %v2644
    %v2694 = vpack.c.bf16 %v2647, %v2646
    %v2695 = vpack.c.bf16 %v2649, %v2648
    %v2696 = vpack.c.bf16 %v2651, %v2650
    %v2697 = vpack.c.bf16 %v2653, %v2652
    %v2698 = vpack.c.bf16 %v2655, %v2654
    %v2699 = vpack.c.bf16 %v2657, %v2656
    %v2700 = vpack.c.bf16 %v2659, %v2658
    %v2701 = vpack.c.bf16 %v2661, %v2660
    %v2702 = vpack.c.bf16 %v2663, %v2662
    %v2703 = vpack.c.bf16 %v2665, %v2664
    %v2704 = vpack.c.bf16 %v2667, %v2666
    %v2705 = vld [vmem:[%s12] sm:$0x1]
    %v2707 = vlaneseq
    %v2708 = vshrl.u32 %v2707, 7
    %v2709 = vsub.s32 0, %v2708
    %v2710 = vrot.slane %v2705, %v2709
    %v2725 = vunpack.c.l.b16 %v2668
    %v2726 = vunpack.c.l.b16 %v2669
    %v2727 = vunpack.c.l.b16 %v2670
    %v2728 = vunpack.c.l.b16 %v2671
    %v2729 = vunpack.c.l.b16 %v2672
    %v2730 = vunpack.c.l.b16 %v2673
    %v2731 = vunpack.c.l.b16 %v2674
    %v2732 = vunpack.c.l.b16 %v2675
    %v2733 = vunpack.c.l.b16 %v2676
    %v2734 = vunpack.c.l.b16 %v2677
    %v2735 = vunpack.c.l.b16 %v2678
    %v2736 = vunpack.c.l.b16 %v2679
    %v2737 = vunpack.c.l.b16 %v2680
    %v2738 = vpack.c.b16 %v2726, %v2725
    %v2739 = vpack.c.b16 %v2728, %v2727
    %v2740 = vpack.c.b16 %v2730, %v2729
    %v2741 = vpack.c.b16 %v2732, %v2731
    %v2742 = vpack.c.b16 %v2734, %v2733
    %v2743 = vpack.c.b16 %v2736, %v2735
    %v2744 = vpack.c.b16 %v2737, %v2737
    %vm2751 = vcmask 818176
    %v2753 = vsel %vm2751, %v2681, 0
    %v2756 = vsel %vm2751, %v2682, 0
    %v2759 = vsel %vm2751, %v2683, 0
    %v2762 = vsel %vm2751, %v2684, 0
    %v2765 = vsel %vm2751, %v2685, 0
    %v2768 = vsel %vm2751, %v2686, 0
    %v2771 = vsel %vm2751, %v2687, 0
    %v2774 = vsel %vm2751, %v2688, 0
    %v2777 = vsel %vm2751, %v2689, 0
    %v2780 = vsel %vm2751, %v2690, 0
    %v2783 = vsel %vm2751, %v2691, 0
    %v2786 = vsel %vm2751, %v2692, 0
    %v2789 = vsel %vm2751, %v2693, 0
    %v2792 = vsel %vm2751, %v2694, 0
    %v2795 = vsel %vm2751, %v2695, 0
    %v2798 = vsel %vm2751, %v2696, 0
    %v2801 = vsel %vm2751, %v2697, 0
    %v2804 = vsel %vm2751, %v2698, 0
    %v2807 = vsel %vm2751, %v2699, 0
    %v2810 = vsel %vm2751, %v2700, 0
    %v2813 = vsel %vm2751, %v2701, 0
    %v2816 = vsel %vm2751, %v2702, 0
    %v2819 = vsel %vm2751, %v2703, 0
    %v2822 = vsel %vm2751, %v2704, 0
    %v2825 = vsel %vm785, %v2744, 0
    %2827 = vmatprep.subr.bf16.mxu0 0
    %2828 = vmatpush1.bf16.msra.mxu0 0
    %2829 = vmatprep.subr.bf16.mxu0 0
    %2830 = vmatpush1.bf16.msra.mxu0 %v2825
    %2831 = vmatprep.subr.bf16.mxu0 0
    %2832 = vmatpush1.bf16.msra.mxu0 %v2743
    %2833 = vmatprep.subr.bf16.mxu0 0
    %2834 = vmatpush1.bf16.msra.mxu0 %v2742
    %2835 = vmatprep.subr.bf16.mxu0 0
    %2836 = vmatpush1.bf16.msra.mxu0 %v2741
    %2837 = vmatprep.subr.bf16.mxu0 0
    %2838 = vmatpush1.bf16.msra.mxu0 %v2740
    %2839 = vmatprep.subr.bf16.mxu0 0
    %2840 = vmatpush1.bf16.msra.mxu0 %v2739
    %2841 = vmatprep.subr.bf16.mxu0 0
    %2842 = vmatpush1.bf16.msra.mxu0 %v2738
    %2843 = vmatprep.subr.bf16.mxu0 0
    %2844 = vmatpush2.bf16.msra.mxu0 0
    %2845 = vmatprep.subr.bf16.mxu0 0
    %2846 = vmatpush2.bf16.msra.mxu0 0
    %2847 = vmatprep.subr.bf16.mxu0 0
    %2848 = vmatpush2.bf16.msra.mxu0 0
    %2849 = vmatprep.subr.bf16.mxu0 0
    %2850 = vmatpush2.bf16.msra.mxu0 0
    %2851 = vmatprep.subr.bf16.mxu0 0
    %2852 = vmatpush2.bf16.msra.mxu0 0
    %2853 = vmatprep.subr.bf16.mxu0 0
    %2854 = vmatpush2.bf16.msra.mxu0 0
    %2855 = vmatprep.subr.bf16.mxu0 0
    %2856 = vmatpush2.bf16.msra.mxu0 0
    %2857 = vmatprep.subr.bf16.mxu0 0
    %2858 = vmatpush2.bf16.msra.mxu0 0
    %2859 = vmatprep.mubr.bf16.mxu0 0
    %2860 = vmatmul.mubr.bf16.gmra.mxu0 %v2753
    %v2861 = vpop.f32.mrf.mxu0
    %v2862 = vadd.f32 %v2710, %v2861
    %v2863 = vpop.f32.mrf.mxu0
    %v2864 = vpop.f32.mrf.mxu0
    %v2865 = vadd.f32 %v2710, %v2864
    %v2866 = vpop.f32.mrf.mxu0
    %2867 = vmatprep.mubr.bf16.mxu0 0
    %2868 = vmatmul.mubr.bf16.gmra.mxu0 %v2756
    %v2869 = vpop.f32.mrf.mxu0
    %v2870 = vadd.f32 %v2710, %v2869
    %v2871 = vpop.f32.mrf.mxu0
    %v2872 = vpop.f32.mrf.mxu0
    %v2873 = vadd.f32 %v2710, %v2872
    %v2874 = vpop.f32.mrf.mxu0
    %2875 = vmatprep.mubr.bf16.mxu0 0
    %2876 = vmatmul.mubr.bf16.gmra.mxu0 %v2759
    %v2877 = vpop.f32.mrf.mxu0
    %v2878 = vadd.f32 %v2710, %v2877
    %v2879 = vpop.f32.mrf.mxu0
    %v2880 = vpop.f32.mrf.mxu0
    %v2881 = vadd.f32 %v2710, %v2880
    %v2882 = vpop.f32.mrf.mxu0
    %2883 = vmatprep.mubr.bf16.mxu0 0
    %2884 = vmatmul.mubr.bf16.gmra.mxu0 %v2762
    %v2885 = vpop.f32.mrf.mxu0
    %v2886 = vadd.f32 %v2710, %v2885
    %v2887 = vpop.f32.mrf.mxu0
    %v2888 = vpop.f32.mrf.mxu0
    %v2889 = vadd.f32 %v2710, %v2888
    %v2890 = vpop.f32.mrf.mxu0
    %2891 = vmatprep.mubr.bf16.mxu0 0
    %2892 = vmatmul.mubr.bf16.gmra.mxu0 %v2765
    %v2893 = vpop.f32.mrf.mxu0
    %v2894 = vadd.f32 %v2710, %v2893
    %v2895 = vpop.f32.mrf.mxu0
    %v2896 = vpop.f32.mrf.mxu0
    %v2897 = vadd.f32 %v2710, %v2896
    %v2898 = vpop.f32.mrf.mxu0
    %2899 = vmatprep.mubr.bf16.mxu0 0
    %2900 = vmatmul.mubr.bf16.gmra.mxu0 %v2768
    %v2901 = vpop.f32.mrf.mxu0
    %v2902 = vadd.f32 %v2710, %v2901
    %v2903 = vpop.f32.mrf.mxu0
    %v2904 = vpop.f32.mrf.mxu0
    %v2905 = vadd.f32 %v2710, %v2904
    %v2906 = vpop.f32.mrf.mxu0
    %2907 = vmatprep.mubr.bf16.mxu0 0
    %2908 = vmatmul.mubr.bf16.gmra.mxu0 %v2771
    %v2909 = vpop.f32.mrf.mxu0
    %v2910 = vadd.f32 %v2710, %v2909
    %v2911 = vpop.f32.mrf.mxu0
    %v2912 = vpop.f32.mrf.mxu0
    %v2913 = vadd.f32 %v2710, %v2912
    %v2914 = vpop.f32.mrf.mxu0
    %2915 = vmatprep.mubr.bf16.mxu0 0
    %2916 = vmatmul.mubr.bf16.gmra.mxu0 %v2774
    %v2917 = vpop.f32.mrf.mxu0
    %v2918 = vadd.f32 %v2710, %v2917
    %v2919 = vpop.f32.mrf.mxu0
    %v2920 = vpop.f32.mrf.mxu0
    %v2921 = vadd.f32 %v2710, %v2920
    %v2922 = vpop.f32.mrf.mxu0
    %2923 = vmatprep.mubr.bf16.mxu0 0
    %2924 = vmatmul.mubr.bf16.gmra.mxu0 %v2777
    %v2925 = vpop.f32.mrf.mxu0
    %v2926 = vadd.f32 %v2710, %v2925
    %v2927 = vpop.f32.mrf.mxu0
    %v2928 = vpop.f32.mrf.mxu0
    %v2929 = vadd.f32 %v2710, %v2928
    %v2930 = vpop.f32.mrf.mxu0
    %2931 = vmatprep.mubr.bf16.mxu0 0
    %2932 = vmatmul.mubr.bf16.gmra.mxu0 %v2780
    %v2933 = vpop.f32.mrf.mxu0
    %v2934 = vadd.f32 %v2710, %v2933
    %v2935 = vpop.f32.mrf.mxu0
    %v2936 = vpop.f32.mrf.mxu0
    %v2937 = vadd.f32 %v2710, %v2936
    %v2938 = vpop.f32.mrf.mxu0
    %2939 = vmatprep.mubr.bf16.mxu0 0
    %2940 = vmatmul.mubr.bf16.gmra.mxu0 %v2783
    %v2941 = vpop.f32.mrf.mxu0
    %v2942 = vadd.f32 %v2710, %v2941
    %v2943 = vpop.f32.mrf.mxu0
    %v2944 = vpop.f32.mrf.mxu0
    %v2945 = vadd.f32 %v2710, %v2944
    %v2946 = vpop.f32.mrf.mxu0
    %2947 = vmatprep.mubr.bf16.mxu0 0
    %2948 = vmatmul.mubr.bf16.gmra.mxu0 %v2786
    %v2949 = vpop.f32.mrf.mxu0
    %v2950 = vadd.f32 %v2710, %v2949
    %v2951 = vpop.f32.mrf.mxu0
    %v2952 = vpop.f32.mrf.mxu0
    %v2953 = vadd.f32 %v2710, %v2952
    %v2954 = vpop.f32.mrf.mxu0
    %2955 = vmatprep.mubr.bf16.mxu0 0
    %2956 = vmatmul.mubr.bf16.gmra.mxu0 %v2789
    %v2957 = vpop.f32.mrf.mxu0
    %v2958 = vadd.f32 %v2710, %v2957
    %v2959 = vpop.f32.mrf.mxu0
    %v2960 = vpop.f32.mrf.mxu0
    %v2961 = vadd.f32 %v2710, %v2960
    %v2962 = vpop.f32.mrf.mxu0
    %2963 = vmatprep.mubr.bf16.mxu0 0
    %2964 = vmatmul.mubr.bf16.gmra.mxu0 %v2792
    %v2965 = vpop.f32.mrf.mxu0
    %v2966 = vadd.f32 %v2710, %v2965
    %v2967 = vpop.f32.mrf.mxu0
    %v2968 = vpop.f32.mrf.mxu0
    %v2969 = vadd.f32 %v2710, %v2968
    %v2970 = vpop.f32.mrf.mxu0
    %2971 = vmatprep.mubr.bf16.mxu0 0
    %2972 = vmatmul.mubr.bf16.gmra.mxu0 %v2795
    %v2973 = vpop.f32.mrf.mxu0
    %v2974 = vadd.f32 %v2710, %v2973
    %v2975 = vpop.f32.mrf.mxu0
    %v2976 = vpop.f32.mrf.mxu0
    %v2977 = vadd.f32 %v2710, %v2976
    %v2978 = vpop.f32.mrf.mxu0
    %2979 = vmatprep.mubr.bf16.mxu0 0
    %2980 = vmatmul.mubr.bf16.gmra.mxu0 %v2798
    %v2981 = vpop.f32.mrf.mxu0
    %v2982 = vadd.f32 %v2710, %v2981
    %v2983 = vpop.f32.mrf.mxu0
    %v2984 = vpop.f32.mrf.mxu0
    %v2985 = vadd.f32 %v2710, %v2984
    %v2986 = vpop.f32.mrf.mxu0
    %2987 = vmatprep.mubr.bf16.mxu0 0
    %2988 = vmatmul.mubr.bf16.gmra.mxu0 %v2801
    %v2989 = vpop.f32.mrf.mxu0
    %v2990 = vadd.f32 %v2710, %v2989
    %v2991 = vpop.f32.mrf.mxu0
    %v2992 = vpop.f32.mrf.mxu0
    %v2993 = vadd.f32 %v2710, %v2992
    %v2994 = vpop.f32.mrf.mxu0
    %2995 = vmatprep.mubr.bf16.mxu0 0
    %2996 = vmatmul.mubr.bf16.gmra.mxu0 %v2804
    %v2997 = vpop.f32.mrf.mxu0
    %v2998 = vadd.f32 %v2710, %v2997
    %v2999 = vpop.f32.mrf.mxu0
    %v3000 = vpop.f32.mrf.mxu0
    %v3001 = vadd.f32 %v2710, %v3000
    %v3002 = vpop.f32.mrf.mxu0
    %3003 = vmatprep.mubr.bf16.mxu0 0
    %3004 = vmatmul.mubr.bf16.gmra.mxu0 %v2807
    %v3005 = vpop.f32.mrf.mxu0
    %v3006 = vadd.f32 %v2710, %v3005
    %v3007 = vpop.f32.mrf.mxu0
    %v3008 = vpop.f32.mrf.mxu0
    %v3009 = vadd.f32 %v2710, %v3008
    %v3010 = vpop.f32.mrf.mxu0
    %3011 = vmatprep.mubr.bf16.mxu0 0
    %3012 = vmatmul.mubr.bf16.gmra.mxu0 %v2810
    %v3013 = vpop.f32.mrf.mxu0
    %v3014 = vadd.f32 %v2710, %v3013
    %v3015 = vpop.f32.mrf.mxu0
    %v3016 = vpop.f32.mrf.mxu0
    %v3017 = vadd.f32 %v2710, %v3016
    %v3018 = vpop.f32.mrf.mxu0
    %3019 = vmatprep.mubr.bf16.mxu0 0
    %3020 = vmatmul.mubr.bf16.gmra.mxu0 %v2813
    %v3021 = vpop.f32.mrf.mxu0
    %v3022 = vadd.f32 %v2710, %v3021
    %v3023 = vpop.f32.mrf.mxu0
    %v3024 = vpop.f32.mrf.mxu0
    %v3025 = vadd.f32 %v2710, %v3024
    %v3026 = vpop.f32.mrf.mxu0
    %3027 = vmatprep.mubr.bf16.mxu0 0
    %3028 = vmatmul.mubr.bf16.gmra.mxu0 %v2816
    %v3029 = vpop.f32.mrf.mxu0
    %v3030 = vadd.f32 %v2710, %v3029
    %v3031 = vpop.f32.mrf.mxu0
    %v3032 = vpop.f32.mrf.mxu0
    %v3033 = vadd.f32 %v2710, %v3032
    %v3034 = vpop.f32.mrf.mxu0
    %3035 = vmatprep.mubr.bf16.mxu0 0
    %3036 = vmatmul.mubr.bf16.gmra.mxu0 %v2819
    %v3037 = vpop.f32.mrf.mxu0
    %v3038 = vadd.f32 %v2710, %v3037
    %v3039 = vpop.f32.mrf.mxu0
    %v3040 = vpop.f32.mrf.mxu0
    %v3041 = vadd.f32 %v2710, %v3040
    %v3042 = vpop.f32.mrf.mxu0
    %3043 = vmatprep.mubr.bf16.mxu0 0
    %3044 = vmatmul.mubr.bf16.gmra.mxu0 %v2822
    %v3045 = vpop.f32.mrf.mxu0
    %v3046 = vadd.f32 %v2710, %v3045
    %v3047 = vpop.f32.mrf.mxu0
    %v3048 = vpop.f32.mrf.mxu0
    %v3049 = vadd.f32 %v2710, %v3048
    %v3050 = vpop.f32.mrf.mxu0
    %3051 = vdwg.mxu0
    %v3052 = vmax.f32 %v2862, 0.0
    %v3053 = vmax.f32 %v2865, 0.0
    %v3054 = vmax.f32 %v2870, 0.0
    %v3055 = vmax.f32 %v2873, 0.0
    %v3056 = vmax.f32 %v2878, 0.0
    %v3057 = vmax.f32 %v2881, 0.0
    %v3058 = vmax.f32 %v2886, 0.0
    %v3059 = vmax.f32 %v2889, 0.0
    %v3060 = vmax.f32 %v2894, 0.0
    %v3061 = vmax.f32 %v2897, 0.0
    %v3062 = vmax.f32 %v2902, 0.0
    %v3063 = vmax.f32 %v2905, 0.0
    %v3064 = vmax.f32 %v2910, 0.0
    %v3065 = vmax.f32 %v2913, 0.0
    %v3066 = vmax.f32 %v2918, 0.0
    %v3067 = vmax.f32 %v2921, 0.0
    %v3068 = vmax.f32 %v2926, 0.0
    %v3069 = vmax.f32 %v2929, 0.0
    %v3070 = vmax.f32 %v2934, 0.0
    %v3071 = vmax.f32 %v2937, 0.0
    %v3072 = vmax.f32 %v2942, 0.0
    %v3073 = vmax.f32 %v2945, 0.0
    %v3074 = vmax.f32 %v2950, 0.0
    %v3075 = vmax.f32 %v2953, 0.0
    %v3076 = vmax.f32 %v2958, 0.0
    %v3077 = vmax.f32 %v2961, 0.0
    %v3078 = vmax.f32 %v2966, 0.0
    %v3079 = vmax.f32 %v2969, 0.0
    %v3080 = vmax.f32 %v2974, 0.0
    %v3081 = vmax.f32 %v2977, 0.0
    %v3082 = vmax.f32 %v2982, 0.0
    %v3083 = vmax.f32 %v2985, 0.0
    %v3084 = vmax.f32 %v2990, 0.0
    %v3085 = vmax.f32 %v2993, 0.0
    %v3086 = vmax.f32 %v2998, 0.0
    %v3087 = vmax.f32 %v3001, 0.0
    %v3088 = vmax.f32 %v3006, 0.0
    %v3089 = vmax.f32 %v3009, 0.0
    %v3090 = vmax.f32 %v3014, 0.0
    %v3091 = vmax.f32 %v3017, 0.0
    %v3092 = vmax.f32 %v3022, 0.0
    %v3093 = vmax.f32 %v3025, 0.0
    %v3094 = vmax.f32 %v3030, 0.0
    %v3095 = vmax.f32 %v3033, 0.0
    %v3096 = vmax.f32 %v3038, 0.0
    %v3097 = vmax.f32 %v3041, 0.0
    %v3098 = vmax.f32 %v3046, 0.0
    %v3099 = vmax.f32 %v3049, 0.0
    %v3100 = vld [vmem:[%s13] sm:$0xf]
    %v3101 = vld [vmem:[%s13 + $0x4] sm:$0xf]
    %v3102 = vld [vmem:[%s13 + $0x8] sm:$0xf]
    %v3103 = vld [vmem:[%s13 + $0xc] sm:$0xf]
    %v3104 = vld [vmem:[%s13 + $0x10] sm:$0xf]
    %v3105 = vld [vmem:[%s13 + $0x14] sm:$0xf]
    %v3106 = vld [vmem:[%s13 + $0x18] sm:$0xf]
    %v3107 = vld [vmem:[%s13 + $0x1c] sm:$0xf]
    %v3108 = vld [vmem:[%s13 + $0x20] sm:$0xf]
    %v3109 = vld [vmem:[%s13 + $0x24] sm:$0xf]
    %v3110 = vld [vmem:[%s13 + $0x28] sm:$0xf]
    %v3111 = vld [vmem:[%s13 + $0x2c] sm:$0xf]
    %v3112 = vld [vmem:[%s13 + $0x30] sm:$0x3]
    %v3113 = vpack.c.bf16 %v3053, %v3052
    %v3114 = vpack.c.bf16 %v3055, %v3054
    %v3115 = vpack.c.bf16 %v3057, %v3056
    %v3116 = vpack.c.bf16 %v3059, %v3058
    %v3117 = vpack.c.bf16 %v3061, %v3060
    %v3118 = vpack.c.bf16 %v3063, %v3062
    %v3119 = vpack.c.bf16 %v3065, %v3064
    %v3120 = vpack.c.bf16 %v3067, %v3066
    %v3121 = vpack.c.bf16 %v3069, %v3068
    %v3122 = vpack.c.bf16 %v3071, %v3070
    %v3123 = vpack.c.bf16 %v3073, %v3072
    %v3124 = vpack.c.bf16 %v3075, %v3074
    %v3125 = vpack.c.bf16 %v3077, %v3076
    %v3126 = vpack.c.bf16 %v3079, %v3078
    %v3127 = vpack.c.bf16 %v3081, %v3080
    %v3128 = vpack.c.bf16 %v3083, %v3082
    %v3129 = vpack.c.bf16 %v3085, %v3084
    %v3130 = vpack.c.bf16 %v3087, %v3086
    %v3131 = vpack.c.bf16 %v3089, %v3088
    %v3132 = vpack.c.bf16 %v3091, %v3090
    %v3133 = vpack.c.bf16 %v3093, %v3092
    %v3134 = vpack.c.bf16 %v3095, %v3094
    %v3135 = vpack.c.bf16 %v3097, %v3096
    %v3136 = vpack.c.bf16 %v3099, %v3098
    %v3137 = vld [vmem:[%s14] sm:$0x1]
    %v3139 = vlaneseq
    %v3140 = vshrl.u32 %v3139, 7
    %v3141 = vsub.s32 0, %v3140
    %v3142 = vrot.slane %v3137, %v3141
    %v3157 = vunpack.c.l.b16 %v3100
    %v3158 = vunpack.c.l.b16 %v3101
    %v3159 = vunpack.c.l.b16 %v3102
    %v3160 = vunpack.c.l.b16 %v3103
    %v3161 = vunpack.c.l.b16 %v3104
    %v3162 = vunpack.c.l.b16 %v3105
    %v3163 = vunpack.c.l.b16 %v3106
    %v3164 = vunpack.c.l.b16 %v3107
    %v3165 = vunpack.c.l.b16 %v3108
    %v3166 = vunpack.c.l.b16 %v3109
    %v3167 = vunpack.c.l.b16 %v3110
    %v3168 = vunpack.c.l.b16 %v3111
    %v3169 = vunpack.c.l.b16 %v3112
    %v3170 = vpack.c.b16 %v3158, %v3157
    %v3171 = vpack.c.b16 %v3160, %v3159
    %v3172 = vpack.c.b16 %v3162, %v3161
    %v3173 = vpack.c.b16 %v3164, %v3163
    %v3174 = vpack.c.b16 %v3166, %v3165
    %v3175 = vpack.c.b16 %v3168, %v3167
    %v3176 = vpack.c.b16 %v3169, %v3169
    %v3184 = vsel %vm2751, %v3113, 0
    %v3187 = vsel %vm2751, %v3114, 0
    %v3190 = vsel %vm2751, %v3115, 0
    %v3193 = vsel %vm2751, %v3116, 0
    %v3196 = vsel %vm2751, %v3117, 0
    %v3199 = vsel %vm2751, %v3118, 0
    %v3202 = vsel %vm2751, %v3119, 0
    %v3205 = vsel %vm2751, %v3120, 0
    %v3208 = vsel %vm2751, %v3121, 0
    %v3211 = vsel %vm2751, %v3122, 0
    %v3214 = vsel %vm2751, %v3123, 0
    %v3217 = vsel %vm2751, %v3124, 0
    %v3220 = vsel %vm2751, %v3125, 0
    %v3223 = vsel %vm2751, %v3126, 0
    %v3226 = vsel %vm2751, %v3127, 0
    %v3229 = vsel %vm2751, %v3128, 0
    %v3232 = vsel %vm2751, %v3129, 0
    %v3235 = vsel %vm2751, %v3130, 0
    %v3238 = vsel %vm2751, %v3131, 0
    %v3241 = vsel %vm2751, %v3132, 0
    %v3244 = vsel %vm2751, %v3133, 0
    %v3247 = vsel %vm2751, %v3134, 0
    %v3250 = vsel %vm2751, %v3135, 0
    %v3253 = vsel %vm2751, %v3136, 0
    %v3256 = vsel %vm785, %v3176, 0
    %3258 = vmatprep.subr.bf16.mxu0 0
    %3259 = vmatpush1.bf16.msra.mxu0 0
    %3260 = vmatprep.subr.bf16.mxu0 0
    %3261 = vmatpush1.bf16.msra.mxu0 %v3256
    %3262 = vmatprep.subr.bf16.mxu0 0
    %3263 = vmatpush1.bf16.msra.mxu0 %v3175
    %3264 = vmatprep.subr.bf16.mxu0 0
    %3265 = vmatpush1.bf16.msra.mxu0 %v3174
    %3266 = vmatprep.subr.bf16.mxu0 0
    %3267 = vmatpush1.bf16.msra.mxu0 %v3173
    %3268 = vmatprep.subr.bf16.mxu0 0
    %3269 = vmatpush1.bf16.msra.mxu0 %v3172
    %3270 = vmatprep.subr.bf16.mxu0 0
    %3271 = vmatpush1.bf16.msra.mxu0 %v3171
    %3272 = vmatprep.subr.bf16.mxu0 0
    %3273 = vmatpush1.bf16.msra.mxu0 %v3170
    %3274 = vmatprep.subr.bf16.mxu0 0
    %3275 = vmatpush2.bf16.msra.mxu0 0
    %3276 = vmatprep.subr.bf16.mxu0 0
    %3277 = vmatpush2.bf16.msra.mxu0 0
    %3278 = vmatprep.subr.bf16.mxu0 0
    %3279 = vmatpush2.bf16.msra.mxu0 0
    %3280 = vmatprep.subr.bf16.mxu0 0
    %3281 = vmatpush2.bf16.msra.mxu0 0
    %3282 = vmatprep.subr.bf16.mxu0 0
    %3283 = vmatpush2.bf16.msra.mxu0 0
    %3284 = vmatprep.subr.bf16.mxu0 0
    %3285 = vmatpush2.bf16.msra.mxu0 0
    %3286 = vmatprep.subr.bf16.mxu0 0
    %3287 = vmatpush2.bf16.msra.mxu0 0
    %3288 = vmatprep.subr.bf16.mxu0 0
    %3289 = vmatpush2.bf16.msra.mxu0 0
    %3290 = vmatprep.mubr.bf16.mxu0 0
    %3291 = vmatmul.mubr.bf16.gmra.mxu0 %v3184
    %v3292 = vpop.f32.mrf.mxu0
    %v3293 = vadd.f32 %v3142, %v3292
    %v3294 = vpop.f32.mrf.mxu0
    %v3295 = vpop.f32.mrf.mxu0
    %v3296 = vadd.f32 %v3142, %v3295
    %v3297 = vpop.f32.mrf.mxu0
    %3298 = vmatprep.mubr.bf16.mxu0 0
    %3299 = vmatmul.mubr.bf16.gmra.mxu0 %v3187
    %v3300 = vpop.f32.mrf.mxu0
    %v3301 = vadd.f32 %v3142, %v3300
    %v3302 = vpop.f32.mrf.mxu0
    %v3303 = vpop.f32.mrf.mxu0
    %v3304 = vadd.f32 %v3142, %v3303
    %v3305 = vpop.f32.mrf.mxu0
    %3306 = vmatprep.mubr.bf16.mxu0 0
    %3307 = vmatmul.mubr.bf16.gmra.mxu0 %v3190
    %v3308 = vpop.f32.mrf.mxu0
    %v3309 = vadd.f32 %v3142, %v3308
    %v3310 = vpop.f32.mrf.mxu0
    %v3311 = vpop.f32.mrf.mxu0
    %v3312 = vadd.f32 %v3142, %v3311
    %v3313 = vpop.f32.mrf.mxu0
    %3314 = vmatprep.mubr.bf16.mxu0 0
    %3315 = vmatmul.mubr.bf16.gmra.mxu0 %v3193
    %v3316 = vpop.f32.mrf.mxu0
    %v3317 = vadd.f32 %v3142, %v3316
    %v3318 = vpop.f32.mrf.mxu0
    %v3319 = vpop.f32.mrf.mxu0
    %v3320 = vadd.f32 %v3142, %v3319
    %v3321 = vpop.f32.mrf.mxu0
    %3322 = vmatprep.mubr.bf16.mxu0 0
    %3323 = vmatmul.mubr.bf16.gmra.mxu0 %v3196
    %v3324 = vpop.f32.mrf.mxu0
    %v3325 = vadd.f32 %v3142, %v3324
    %v3326 = vpop.f32.mrf.mxu0
    %v3327 = vpop.f32.mrf.mxu0
    %v3328 = vadd.f32 %v3142, %v3327
    %v3329 = vpop.f32.mrf.mxu0
    %3330 = vmatprep.mubr.bf16.mxu0 0
    %3331 = vmatmul.mubr.bf16.gmra.mxu0 %v3199
    %v3332 = vpop.f32.mrf.mxu0
    %v3333 = vadd.f32 %v3142, %v3332
    %v3334 = vpop.f32.mrf.mxu0
    %v3335 = vpop.f32.mrf.mxu0
    %v3336 = vadd.f32 %v3142, %v3335
    %v3337 = vpop.f32.mrf.mxu0
    %3338 = vmatprep.mubr.bf16.mxu0 0
    %3339 = vmatmul.mubr.bf16.gmra.mxu0 %v3202
    %v3340 = vpop.f32.mrf.mxu0
    %v3341 = vadd.f32 %v3142, %v3340
    %v3342 = vpop.f32.mrf.mxu0
    %v3343 = vpop.f32.mrf.mxu0
    %v3344 = vadd.f32 %v3142, %v3343
    %v3345 = vpop.f32.mrf.mxu0
    %3346 = vmatprep.mubr.bf16.mxu0 0
    %3347 = vmatmul.mubr.bf16.gmra.mxu0 %v3205
    %v3348 = vpop.f32.mrf.mxu0
    %v3349 = vadd.f32 %v3142, %v3348
    %v3350 = vpop.f32.mrf.mxu0
    %v3351 = vpop.f32.mrf.mxu0
    %v3352 = vadd.f32 %v3142, %v3351
    %v3353 = vpop.f32.mrf.mxu0
    %3354 = vmatprep.mubr.bf16.mxu0 0
    %3355 = vmatmul.mubr.bf16.gmra.mxu0 %v3208
    %v3356 = vpop.f32.mrf.mxu0
    %v3357 = vadd.f32 %v3142, %v3356
    %v3358 = vpop.f32.mrf.mxu0
    %v3359 = vpop.f32.mrf.mxu0
    %v3360 = vadd.f32 %v3142, %v3359
    %v3361 = vpop.f32.mrf.mxu0
    %3362 = vmatprep.mubr.bf16.mxu0 0
    %3363 = vmatmul.mubr.bf16.gmra.mxu0 %v3211
    %v3364 = vpop.f32.mrf.mxu0
    %v3365 = vadd.f32 %v3142, %v3364
    %v3366 = vpop.f32.mrf.mxu0
    %v3367 = vpop.f32.mrf.mxu0
    %v3368 = vadd.f32 %v3142, %v3367
    %v3369 = vpop.f32.mrf.mxu0
    %3370 = vmatprep.mubr.bf16.mxu0 0
    %3371 = vmatmul.mubr.bf16.gmra.mxu0 %v3214
    %v3372 = vpop.f32.mrf.mxu0
    %v3373 = vadd.f32 %v3142, %v3372
    %v3374 = vpop.f32.mrf.mxu0
    %v3375 = vpop.f32.mrf.mxu0
    %v3376 = vadd.f32 %v3142, %v3375
    %v3377 = vpop.f32.mrf.mxu0
    %3378 = vmatprep.mubr.bf16.mxu0 0
    %3379 = vmatmul.mubr.bf16.gmra.mxu0 %v3217
    %v3380 = vpop.f32.mrf.mxu0
    %v3381 = vadd.f32 %v3142, %v3380
    %v3382 = vpop.f32.mrf.mxu0
    %v3383 = vpop.f32.mrf.mxu0
    %v3384 = vadd.f32 %v3142, %v3383
    %v3385 = vpop.f32.mrf.mxu0
    %3386 = vmatprep.mubr.bf16.mxu0 0
    %3387 = vmatmul.mubr.bf16.gmra.mxu0 %v3220
    %v3388 = vpop.f32.mrf.mxu0
    %v3389 = vadd.f32 %v3142, %v3388
    %v3390 = vpop.f32.mrf.mxu0
    %v3391 = vpop.f32.mrf.mxu0
    %v3392 = vadd.f32 %v3142, %v3391
    %v3393 = vpop.f32.mrf.mxu0
    %3394 = vmatprep.mubr.bf16.mxu0 0
    %3395 = vmatmul.mubr.bf16.gmra.mxu0 %v3223
    %v3396 = vpop.f32.mrf.mxu0
    %v3397 = vadd.f32 %v3142, %v3396
    %v3398 = vpop.f32.mrf.mxu0
    %v3399 = vpop.f32.mrf.mxu0
    %v3400 = vadd.f32 %v3142, %v3399
    %v3401 = vpop.f32.mrf.mxu0
    %3402 = vmatprep.mubr.bf16.mxu0 0
    %3403 = vmatmul.mubr.bf16.gmra.mxu0 %v3226
    %v3404 = vpop.f32.mrf.mxu0
    %v3405 = vadd.f32 %v3142, %v3404
    %v3406 = vpop.f32.mrf.mxu0
    %v3407 = vpop.f32.mrf.mxu0
    %v3408 = vadd.f32 %v3142, %v3407
    %v3409 = vpop.f32.mrf.mxu0
    %3410 = vmatprep.mubr.bf16.mxu0 0
    %3411 = vmatmul.mubr.bf16.gmra.mxu0 %v3229
    %v3412 = vpop.f32.mrf.mxu0
    %v3413 = vadd.f32 %v3142, %v3412
    %v3414 = vpop.f32.mrf.mxu0
    %v3415 = vpop.f32.mrf.mxu0
    %v3416 = vadd.f32 %v3142, %v3415
    %v3417 = vpop.f32.mrf.mxu0
    %3418 = vmatprep.mubr.bf16.mxu0 0
    %3419 = vmatmul.mubr.bf16.gmra.mxu0 %v3232
    %v3420 = vpop.f32.mrf.mxu0
    %v3421 = vadd.f32 %v3142, %v3420
    %v3422 = vpop.f32.mrf.mxu0
    %v3423 = vpop.f32.mrf.mxu0
    %v3424 = vadd.f32 %v3142, %v3423
    %v3425 = vpop.f32.mrf.mxu0
    %3426 = vmatprep.mubr.bf16.mxu0 0
    %3427 = vmatmul.mubr.bf16.gmra.mxu0 %v3235
    %v3428 = vpop.f32.mrf.mxu0
    %v3429 = vadd.f32 %v3142, %v3428
    %v3430 = vpop.f32.mrf.mxu0
    %v3431 = vpop.f32.mrf.mxu0
    %v3432 = vadd.f32 %v3142, %v3431
    %v3433 = vpop.f32.mrf.mxu0
    %3434 = vmatprep.mubr.bf16.mxu0 0
    %3435 = vmatmul.mubr.bf16.gmra.mxu0 %v3238
    %v3436 = vpop.f32.mrf.mxu0
    %v3437 = vadd.f32 %v3142, %v3436
    %v3438 = vpop.f32.mrf.mxu0
    %v3439 = vpop.f32.mrf.mxu0
    %v3440 = vadd.f32 %v3142, %v3439
    %v3441 = vpop.f32.mrf.mxu0
    %3442 = vmatprep.mubr.bf16.mxu0 0
    %3443 = vmatmul.mubr.bf16.gmra.mxu0 %v3241
    %v3444 = vpop.f32.mrf.mxu0
    %v3445 = vadd.f32 %v3142, %v3444
    %v3446 = vpop.f32.mrf.mxu0
    %v3447 = vpop.f32.mrf.mxu0
    %v3448 = vadd.f32 %v3142, %v3447
    %v3449 = vpop.f32.mrf.mxu0
    %3450 = vmatprep.mubr.bf16.mxu0 0
    %3451 = vmatmul.mubr.bf16.gmra.mxu0 %v3244
    %v3452 = vpop.f32.mrf.mxu0
    %v3453 = vadd.f32 %v3142, %v3452
    %v3454 = vpop.f32.mrf.mxu0
    %v3455 = vpop.f32.mrf.mxu0
    %v3456 = vadd.f32 %v3142, %v3455
    %v3457 = vpop.f32.mrf.mxu0
    %3458 = vmatprep.mubr.bf16.mxu0 0
    %3459 = vmatmul.mubr.bf16.gmra.mxu0 %v3247
    %v3460 = vpop.f32.mrf.mxu0
    %v3461 = vadd.f32 %v3142, %v3460
    %v3462 = vpop.f32.mrf.mxu0
    %v3463 = vpop.f32.mrf.mxu0
    %v3464 = vadd.f32 %v3142, %v3463
    %v3465 = vpop.f32.mrf.mxu0
    %3466 = vmatprep.mubr.bf16.mxu0 0
    %3467 = vmatmul.mubr.bf16.gmra.mxu0 %v3250
    %v3468 = vpop.f32.mrf.mxu0
    %v3469 = vadd.f32 %v3142, %v3468
    %v3470 = vpop.f32.mrf.mxu0
    %v3471 = vpop.f32.mrf.mxu0
    %v3472 = vadd.f32 %v3142, %v3471
    %v3473 = vpop.f32.mrf.mxu0
    %3474 = vmatprep.mubr.bf16.mxu0 0
    %3475 = vmatmul.mubr.bf16.gmra.mxu0 %v3253
    %v3476 = vpop.f32.mrf.mxu0
    %v3477 = vadd.f32 %v3142, %v3476
    %v3478 = vpop.f32.mrf.mxu0
    %v3479 = vpop.f32.mrf.mxu0
    %v3480 = vadd.f32 %v3142, %v3479
    %v3481 = vpop.f32.mrf.mxu0
    %3482 = vdwg.mxu0
    %v3483 = vmax.f32 %v3293, 0.0
    %v3484 = vmax.f32 %v3296, 0.0
    %v3485 = vmax.f32 %v3301, 0.0
    %v3486 = vmax.f32 %v3304, 0.0
    %v3487 = vmax.f32 %v3309, 0.0
    %v3488 = vmax.f32 %v3312, 0.0
    %v3489 = vmax.f32 %v3317, 0.0
    %v3490 = vmax.f32 %v3320, 0.0
    %v3491 = vmax.f32 %v3325, 0.0
    %v3492 = vmax.f32 %v3328, 0.0
    %v3493 = vmax.f32 %v3333, 0.0
    %v3494 = vmax.f32 %v3336, 0.0
    %v3495 = vmax.f32 %v3341, 0.0
    %v3496 = vmax.f32 %v3344, 0.0
    %v3497 = vmax.f32 %v3349, 0.0
    %v3498 = vmax.f32 %v3352, 0.0
    %v3499 = vmax.f32 %v3357, 0.0
    %v3500 = vmax.f32 %v3360, 0.0
    %v3501 = vmax.f32 %v3365, 0.0
    %v3502 = vmax.f32 %v3368, 0.0
    %v3503 = vmax.f32 %v3373, 0.0
    %v3504 = vmax.f32 %v3376, 0.0
    %v3505 = vmax.f32 %v3381, 0.0
    %v3506 = vmax.f32 %v3384, 0.0
    %v3507 = vmax.f32 %v3389, 0.0
    %v3508 = vmax.f32 %v3392, 0.0
    %v3509 = vmax.f32 %v3397, 0.0
    %v3510 = vmax.f32 %v3400, 0.0
    %v3511 = vmax.f32 %v3405, 0.0
    %v3512 = vmax.f32 %v3408, 0.0
    %v3513 = vmax.f32 %v3413, 0.0
    %v3514 = vmax.f32 %v3416, 0.0
    %v3515 = vmax.f32 %v3421, 0.0
    %v3516 = vmax.f32 %v3424, 0.0
    %v3517 = vmax.f32 %v3429, 0.0
    %v3518 = vmax.f32 %v3432, 0.0
    %v3519 = vmax.f32 %v3437, 0.0
    %v3520 = vmax.f32 %v3440, 0.0
    %v3521 = vmax.f32 %v3445, 0.0
    %v3522 = vmax.f32 %v3448, 0.0
    %v3523 = vmax.f32 %v3453, 0.0
    %v3524 = vmax.f32 %v3456, 0.0
    %v3525 = vmax.f32 %v3461, 0.0
    %v3526 = vmax.f32 %v3464, 0.0
    %v3527 = vmax.f32 %v3469, 0.0
    %v3528 = vmax.f32 %v3472, 0.0
    %v3529 = vmax.f32 %v3477, 0.0
    %v3530 = vmax.f32 %v3480, 0.0
    %v3531 = vld [vmem:[%s15] sm:$0xf]
    %v3532 = vld [vmem:[%s15 + $0x4] sm:$0xf]
    %v3533 = vld [vmem:[%s15 + $0x8] sm:$0xf]
    %v3534 = vld [vmem:[%s15 + $0xc] sm:$0xf]
    %v3535 = vld [vmem:[%s15 + $0x10] sm:$0xf]
    %v3536 = vld [vmem:[%s15 + $0x14] sm:$0xf]
    %v3537 = vld [vmem:[%s15 + $0x18] sm:$0x1]
    %v3538 = vpack.c.bf16 %v3484, %v3483
    %v3539 = vpack.c.bf16 %v3486, %v3485
    %v3540 = vpack.c.bf16 %v3488, %v3487
    %v3541 = vpack.c.bf16 %v3490, %v3489
    %v3542 = vpack.c.bf16 %v3492, %v3491
    %v3543 = vpack.c.bf16 %v3494, %v3493
    %v3544 = vpack.c.bf16 %v3496, %v3495
    %v3545 = vpack.c.bf16 %v3498, %v3497
    %v3546 = vpack.c.bf16 %v3500, %v3499
    %v3547 = vpack.c.bf16 %v3502, %v3501
    %v3548 = vpack.c.bf16 %v3504, %v3503
    %v3549 = vpack.c.bf16 %v3506, %v3505
    %v3550 = vpack.c.bf16 %v3508, %v3507
    %v3551 = vpack.c.bf16 %v3510, %v3509
    %v3552 = vpack.c.bf16 %v3512, %v3511
    %v3553 = vpack.c.bf16 %v3514, %v3513
    %v3554 = vpack.c.bf16 %v3516, %v3515
    %v3555 = vpack.c.bf16 %v3518, %v3517
    %v3556 = vpack.c.bf16 %v3520, %v3519
    %v3557 = vpack.c.bf16 %v3522, %v3521
    %v3558 = vpack.c.bf16 %v3524, %v3523
    %v3559 = vpack.c.bf16 %v3526, %v3525
    %v3560 = vpack.c.bf16 %v3528, %v3527
    %v3561 = vpack.c.bf16 %v3530, %v3529
    %v3562 = vld [vmem:[%s16] sm:$0x1]
    %v3564 = vlaneseq
    %v3565 = vshrl.u32 %v3564, 7
    %v3566 = vsub.s32 0, %v3565
    %v3567 = vrot.slane %v3562, %v3566
    %v3576 = vunpack.c.l.b16 %v3531
    %v3577 = vunpack.c.l.b16 %v3532
    %v3578 = vunpack.c.l.b16 %v3533
    %v3579 = vunpack.c.l.b16 %v3534
    %v3580 = vunpack.c.l.b16 %v3535
    %v3581 = vunpack.c.l.b16 %v3536
    %v3582 = vunpack.c.l.b16 %v3537
    %v3583 = vpack.c.b16 %v3577, %v3576
    %v3584 = vpack.c.b16 %v3579, %v3578
    %v3585 = vpack.c.b16 %v3581, %v3580
    %v3586 = vpack.c.b16 %v3582, %v3582
    %vm3590 = vcmask 408576
    %v3592 = vsel %vm3590, %v3538, 0
    %v3595 = vsel %vm3590, %v3539, 0
    %v3598 = vsel %vm3590, %v3540, 0
    %v3601 = vsel %vm3590, %v3541, 0
    %v3604 = vsel %vm3590, %v3542, 0
    %v3607 = vsel %vm3590, %v3543, 0
    %v3610 = vsel %vm3590, %v3544, 0
    %v3613 = vsel %vm3590, %v3545, 0
    %v3616 = vsel %vm3590, %v3546, 0
    %v3619 = vsel %vm3590, %v3547, 0
    %v3622 = vsel %vm3590, %v3548, 0
    %v3625 = vsel %vm3590, %v3549, 0
    %v3628 = vsel %vm3590, %v3550, 0
    %v3631 = vsel %vm3590, %v3551, 0
    %v3634 = vsel %vm3590, %v3552, 0
    %v3637 = vsel %vm3590, %v3553, 0
    %v3640 = vsel %vm3590, %v3554, 0
    %v3643 = vsel %vm3590, %v3555, 0
    %v3646 = vsel %vm3590, %v3556, 0
    %v3649 = vsel %vm3590, %v3557, 0
    %v3652 = vsel %vm3590, %v3558, 0
    %v3655 = vsel %vm3590, %v3559, 0
    %v3658 = vsel %vm3590, %v3560, 0
    %v3661 = vsel %vm3590, %v3561, 0
    %vm3663 = vcmask 1040384
    %v3665 = vsel %vm3663, %v3586, 0
    %3667 = vmatprep.subr.bf16.mxu0 0
    %3668 = vmatpush1.bf16.msra.mxu0 0
    %3669 = vmatprep.subr.bf16.mxu0 0
    %3670 = vmatpush1.bf16.msra.mxu0 0
    %3671 = vmatprep.subr.bf16.mxu0 0
    %3672 = vmatpush1.bf16.msra.mxu0 0
    %3673 = vmatprep.subr.bf16.mxu0 0
    %3674 = vmatpush1.bf16.msra.mxu0 0
    %3675 = vmatprep.subr.bf16.mxu0 0
    %3676 = vmatpush1.bf16.msra.mxu0 %v3665
    %3677 = vmatprep.subr.bf16.mxu0 0
    %3678 = vmatpush1.bf16.msra.mxu0 %v3585
    %3679 = vmatprep.subr.bf16.mxu0 0
    %3680 = vmatpush1.bf16.msra.mxu0 %v3584
    %3681 = vmatprep.subr.bf16.mxu0 0
    %3682 = vmatpush1.bf16.msra.mxu0 %v3583
    %3683 = vmatprep.subr.bf16.mxu0 0
    %3684 = vmatpush2.bf16.msra.mxu0 0
    %3685 = vmatprep.subr.bf16.mxu0 0
    %3686 = vmatpush2.bf16.msra.mxu0 0
    %3687 = vmatprep.subr.bf16.mxu0 0
    %3688 = vmatpush2.bf16.msra.mxu0 0
    %3689 = vmatprep.subr.bf16.mxu0 0
    %3690 = vmatpush2.bf16.msra.mxu0 0
    %3691 = vmatprep.subr.bf16.mxu0 0
    %3692 = vmatpush2.bf16.msra.mxu0 0
    %3693 = vmatprep.subr.bf16.mxu0 0
    %3694 = vmatpush2.bf16.msra.mxu0 0
    %3695 = vmatprep.subr.bf16.mxu0 0
    %3696 = vmatpush2.bf16.msra.mxu0 0
    %3697 = vmatprep.subr.bf16.mxu0 0
    %3698 = vmatpush2.bf16.msra.mxu0 0
    %3699 = vmatprep.mubr.bf16.mxu0 0
    %3700 = vmatmul.mubr.bf16.gmra.mxu0 %v3592
    %v3701 = vpop.f32.mrf.mxu0
    %v3702 = vadd.f32 %v3567, %v3701
    %v3703 = vpop.f32.mrf.mxu0
    %v3704 = vpop.f32.mrf.mxu0
    %v3705 = vadd.f32 %v3567, %v3704
    %v3706 = vpop.f32.mrf.mxu0
    %3707 = vmatprep.mubr.bf16.mxu0 0
    %3708 = vmatmul.mubr.bf16.gmra.mxu0 %v3595
    %v3709 = vpop.f32.mrf.mxu0
    %v3710 = vadd.f32 %v3567, %v3709
    %v3711 = vpop.f32.mrf.mxu0
    %v3712 = vpop.f32.mrf.mxu0
    %v3713 = vadd.f32 %v3567, %v3712
    %v3714 = vpop.f32.mrf.mxu0
    %3715 = vmatprep.mubr.bf16.mxu0 0
    %3716 = vmatmul.mubr.bf16.gmra.mxu0 %v3598
    %v3717 = vpop.f32.mrf.mxu0
    %v3718 = vadd.f32 %v3567, %v3717
    %v3719 = vpop.f32.mrf.mxu0
    %v3720 = vpop.f32.mrf.mxu0
    %v3721 = vadd.f32 %v3567, %v3720
    %v3722 = vpop.f32.mrf.mxu0
    %3723 = vmatprep.mubr.bf16.mxu0 0
    %3724 = vmatmul.mubr.bf16.gmra.mxu0 %v3601
    %v3725 = vpop.f32.mrf.mxu0
    %v3726 = vadd.f32 %v3567, %v3725
    %v3727 = vpop.f32.mrf.mxu0
    %v3728 = vpop.f32.mrf.mxu0
    %v3729 = vadd.f32 %v3567, %v3728
    %v3730 = vpop.f32.mrf.mxu0
    %3731 = vmatprep.mubr.bf16.mxu0 0
    %3732 = vmatmul.mubr.bf16.gmra.mxu0 %v3604
    %v3733 = vpop.f32.mrf.mxu0
    %v3734 = vadd.f32 %v3567, %v3733
    %v3735 = vpop.f32.mrf.mxu0
    %v3736 = vpop.f32.mrf.mxu0
    %v3737 = vadd.f32 %v3567, %v3736
    %v3738 = vpop.f32.mrf.mxu0
    %3739 = vmatprep.mubr.bf16.mxu0 0
    %3740 = vmatmul.mubr.bf16.gmra.mxu0 %v3607
    %v3741 = vpop.f32.mrf.mxu0
    %v3742 = vadd.f32 %v3567, %v3741
    %v3743 = vpop.f32.mrf.mxu0
    %v3744 = vpop.f32.mrf.mxu0
    %v3745 = vadd.f32 %v3567, %v3744
    %v3746 = vpop.f32.mrf.mxu0
    %3747 = vmatprep.mubr.bf16.mxu0 0
    %3748 = vmatmul.mubr.bf16.gmra.mxu0 %v3610
    %v3749 = vpop.f32.mrf.mxu0
    %v3750 = vadd.f32 %v3567, %v3749
    %v3751 = vpop.f32.mrf.mxu0
    %v3752 = vpop.f32.mrf.mxu0
    %v3753 = vadd.f32 %v3567, %v3752
    %v3754 = vpop.f32.mrf.mxu0
    %3755 = vmatprep.mubr.bf16.mxu0 0
    %3756 = vmatmul.mubr.bf16.gmra.mxu0 %v3613
    %v3757 = vpop.f32.mrf.mxu0
    %v3758 = vadd.f32 %v3567, %v3757
    %v3759 = vpop.f32.mrf.mxu0
    %v3760 = vpop.f32.mrf.mxu0
    %v3761 = vadd.f32 %v3567, %v3760
    %v3762 = vpop.f32.mrf.mxu0
    %3763 = vmatprep.mubr.bf16.mxu0 0
    %3764 = vmatmul.mubr.bf16.gmra.mxu0 %v3616
    %v3765 = vpop.f32.mrf.mxu0
    %v3766 = vadd.f32 %v3567, %v3765
    %v3767 = vpop.f32.mrf.mxu0
    %v3768 = vpop.f32.mrf.mxu0
    %v3769 = vadd.f32 %v3567, %v3768
    %v3770 = vpop.f32.mrf.mxu0
    %3771 = vmatprep.mubr.bf16.mxu0 0
    %3772 = vmatmul.mubr.bf16.gmra.mxu0 %v3619
    %v3773 = vpop.f32.mrf.mxu0
    %v3774 = vadd.f32 %v3567, %v3773
    %v3775 = vpop.f32.mrf.mxu0
    %v3776 = vpop.f32.mrf.mxu0
    %v3777 = vadd.f32 %v3567, %v3776
    %v3778 = vpop.f32.mrf.mxu0
    %3779 = vmatprep.mubr.bf16.mxu0 0
    %3780 = vmatmul.mubr.bf16.gmra.mxu0 %v3622
    %v3781 = vpop.f32.mrf.mxu0
    %v3782 = vadd.f32 %v3567, %v3781
    %v3783 = vpop.f32.mrf.mxu0
    %v3784 = vpop.f32.mrf.mxu0
    %v3785 = vadd.f32 %v3567, %v3784
    %v3786 = vpop.f32.mrf.mxu0
    %3787 = vmatprep.mubr.bf16.mxu0 0
    %3788 = vmatmul.mubr.bf16.gmra.mxu0 %v3625
    %v3789 = vpop.f32.mrf.mxu0
    %v3790 = vadd.f32 %v3567, %v3789
    %v3791 = vpop.f32.mrf.mxu0
    %v3792 = vpop.f32.mrf.mxu0
    %v3793 = vadd.f32 %v3567, %v3792
    %v3794 = vpop.f32.mrf.mxu0
    %3795 = vmatprep.mubr.bf16.mxu0 0
    %3796 = vmatmul.mubr.bf16.gmra.mxu0 %v3628
    %v3797 = vpop.f32.mrf.mxu0
    %v3798 = vadd.f32 %v3567, %v3797
    %v3799 = vpop.f32.mrf.mxu0
    %v3800 = vpop.f32.mrf.mxu0
    %v3801 = vadd.f32 %v3567, %v3800
    %v3802 = vpop.f32.mrf.mxu0
    %3803 = vmatprep.mubr.bf16.mxu0 0
    %3804 = vmatmul.mubr.bf16.gmra.mxu0 %v3631
    %v3805 = vpop.f32.mrf.mxu0
    %v3806 = vadd.f32 %v3567, %v3805
    %v3807 = vpop.f32.mrf.mxu0
    %v3808 = vpop.f32.mrf.mxu0
    %v3809 = vadd.f32 %v3567, %v3808
    %v3810 = vpop.f32.mrf.mxu0
    %3811 = vmatprep.mubr.bf16.mxu0 0
    %3812 = vmatmul.mubr.bf16.gmra.mxu0 %v3634
    %v3813 = vpop.f32.mrf.mxu0
    %v3814 = vadd.f32 %v3567, %v3813
    %v3815 = vpop.f32.mrf.mxu0
    %v3816 = vpop.f32.mrf.mxu0
    %v3817 = vadd.f32 %v3567, %v3816
    %v3818 = vpop.f32.mrf.mxu0
    %3819 = vmatprep.mubr.bf16.mxu0 0
    %3820 = vmatmul.mubr.bf16.gmra.mxu0 %v3637
    %v3821 = vpop.f32.mrf.mxu0
    %v3822 = vadd.f32 %v3567, %v3821
    %v3823 = vpop.f32.mrf.mxu0
    %v3824 = vpop.f32.mrf.mxu0
    %v3825 = vadd.f32 %v3567, %v3824
    %v3826 = vpop.f32.mrf.mxu0
    %3827 = vmatprep.mubr.bf16.mxu0 0
    %3828 = vmatmul.mubr.bf16.gmra.mxu0 %v3640
    %v3829 = vpop.f32.mrf.mxu0
    %v3830 = vadd.f32 %v3567, %v3829
    %v3831 = vpop.f32.mrf.mxu0
    %v3832 = vpop.f32.mrf.mxu0
    %v3833 = vadd.f32 %v3567, %v3832
    %v3834 = vpop.f32.mrf.mxu0
    %3835 = vmatprep.mubr.bf16.mxu0 0
    %3836 = vmatmul.mubr.bf16.gmra.mxu0 %v3643
    %v3837 = vpop.f32.mrf.mxu0
    %v3838 = vadd.f32 %v3567, %v3837
    %v3839 = vpop.f32.mrf.mxu0
    %v3840 = vpop.f32.mrf.mxu0
    %v3841 = vadd.f32 %v3567, %v3840
    %v3842 = vpop.f32.mrf.mxu0
    %3843 = vmatprep.mubr.bf16.mxu0 0
    %3844 = vmatmul.mubr.bf16.gmra.mxu0 %v3646
    %v3845 = vpop.f32.mrf.mxu0
    %v3846 = vadd.f32 %v3567, %v3845
    %v3847 = vpop.f32.mrf.mxu0
    %v3848 = vpop.f32.mrf.mxu0
    %v3849 = vadd.f32 %v3567, %v3848
    %v3850 = vpop.f32.mrf.mxu0
    %3851 = vmatprep.mubr.bf16.mxu0 0
    %3852 = vmatmul.mubr.bf16.gmra.mxu0 %v3649
    %v3853 = vpop.f32.mrf.mxu0
    %v3854 = vadd.f32 %v3567, %v3853
    %v3855 = vpop.f32.mrf.mxu0
    %v3856 = vpop.f32.mrf.mxu0
    %v3857 = vadd.f32 %v3567, %v3856
    %v3858 = vpop.f32.mrf.mxu0
    %3859 = vmatprep.mubr.bf16.mxu0 0
    %3860 = vmatmul.mubr.bf16.gmra.mxu0 %v3652
    %v3861 = vpop.f32.mrf.mxu0
    %v3862 = vadd.f32 %v3567, %v3861
    %v3863 = vpop.f32.mrf.mxu0
    %v3864 = vpop.f32.mrf.mxu0
    %v3865 = vadd.f32 %v3567, %v3864
    %v3866 = vpop.f32.mrf.mxu0
    %3867 = vmatprep.mubr.bf16.mxu0 0
    %3868 = vmatmul.mubr.bf16.gmra.mxu0 %v3655
    %v3869 = vpop.f32.mrf.mxu0
    %v3870 = vadd.f32 %v3567, %v3869
    %v3871 = vpop.f32.mrf.mxu0
    %v3872 = vpop.f32.mrf.mxu0
    %v3873 = vadd.f32 %v3567, %v3872
    %v3874 = vpop.f32.mrf.mxu0
    %3875 = vmatprep.mubr.bf16.mxu0 0
    %3876 = vmatmul.mubr.bf16.gmra.mxu0 %v3658
    %v3877 = vpop.f32.mrf.mxu0
    %v3878 = vadd.f32 %v3567, %v3877
    %v3879 = vpop.f32.mrf.mxu0
    %v3880 = vpop.f32.mrf.mxu0
    %v3881 = vadd.f32 %v3567, %v3880
    %v3882 = vpop.f32.mrf.mxu0
    %3883 = vmatprep.mubr.bf16.mxu0 0
    %3884 = vmatmul.mubr.bf16.gmra.mxu0 %v3661
    %v3885 = vpop.f32.mrf.mxu0
    %v3886 = vadd.f32 %v3567, %v3885
    %v3887 = vpop.f32.mrf.mxu0
    %v3888 = vpop.f32.mrf.mxu0
    %v3889 = vadd.f32 %v3567, %v3888
    %v3890 = vpop.f32.mrf.mxu0
    %3891 = vdwg.mxu0
    %v3892 = vmax.f32 %v3702, 0.0
    %v3893 = vmax.f32 %v3705, 0.0
    %v3894 = vmax.f32 %v3710, 0.0
    %v3895 = vmax.f32 %v3713, 0.0
    %v3896 = vmax.f32 %v3718, 0.0
    %v3897 = vmax.f32 %v3721, 0.0
    %v3898 = vmax.f32 %v3726, 0.0
    %v3899 = vmax.f32 %v3729, 0.0
    %v3900 = vmax.f32 %v3734, 0.0
    %v3901 = vmax.f32 %v3737, 0.0
    %v3902 = vmax.f32 %v3742, 0.0
    %v3903 = vmax.f32 %v3745, 0.0
    %v3904 = vmax.f32 %v3750, 0.0
    %v3905 = vmax.f32 %v3753, 0.0
    %v3906 = vmax.f32 %v3758, 0.0
    %v3907 = vmax.f32 %v3761, 0.0
    %v3908 = vmax.f32 %v3766, 0.0
    %v3909 = vmax.f32 %v3769, 0.0
    %v3910 = vmax.f32 %v3774, 0.0
    %v3911 = vmax.f32 %v3777, 0.0
    %v3912 = vmax.f32 %v3782, 0.0
    %v3913 = vmax.f32 %v3785, 0.0
    %v3914 = vmax.f32 %v3790, 0.0
    %v3915 = vmax.f32 %v3793, 0.0
    %v3916 = vmax.f32 %v3798, 0.0
    %v3917 = vmax.f32 %v3801, 0.0
    %v3918 = vmax.f32 %v3806, 0.0
    %v3919 = vmax.f32 %v3809, 0.0
    %v3920 = vmax.f32 %v3814, 0.0
    %v3921 = vmax.f32 %v3817, 0.0
    %v3922 = vmax.f32 %v3822, 0.0
    %v3923 = vmax.f32 %v3825, 0.0
    %v3924 = vmax.f32 %v3830, 0.0
    %v3925 = vmax.f32 %v3833, 0.0
    %v3926 = vmax.f32 %v3838, 0.0
    %v3927 = vmax.f32 %v3841, 0.0
    %v3928 = vmax.f32 %v3846, 0.0
    %v3929 = vmax.f32 %v3849, 0.0
    %v3930 = vmax.f32 %v3854, 0.0
    %v3931 = vmax.f32 %v3857, 0.0
    %v3932 = vmax.f32 %v3862, 0.0
    %v3933 = vmax.f32 %v3865, 0.0
    %v3934 = vmax.f32 %v3870, 0.0
    %v3935 = vmax.f32 %v3873, 0.0
    %v3936 = vmax.f32 %v3878, 0.0
    %v3937 = vmax.f32 %v3881, 0.0
    %v3938 = vmax.f32 %v3886, 0.0
    %v3939 = vmax.f32 %v3889, 0.0
    %v3940 = vld [vmem:[%s17] sm:$0xf]
    %v3941 = vld [vmem:[%s17 + $0x4] sm:$0xf]
    %v3942 = vld [vmem:[%s17 + $0x8] sm:$0x3]
    %v3943 = vpack.c.bf16 %v3893, %v3892
    %v3944 = vpack.c.bf16 %v3895, %v3894
    %v3945 = vpack.c.bf16 %v3897, %v3896
    %v3946 = vpack.c.bf16 %v3899, %v3898
    %v3947 = vpack.c.bf16 %v3901, %v3900
    %v3948 = vpack.c.bf16 %v3903, %v3902
    %v3949 = vpack.c.bf16 %v3905, %v3904
    %v3950 = vpack.c.bf16 %v3907, %v3906
    %v3951 = vpack.c.bf16 %v3909, %v3908
    %v3952 = vpack.c.bf16 %v3911, %v3910
    %v3953 = vpack.c.bf16 %v3913, %v3912
    %v3954 = vpack.c.bf16 %v3915, %v3914
    %v3955 = vpack.c.bf16 %v3917, %v3916
    %v3956 = vpack.c.bf16 %v3919, %v3918
    %v3957 = vpack.c.bf16 %v3921, %v3920
    %v3958 = vpack.c.bf16 %v3923, %v3922
    %v3959 = vpack.c.bf16 %v3925, %v3924
    %v3960 = vpack.c.bf16 %v3927, %v3926
    %v3961 = vpack.c.bf16 %v3929, %v3928
    %v3962 = vpack.c.bf16 %v3931, %v3930
    %v3963 = vpack.c.bf16 %v3933, %v3932
    %v3964 = vpack.c.bf16 %v3935, %v3934
    %v3965 = vpack.c.bf16 %v3937, %v3936
    %v3966 = vpack.c.bf16 %v3939, %v3938
    %v3967 = vld [vmem:[%s18] sm:$0x1]
    %v3969 = vlaneseq
    %v3970 = vshrl.u32 %v3969, 7
    %v3971 = vsub.s32 0, %v3970
    %v3972 = vrot.slane %v3967, %v3971
    %v3977 = vunpack.c.l.b16 %v3940
    %v3978 = vunpack.c.l.b16 %v3941
    %v3979 = vunpack.c.l.b16 %v3942
    %v3980 = vpack.c.b16 %v3978, %v3977
    %v3981 = vpack.c.b16 %v3979, %v3979
    %vm3983 = vcmask 162816
    %v3985 = vsel %vm3983, %v3943, 0
    %v3988 = vsel %vm3983, %v3944, 0
    %v3991 = vsel %vm3983, %v3945, 0
    %v3994 = vsel %vm3983, %v3946, 0
    %v3997 = vsel %vm3983, %v3947, 0
    %v4000 = vsel %vm3983, %v3948, 0
    %v4003 = vsel %vm3983, %v3949, 0
    %v4006 = vsel %vm3983, %v3950, 0
    %v4009 = vsel %vm3983, %v3951, 0
    %v4012 = vsel %vm3983, %v3952, 0
    %v4015 = vsel %vm3983, %v3953, 0
    %v4018 = vsel %vm3983, %v3954, 0
    %v4021 = vsel %vm3983, %v3955, 0
    %v4024 = vsel %vm3983, %v3956, 0
    %v4027 = vsel %vm3983, %v3957, 0
    %v4030 = vsel %vm3983, %v3958, 0
    %v4033 = vsel %vm3983, %v3959, 0
    %v4036 = vsel %vm3983, %v3960, 0
    %v4039 = vsel %vm3983, %v3961, 0
    %v4042 = vsel %vm3983, %v3962, 0
    %v4045 = vsel %vm3983, %v3963, 0
    %v4048 = vsel %vm3983, %v3964, 0
    %v4051 = vsel %vm3983, %v3965, 0
    %v4054 = vsel %vm3983, %v3966, 0
    %v4057 = vsel %vm785, %v3981, 0
    %4059 = vmatprep.subr.bf16.mxu0 0
    %4060 = vmatpush1.bf16.msra.mxu0 0
    %4061 = vmatprep.subr.bf16.mxu0 0
    %4062 = vmatpush1.bf16.msra.mxu0 0
    %4063 = vmatprep.subr.bf16.mxu0 0
    %4064 = vmatpush1.bf16.msra.mxu0 0
    %4065 = vmatprep.subr.bf16.mxu0 0
    %4066 = vmatpush1.bf16.msra.mxu0 0
    %4067 = vmatprep.subr.bf16.mxu0 0
    %4068 = vmatpush1.bf16.msra.mxu0 0
    %4069 = vmatprep.subr.bf16.mxu0 0
    %4070 = vmatpush1.bf16.msra.mxu0 0
    %4071 = vmatprep.subr.bf16.mxu0 0
    %4072 = vmatpush1.bf16.msra.mxu0 %v4057
    %4073 = vmatprep.subr.bf16.mxu0 0
    %4074 = vmatpush1.bf16.msra.mxu0 %v3980
    %4075 = vmatprep.subr.bf16.mxu0 0
    %4076 = vmatpush2.bf16.msra.mxu0 0
    %4077 = vmatprep.subr.bf16.mxu0 0
    %4078 = vmatpush2.bf16.msra.mxu0 0
    %4079 = vmatprep.subr.bf16.mxu0 0
    %4080 = vmatpush2.bf16.msra.mxu0 0
    %4081 = vmatprep.subr.bf16.mxu0 0
    %4082 = vmatpush2.bf16.msra.mxu0 0
    %4083 = vmatprep.subr.bf16.mxu0 0
    %4084 = vmatpush2.bf16.msra.mxu0 0
    %4085 = vmatprep.subr.bf16.mxu0 0
    %4086 = vmatpush2.bf16.msra.mxu0 0
    %4087 = vmatprep.subr.bf16.mxu0 0
    %4088 = vmatpush2.bf16.msra.mxu0 0
    %4089 = vmatprep.subr.bf16.mxu0 0
    %4090 = vmatpush2.bf16.msra.mxu0 0
    %4091 = vmatprep.mubr.bf16.mxu0 0
    %4092 = vmatmul.mubr.bf16.gmra.mxu0 %v3985
    %v4093 = vpop.f32.mrf.mxu0
    %v4094 = vadd.f32 %v3972, %v4093
    %v4095 = vpop.f32.mrf.mxu0
    %v4096 = vpop.f32.mrf.mxu0
    %v4097 = vadd.f32 %v3972, %v4096
    %v4098 = vpop.f32.mrf.mxu0
    %4099 = vmatprep.mubr.bf16.mxu0 0
    %4100 = vmatmul.mubr.bf16.gmra.mxu0 %v3988
    %v4101 = vpop.f32.mrf.mxu0
    %v4102 = vadd.f32 %v3972, %v4101
    %v4103 = vpop.f32.mrf.mxu0
    %v4104 = vpop.f32.mrf.mxu0
    %v4105 = vadd.f32 %v3972, %v4104
    %v4106 = vpop.f32.mrf.mxu0
    %4107 = vmatprep.mubr.bf16.mxu0 0
    %4108 = vmatmul.mubr.bf16.gmra.mxu0 %v3991
    %v4109 = vpop.f32.mrf.mxu0
    %v4110 = vadd.f32 %v3972, %v4109
    %v4111 = vpop.f32.mrf.mxu0
    %v4112 = vpop.f32.mrf.mxu0
    %v4113 = vadd.f32 %v3972, %v4112
    %v4114 = vpop.f32.mrf.mxu0
    %4115 = vmatprep.mubr.bf16.mxu0 0
    %4116 = vmatmul.mubr.bf16.gmra.mxu0 %v3994
    %v4117 = vpop.f32.mrf.mxu0
    %v4118 = vadd.f32 %v3972, %v4117
    %v4119 = vpop.f32.mrf.mxu0
    %v4120 = vpop.f32.mrf.mxu0
    %v4121 = vadd.f32 %v3972, %v4120
    %v4122 = vpop.f32.mrf.mxu0
    %4123 = vmatprep.mubr.bf16.mxu0 0
    %4124 = vmatmul.mubr.bf16.gmra.mxu0 %v3997
    %v4125 = vpop.f32.mrf.mxu0
    %v4126 = vadd.f32 %v3972, %v4125
    %v4127 = vpop.f32.mrf.mxu0
    %v4128 = vpop.f32.mrf.mxu0
    %v4129 = vadd.f32 %v3972, %v4128
    %v4130 = vpop.f32.mrf.mxu0
    %4131 = vmatprep.mubr.bf16.mxu0 0
    %4132 = vmatmul.mubr.bf16.gmra.mxu0 %v4000
    %v4133 = vpop.f32.mrf.mxu0
    %v4134 = vadd.f32 %v3972, %v4133
    %v4135 = vpop.f32.mrf.mxu0
    %v4136 = vpop.f32.mrf.mxu0
    %v4137 = vadd.f32 %v3972, %v4136
    %v4138 = vpop.f32.mrf.mxu0
    %4139 = vmatprep.mubr.bf16.mxu0 0
    %4140 = vmatmul.mubr.bf16.gmra.mxu0 %v4003
    %v4141 = vpop.f32.mrf.mxu0
    %v4142 = vadd.f32 %v3972, %v4141
    %v4143 = vpop.f32.mrf.mxu0
    %v4144 = vpop.f32.mrf.mxu0
    %v4145 = vadd.f32 %v3972, %v4144
    %v4146 = vpop.f32.mrf.mxu0
    %4147 = vmatprep.mubr.bf16.mxu0 0
    %4148 = vmatmul.mubr.bf16.gmra.mxu0 %v4006
    %v4149 = vpop.f32.mrf.mxu0
    %v4150 = vadd.f32 %v3972, %v4149
    %v4151 = vpop.f32.mrf.mxu0
    %v4152 = vpop.f32.mrf.mxu0
    %v4153 = vadd.f32 %v3972, %v4152
    %v4154 = vpop.f32.mrf.mxu0
    %4155 = vmatprep.mubr.bf16.mxu0 0
    %4156 = vmatmul.mubr.bf16.gmra.mxu0 %v4009
    %v4157 = vpop.f32.mrf.mxu0
    %v4158 = vadd.f32 %v3972, %v4157
    %v4159 = vpop.f32.mrf.mxu0
    %v4160 = vpop.f32.mrf.mxu0
    %v4161 = vadd.f32 %v3972, %v4160
    %v4162 = vpop.f32.mrf.mxu0
    %4163 = vmatprep.mubr.bf16.mxu0 0
    %4164 = vmatmul.mubr.bf16.gmra.mxu0 %v4012
    %v4165 = vpop.f32.mrf.mxu0
    %v4166 = vadd.f32 %v3972, %v4165
    %v4167 = vpop.f32.mrf.mxu0
    %v4168 = vpop.f32.mrf.mxu0
    %v4169 = vadd.f32 %v3972, %v4168
    %v4170 = vpop.f32.mrf.mxu0
    %4171 = vmatprep.mubr.bf16.mxu0 0
    %4172 = vmatmul.mubr.bf16.gmra.mxu0 %v4015
    %v4173 = vpop.f32.mrf.mxu0
    %v4174 = vadd.f32 %v3972, %v4173
    %v4175 = vpop.f32.mrf.mxu0
    %v4176 = vpop.f32.mrf.mxu0
    %v4177 = vadd.f32 %v3972, %v4176
    %v4178 = vpop.f32.mrf.mxu0
    %4179 = vmatprep.mubr.bf16.mxu0 0
    %4180 = vmatmul.mubr.bf16.gmra.mxu0 %v4018
    %v4181 = vpop.f32.mrf.mxu0
    %v4182 = vadd.f32 %v3972, %v4181
    %v4183 = vpop.f32.mrf.mxu0
    %v4184 = vpop.f32.mrf.mxu0
    %v4185 = vadd.f32 %v3972, %v4184
    %v4186 = vpop.f32.mrf.mxu0
    %4187 = vmatprep.mubr.bf16.mxu0 0
    %4188 = vmatmul.mubr.bf16.gmra.mxu0 %v4021
    %v4189 = vpop.f32.mrf.mxu0
    %v4190 = vadd.f32 %v3972, %v4189
    %v4191 = vpop.f32.mrf.mxu0
    %v4192 = vpop.f32.mrf.mxu0
    %v4193 = vadd.f32 %v3972, %v4192
    %v4194 = vpop.f32.mrf.mxu0
    %4195 = vmatprep.mubr.bf16.mxu0 0
    %4196 = vmatmul.mubr.bf16.gmra.mxu0 %v4024
    %v4197 = vpop.f32.mrf.mxu0
    %v4198 = vadd.f32 %v3972, %v4197
    %v4199 = vpop.f32.mrf.mxu0
    %v4200 = vpop.f32.mrf.mxu0
    %v4201 = vadd.f32 %v3972, %v4200
    %v4202 = vpop.f32.mrf.mxu0
    %4203 = vmatprep.mubr.bf16.mxu0 0
    %4204 = vmatmul.mubr.bf16.gmra.mxu0 %v4027
    %v4205 = vpop.f32.mrf.mxu0
    %v4206 = vadd.f32 %v3972, %v4205
    %v4207 = vpop.f32.mrf.mxu0
    %v4208 = vpop.f32.mrf.mxu0
    %v4209 = vadd.f32 %v3972, %v4208
    %v4210 = vpop.f32.mrf.mxu0
    %4211 = vmatprep.mubr.bf16.mxu0 0
    %4212 = vmatmul.mubr.bf16.gmra.mxu0 %v4030
    %v4213 = vpop.f32.mrf.mxu0
    %v4214 = vadd.f32 %v3972, %v4213
    %v4215 = vpop.f32.mrf.mxu0
    %v4216 = vpop.f32.mrf.mxu0
    %v4217 = vadd.f32 %v3972, %v4216
    %v4218 = vpop.f32.mrf.mxu0
    %4219 = vmatprep.mubr.bf16.mxu0 0
    %4220 = vmatmul.mubr.bf16.gmra.mxu0 %v4033
    %v4221 = vpop.f32.mrf.mxu0
    %v4222 = vadd.f32 %v3972, %v4221
    %v4223 = vpop.f32.mrf.mxu0
    %v4224 = vpop.f32.mrf.mxu0
    %v4225 = vadd.f32 %v3972, %v4224
    %v4226 = vpop.f32.mrf.mxu0
    %4227 = vmatprep.mubr.bf16.mxu0 0
    %4228 = vmatmul.mubr.bf16.gmra.mxu0 %v4036
    %v4229 = vpop.f32.mrf.mxu0
    %v4230 = vadd.f32 %v3972, %v4229
    %v4231 = vpop.f32.mrf.mxu0
    %v4232 = vpop.f32.mrf.mxu0
    %v4233 = vadd.f32 %v3972, %v4232
    %v4234 = vpop.f32.mrf.mxu0
    %4235 = vmatprep.mubr.bf16.mxu0 0
    %4236 = vmatmul.mubr.bf16.gmra.mxu0 %v4039
    %v4237 = vpop.f32.mrf.mxu0
    %v4238 = vadd.f32 %v3972, %v4237
    %v4239 = vpop.f32.mrf.mxu0
    %v4240 = vpop.f32.mrf.mxu0
    %v4241 = vadd.f32 %v3972, %v4240
    %v4242 = vpop.f32.mrf.mxu0
    %4243 = vmatprep.mubr.bf16.mxu0 0
    %4244 = vmatmul.mubr.bf16.gmra.mxu0 %v4042
    %v4245 = vpop.f32.mrf.mxu0
    %v4246 = vadd.f32 %v3972, %v4245
    %v4247 = vpop.f32.mrf.mxu0
    %v4248 = vpop.f32.mrf.mxu0
    %v4249 = vadd.f32 %v3972, %v4248
    %v4250 = vpop.f32.mrf.mxu0
    %4251 = vmatprep.mubr.bf16.mxu0 0
    %4252 = vmatmul.mubr.bf16.gmra.mxu0 %v4045
    %v4253 = vpop.f32.mrf.mxu0
    %v4254 = vadd.f32 %v3972, %v4253
    %v4255 = vpop.f32.mrf.mxu0
    %v4256 = vpop.f32.mrf.mxu0
    %v4257 = vadd.f32 %v3972, %v4256
    %v4258 = vpop.f32.mrf.mxu0
    %4259 = vmatprep.mubr.bf16.mxu0 0
    %4260 = vmatmul.mubr.bf16.gmra.mxu0 %v4048
    %v4261 = vpop.f32.mrf.mxu0
    %v4262 = vadd.f32 %v3972, %v4261
    %v4263 = vpop.f32.mrf.mxu0
    %v4264 = vpop.f32.mrf.mxu0
    %v4265 = vadd.f32 %v3972, %v4264
    %v4266 = vpop.f32.mrf.mxu0
    %4267 = vmatprep.mubr.bf16.mxu0 0
    %4268 = vmatmul.mubr.bf16.gmra.mxu0 %v4051
    %v4269 = vpop.f32.mrf.mxu0
    %v4270 = vadd.f32 %v3972, %v4269
    %v4271 = vpop.f32.mrf.mxu0
    %v4272 = vpop.f32.mrf.mxu0
    %v4273 = vadd.f32 %v3972, %v4272
    %v4274 = vpop.f32.mrf.mxu0
    %4275 = vmatprep.mubr.bf16.mxu0 0
    %4276 = vmatmul.mubr.bf16.gmra.mxu0 %v4054
    %v4277 = vpop.f32.mrf.mxu0
    %v4278 = vadd.f32 %v3972, %v4277
    %v4279 = vpop.f32.mrf.mxu0
    %v4280 = vpop.f32.mrf.mxu0
    %v4281 = vadd.f32 %v3972, %v4280
    %v4282 = vpop.f32.mrf.mxu0
    %4283 = vdwg.mxu0
    %v4284 = vmax.f32 %v4094, 0.0
    %v4285 = vmax.f32 %v4097, 0.0
    %v4286 = vmax.f32 %v4102, 0.0
    %v4287 = vmax.f32 %v4105, 0.0
    %v4288 = vmax.f32 %v4110, 0.0
    %v4289 = vmax.f32 %v4113, 0.0
    %v4290 = vmax.f32 %v4118, 0.0
    %v4291 = vmax.f32 %v4121, 0.0
    %v4292 = vmax.f32 %v4126, 0.0
    %v4293 = vmax.f32 %v4129, 0.0
    %v4294 = vmax.f32 %v4134, 0.0
    %v4295 = vmax.f32 %v4137, 0.0
    %v4296 = vmax.f32 %v4142, 0.0
    %v4297 = vmax.f32 %v4145, 0.0
    %v4298 = vmax.f32 %v4150, 0.0
    %v4299 = vmax.f32 %v4153, 0.0
    %v4300 = vmax.f32 %v4158, 0.0
    %v4301 = vmax.f32 %v4161, 0.0
    %v4302 = vmax.f32 %v4166, 0.0
    %v4303 = vmax.f32 %v4169, 0.0
    %v4304 = vmax.f32 %v4174, 0.0
    %v4305 = vmax.f32 %v4177, 0.0
    %v4306 = vmax.f32 %v4182, 0.0
    %v4307 = vmax.f32 %v4185, 0.0
    %v4308 = vmax.f32 %v4190, 0.0
    %v4309 = vmax.f32 %v4193, 0.0
    %v4310 = vmax.f32 %v4198, 0.0
    %v4311 = vmax.f32 %v4201, 0.0
    %v4312 = vmax.f32 %v4206, 0.0
    %v4313 = vmax.f32 %v4209, 0.0
    %v4314 = vmax.f32 %v4214, 0.0
    %v4315 = vmax.f32 %v4217, 0.0
    %v4316 = vmax.f32 %v4222, 0.0
    %v4317 = vmax.f32 %v4225, 0.0
    %v4318 = vmax.f32 %v4230, 0.0
    %v4319 = vmax.f32 %v4233, 0.0
    %v4320 = vmax.f32 %v4238, 0.0
    %v4321 = vmax.f32 %v4241, 0.0
    %v4322 = vmax.f32 %v4246, 0.0
    %v4323 = vmax.f32 %v4249, 0.0
    %v4324 = vmax.f32 %v4254, 0.0
    %v4325 = vmax.f32 %v4257, 0.0
    %v4326 = vmax.f32 %v4262, 0.0
    %v4327 = vmax.f32 %v4265, 0.0
    %v4328 = vmax.f32 %v4270, 0.0
    %v4329 = vmax.f32 %v4273, 0.0
    %v4330 = vmax.f32 %v4278, 0.0
    %v4331 = vmax.f32 %v4281, 0.0
    %v4332 = vld [vmem:[%s19] sm:$0x1]
    %v4333 = vpack.c.bf16 %v4285, %v4284
    %v4334 = vpack.c.bf16 %v4287, %v4286
    %v4335 = vpack.c.bf16 %v4289, %v4288
    %v4336 = vpack.c.bf16 %v4291, %v4290
    %v4337 = vpack.c.bf16 %v4293, %v4292
    %v4338 = vpack.c.bf16 %v4295, %v4294
    %v4339 = vpack.c.bf16 %v4297, %v4296
    %v4340 = vpack.c.bf16 %v4299, %v4298
    %v4341 = vpack.c.bf16 %v4301, %v4300
    %v4342 = vpack.c.bf16 %v4303, %v4302
    %v4343 = vpack.c.bf16 %v4305, %v4304
    %v4344 = vpack.c.bf16 %v4307, %v4306
    %v4345 = vpack.c.bf16 %v4309, %v4308
    %v4346 = vpack.c.bf16 %v4311, %v4310
    %v4347 = vpack.c.bf16 %v4313, %v4312
    %v4348 = vpack.c.bf16 %v4315, %v4314
    %v4349 = vpack.c.bf16 %v4317, %v4316
    %v4350 = vpack.c.bf16 %v4319, %v4318
    %v4351 = vpack.c.bf16 %v4321, %v4320
    %v4352 = vpack.c.bf16 %v4323, %v4322
    %v4353 = vpack.c.bf16 %v4325, %v4324
    %v4354 = vpack.c.bf16 %v4327, %v4326
    %v4355 = vpack.c.bf16 %v4329, %v4328
    %v4356 = vpack.c.bf16 %v4331, %v4330
    %v4357 = vld [vmem:[#allocation2] sm:$0x1]
    %4359 = vset.pattern.permute.xlu0 0
    %4360 = vperm.xlu0 %4359, %v4357
    %v4361 = vpop.permute.xlu0 %4360
    %v4363 = vlaneseq
    %v4364 = vshrl.u32 %v4363, 7
    %v4365 = vsub.s32 0, %v4364
    %v4366 = vrot.slane %v4361, %v4365
    %vm4367 = vcmask 80896
    %v4369 = vsel %vm4367, %v4332, 0
    %v4372 = vsel %vm4367, %v4333, 0
    %v4375 = vsel %vm4367, %v4334, 0
    %v4378 = vsel %vm4367, %v4335, 0
    %v4381 = vsel %vm4367, %v4336, 0
    %v4384 = vsel %vm4367, %v4337, 0
    %v4387 = vsel %vm4367, %v4338, 0
    %v4390 = vsel %vm4367, %v4339, 0
    %v4393 = vsel %vm4367, %v4340, 0
    %v4396 = vsel %vm4367, %v4341, 0
    %v4399 = vsel %vm4367, %v4342, 0
    %v4402 = vsel %vm4367, %v4343, 0
    %v4405 = vsel %vm4367, %v4344, 0
    %v4408 = vsel %vm4367, %v4345, 0
    %v4411 = vsel %vm4367, %v4346, 0
    %v4414 = vsel %vm4367, %v4347, 0
    %v4417 = vsel %vm4367, %v4348, 0
    %v4420 = vsel %vm4367, %v4349, 0
    %v4423 = vsel %vm4367, %v4350, 0
    %v4426 = vsel %vm4367, %v4351, 0
    %v4429 = vsel %vm4367, %v4352, 0
    %v4432 = vsel %vm4367, %v4353, 0
    %v4435 = vsel %vm4367, %v4354, 0
    %v4438 = vsel %vm4367, %v4355, 0
    %v4441 = vsel %vm4367, %v4356, 0
    %4443 = vmatprep.subr.bf16.mxu0 0
    %4444 = vmatpush1.bf16.xpose.msra.mxu0 %v4393
    %4445 = vmatprep.subr.bf16.mxu0 0
    %4446 = vmatpush1.bf16.xpose.msra.mxu0 %v4390
    %4447 = vmatprep.subr.bf16.mxu0 0
    %4448 = vmatpush1.bf16.xpose.msra.mxu0 %v4387
    %4449 = vmatprep.subr.bf16.mxu0 0
    %4450 = vmatpush1.bf16.xpose.msra.mxu0 %v4384
    %4451 = vmatprep.subr.bf16.mxu0 0
    %4452 = vmatpush1.bf16.xpose.msra.mxu0 %v4381
    %4453 = vmatprep.subr.bf16.mxu0 0
    %4454 = vmatpush1.bf16.xpose.msra.mxu0 %v4378
    %4455 = vmatprep.subr.bf16.mxu0 0
    %4456 = vmatpush1.bf16.xpose.msra.mxu0 %v4375
    %4457 = vmatprep.subr.bf16.mxu0 0
    %4458 = vmatpush1.bf16.xpose.msra.mxu0 %v4372
    %4459 = vmatprep.subr.bf16.mxu0 0
    %4460 = vmatpush2.bf16.xpose.msra.mxu0 %v4417
    %4461 = vmatprep.subr.bf16.mxu0 0
    %4462 = vmatpush2.bf16.xpose.msra.mxu0 %v4414
    %4463 = vmatprep.subr.bf16.mxu0 0
    %4464 = vmatpush2.bf16.xpose.msra.mxu0 %v4411
    %4465 = vmatprep.subr.bf16.mxu0 0
    %4466 = vmatpush2.bf16.xpose.msra.mxu0 %v4408
    %4467 = vmatprep.subr.bf16.mxu0 0
    %4468 = vmatpush2.bf16.xpose.msra.mxu0 %v4405
    %4469 = vmatprep.subr.bf16.mxu0 0
    %4470 = vmatpush2.bf16.xpose.msra.mxu0 %v4402
    %4471 = vmatprep.subr.bf16.mxu0 0
    %4472 = vmatpush2.bf16.xpose.msra.mxu0 %v4399
    %4473 = vmatprep.subr.bf16.mxu0 0
    %4474 = vmatpush2.bf16.xpose.msra.mxu0 %v4396
    %4475 = vmatprep.mubr.bf16.mxu0 0
    %4476 = vmatmul.mubr.bf16.gmra.mxu0 %v4369
    %v4477 = vpop.f32.mrf.mxu0
    %v4478 = vadd.f32 %v4366, %v4477
    %v4479 = vpop.f32.mrf.mxu0
    %v4480 = vadd.f32 %v4366, %v4479
    %v4481 = vpop.f32.mrf.mxu0
    %v4482 = vpop.f32.mrf.mxu0
    %4483 = vdwg.mxu0
    %4484 = vmatprep.subr.bf16.mxu0 0
    %4485 = vmatpush1.bf16.xpose.msra.mxu0 %v4441
    %4486 = vmatprep.subr.bf16.mxu0 0
    %4487 = vmatpush1.bf16.xpose.msra.mxu0 %v4438
    %4488 = vmatprep.subr.bf16.mxu0 0
    %4489 = vmatpush1.bf16.xpose.msra.mxu0 %v4435
    %4490 = vmatprep.subr.bf16.mxu0 0
    %4491 = vmatpush1.bf16.xpose.msra.mxu0 %v4432
    %4492 = vmatprep.subr.bf16.mxu0 0
    %4493 = vmatpush1.bf16.xpose.msra.mxu0 %v4429
    %4494 = vmatprep.subr.bf16.mxu0 0
    %4495 = vmatpush1.bf16.xpose.msra.mxu0 %v4426
    %4496 = vmatprep.subr.bf16.mxu0 0
    %4497 = vmatpush1.bf16.xpose.msra.mxu0 %v4423
    %4498 = vmatprep.subr.bf16.mxu0 0
    %4499 = vmatpush1.bf16.xpose.msra.mxu0 %v4420
    %4500 = vmatprep.subr.bf16.mxu0 0
    %4501 = vmatpush2.bf16.xpose.msra.mxu0 0
    %4502 = vmatprep.subr.bf16.mxu0 0
    %4503 = vmatpush2.bf16.xpose.msra.mxu0 0
    %4504 = vmatprep.subr.bf16.mxu0 0
    %4505 = vmatpush2.bf16.xpose.msra.mxu0 0
    %4506 = vmatprep.subr.bf16.mxu0 0
    %4507 = vmatpush2.bf16.xpose.msra.mxu0 0
    %4508 = vmatprep.subr.bf16.mxu0 0
    %4509 = vmatpush2.bf16.xpose.msra.mxu0 0
    %4510 = vmatprep.subr.bf16.mxu0 0
    %4511 = vmatpush2.bf16.xpose.msra.mxu0 0
    %4512 = vmatprep.subr.bf16.mxu0 0
    %4513 = vmatpush2.bf16.xpose.msra.mxu0 0
    %4514 = vmatprep.subr.bf16.mxu0 0
    %4515 = vmatpush2.bf16.xpose.msra.mxu0 0
    %4516 = vmatprep.mubr.bf16.mxu0 0
    %4517 = vmatmul.mubr.bf16.gmra.mxu0 %v4369
    %v4518 = vpop.f32.mrf.mxu0
    %v4519 = vadd.f32 %v4366, %v4518
    %v4520 = vpop.f32.mrf.mxu0
    %v4521 = vpop.f32.mrf.mxu0
    %v4522 = vpop.f32.mrf.mxu0
    %4523 = vdwg.mxu0
    %v4524 = vxor.u32 %v4478, 2147483648
    %v4525 = vxor.u32 %v4480, 2147483648
    %v4526 = vxor.u32 %v4519, 2147483648
    %v4527 = vmul.f32 %v4524, 1.442695
    %v4528 = vpow.pop %v4527
    %v4529 = vmul.f32 %v4525, 1.442695
    %v4530 = vpow.pop %v4529
    %v4531 = vmul.f32 %v4526, 1.442695
    %v4532 = vpow.pop %v4531
    %v4533 = vadd.f32 %v4528, 1.0
    %v4534 = vadd.f32 %v4530, 1.0
    %v4535 = vadd.f32 %v4532, 1.0
    %v4536 = vrcp.pop %v4533
    %v4537 = vmul.f32 1.0, %v4536
    %v4538 = vrcp.pop %v4534
    %v4539 = vmul.f32 1.0, %v4538
    %v4540 = vrcp.pop %v4535
    %v4541 = vmul.f32 1.0, %v4540
    %v4545 = vcombine.low %v4537, %v4539
    %v4547 = vunpack.c.l.s4 1966171168
    %v4548 = vunpack.c.0.s8 %v4547
    %v4549 = vlaneseq
    %v4550 = vshrl.u32 %v4549, 7
    %v4551 = vsub.s32 %v4548, %v4550
    %v4552 = vrot.slane %v4545, %v4551
    %v4554 = vunpack.c.l.s4 1966171168
    %v4555 = vunpack.c.0.s8 %v4554
    %v4556 = vlaneseq
    %v4557 = vshrl.u32 %v4556, 7
    %v4558 = vsub.s32 %v4555, %v4557
    %v4559 = vrot.slane %v4541, %v4558
    %v4560 = vcombine.low %v4552, %v4559
    %v4562 = vunpack.c.l.s4 1966171168
    %v4563 = vunpack.c.0.s8 %v4562
    %v4564 = vlaneseq
    %v4565 = vshrl.u32 %v4564, 7
    %v4566 = vsub.s32 %v4563, %v4565
    %v4567 = vrot.slane %v4560, %v4566
    %v4569 = vlaneseq
    %vm4570 = vcmp.ge.s32.totalorder %v4569, 0
    %vm4571 = vcmp.lt.s32.totalorder %v4569, 384
    %vm4572 = vmand %vm4570, %vm4571
    %4573 = vst.msk [vmem:[#allocation3] sm:$0x7] %vm4572, %v4567
    // Predicated region
    $region86: #{tpu_custom_call.1} parent=1 // pred_check
      _
    $region87: #{tpu_custom_call.1} parent=1 // pred_check_branch
      %4575 = sbr.rel (0) target = $region89
    $region88: #{tpu_custom_call.1} parent=1 // pred_region
      %s4577 = ssub.s32 48, 48
      %4578 = vsyncadd [#allocation4], %s4577
      %s4580 = sshll.u32 [#allocation3], 4
      %s4581 = int_to_ptr.vmem [resolvable:$true] %s4580
      %4583 = dma.vmem_to_hbm [thread:$0]  %s4581, 48, %s21, [#allocation4]
    $region89: #{tpu_custom_call.1} parent=1 // pred_fallthru
      _
    // Predicated region
    $region90: #{tpu_custom_call.1} parent=1 // pred_check
      _
    $region91: #{tpu_custom_call.1} parent=1 // pred_check_branch
      %4585 = sbr.rel (0) target = $region93
    $region92: #{tpu_custom_call.1} parent=1 // pred_region
      %4586 = dma.done [#allocation4], 48
    $region93: #{tpu_custom_call.1} parent=1 // pred_fallthru
      _
    %4587 = vsyncpa [#allocation4], 1

</llo_original>
